<compile_context>
chip_gen: v6e
topology: v6e:2x2x1
jax: 0.10.0
libtpu: 0.0.40
codegen_flags: <defaults>
</compile_context>

<pallas_src>
import functools
import math

import jax
import jax.numpy as jnp
from jax.experimental import pallas as pl
from jax.experimental.pallas import tpu as pltpu

GRID_SIZE = 5
SPLINE_ORDER = 3
GRID_RANGE = (-1.0, 1.0)
N_KNOTS = GRID_SIZE + 2 * SPLINE_ORDER + 1      # 12
N_BASES = GRID_SIZE + SPLINE_ORDER              # 8
_H = (GRID_RANGE[1] - GRID_RANGE[0]) / GRID_SIZE

# Uniform knot vector baked as compile-time constants (matches the `grid`
# buffer registered by KANLinear.__init__).  Only valid while update_grid()
# is never called -- it is not part of forward in this module.
KNOTS = tuple(float(m) * _H + GRID_RANGE[0]
              for m in range(-SPLINE_ORDER, GRID_SIZE + SPLINE_ORDER + 1))

# Cumulative uniform-grid Cox-de Boor denominator prod_{k=1..p}(k*h).
# The kernel computes the *unscaled* recursion; this constant is folded into
# the spline rows of the fused weights in init_kan_linear.
UNIFORM_DEN = math.prod(k * _H for k in range(1, SPLINE_ORDER + 1))


# ----------------------------- Pallas kernel ------------------------------- #
def _kan_fused_kernel(x_ref, w0, w1, w2, w3, w4, w5, out_ref, *,
                      knots, spline_order):
    """Fused 6-layer KAN forward.  Activations are (features, batch_tile)."""
    n_knots = len(knots)
    z = x_ref[...]                                        # (In0, bt) f32
    w_refs = (w0, w1, w2, w3, w4, w5)
    n_layers = len(w_refs)

    for li, w_ref in enumerate(w_refs):
        # base path activation
        silu = z * jax.nn.sigmoid(z)

        # Degree-0 bases via indicator differences (half-open [t_j, t_{j+1})):
        # ge[j] is monotone non-increasing in j, so ge[j]-ge[j+1] is the 0/1
        # indicator of the j-th knot interval.
        ge = [(z >= knots[j]).astype(jnp.float32) for j in range(n_knots)]
        bases = [ge[j] - ge[j + 1] for j in range(n_knots - 1)]

        # Unscaled Cox-de Boor recursion (uniform grid): denominators k*h are
        # identical for every j and are folded into the weights, so each term
        # is 2 mul + 1 sub.  Numerators (z - knot_j) are hoisted and shared.
        d = [z - knots[j] for j in range(n_knots)]
        for k in range(1, spline_order + 1):
            bases = [d[j] * bases[j] - d[j + k + 1] * bases[j + 1]
                     for j in range(len(bases) - 1)]
        # len(bases) == grid_size + spline_order

        # Sublane-axis stack (In is a multiple of 8 -> aligned, no lane shifts),
        # then ONE lane-dense MXU matmul per layer:
        #   (Out, (K+1)*In) @ ((K+1)*In, bt) -> (Out, bt)
        feat = jnp.concatenate([silu] + bases, axis=0)
        z = jnp.dot(w_ref[...], feat, preferred_element_type=jnp.float32)
        if li == n_layers - 1:
            z = jax.nn.sigmoid(z)                         # final Sigmoid

    out_ref[...] = z


def kan_forward_pallas(x, fused_weights, *, batch_tile=None):
    batch, in0 = x.shape
    out_f = fused_weights[-1].shape[0]

    if batch_tile is None:
        # Prefer >=2 grid steps (v7x megacore) with a lane-dense (multiple of
        # 128) tile; otherwise process the whole batch in one step.
        batch_tile = batch
        for cand in (512, 256, 128):
            if batch % cand == 0 and batch // cand >= 2:
                batch_tile = cand
                break
    # TODO(synk): ragged final batch tiles are not handled; pad the batch if
    # an explicit batch_tile that does not divide the batch is requested.
    assert batch % batch_tile == 0
    n_tiles = batch // batch_tile

    x_t = x.T                                             # (in0, batch)
    kernel = functools.partial(_kan_fused_kernel, knots=KNOTS,
                               spline_order=SPLINE_ORDER)

    # Full-array, constant-index BlockSpecs: weights are grid-invariant and
    # DMA'd to VMEM once per call (not per grid step, not double-buffered).
    w_specs = [pl.BlockSpec(w.shape, lambda b: (0, 0)) for w in fused_weights]

    out_t = pl.pallas_call(
        kernel,
        out_shape=jax.ShapeDtypeStruct((out_f, batch), jnp.float32),
        grid=(n_tiles,),
        in_specs=[pl.BlockSpec((in0, batch_tile), lambda b: (0, b))] + w_specs,
        out_specs=pl.BlockSpec((out_f, batch_tile), lambda b: (0, b)),
        compiler_params=pltpu.CompilerParams(
            dimension_semantics=("parallel",)),
    )(x_t, *fused_weights)
    return out_t.T                                        # (batch, out_f)


# ------------------------- parameter construction -------------------------- #
def init_kan_linear(key, in_f, out_f):
    """Deterministic synthetic init (shapes match torch KANLinear params)."""
    # TODO(synk): torch's reset_parameters sets spline_weight via a
    # torch.linalg.lstsq fit (curve2coeff) of random noise; here we use a
    # deterministic small uniform init of the same shape instead.
    k1, k2, k3 = jax.random.split(key, 3)
    grid = jnp.broadcast_to(jnp.asarray(KNOTS, jnp.float32)[None, :],
                            (in_f, N_KNOTS))              # (in, n_knots)

    bound = 1.0 / math.sqrt(in_f)
    base_w = jax.random.uniform(k1, (out_f, in_f), jnp.float32, -bound, bound)
    spline_w = jax.random.uniform(k2, (out_f, in_f, N_BASES),
                                  jnp.float32, -0.1 / GRID_SIZE, 0.1 / GRID_SIZE)
    spline_scaler = jax.random.uniform(k3, (out_f, in_f), jnp.float32,
                                       -bound, bound)

    # Kernel-friendly fused layout (pure glue, plain JAX), for the transposed
    # (features-on-sublanes, batch-on-lanes) kernel:
    #   fused_w : (out, (K+1)*in)
    #     cols [0, in)              -> base_w
    #     cols [in + j*in, ...)     -> scaled_spline_weight[:, :, j] / UNIFORM_DEN
    # The 1/prod(k*h) factor compensates the unscaled Cox-de Boor recursion.
    scaled = spline_w * spline_scaler[:, :, None]          # (out, in, K)
    scaled_folded = scaled / jnp.float32(UNIFORM_DEN)
    spline_cols = jnp.transpose(scaled_folded, (0, 2, 1)).reshape(
        out_f, N_BASES * in_f)                             # col = j*in + i
    fused_w = jnp.concatenate([base_w, spline_cols], axis=1)

    raw = dict(grid=grid, base_w=base_w, spline_w=spline_w,
               spline_scaler=spline_scaler)
    return fused_w, raw


# --------------------------- pure-JAX reference ----------------------------- #
def kan_linear_ref(x, raw):
    grid, base_w = raw["grid"], raw["base_w"]
    spline_w, spline_scaler = raw["spline_w"], raw["spline_scaler"]
    silu = x * jax.nn.sigmoid(x)
    base_out = silu @ base_w.T
    xg = x[:, :, None]
    bases = ((xg >= grid[:, :-1]) & (xg < grid[:, 1:])).astype(x.dtype)
    for k in range(1, SPLINE_ORDER + 1):
        bases = ((xg - grid[:, :-(k + 1)])
                 / (grid[:, k:-1] - grid[:, :-(k + 1)]) * bases[:, :, :-1]
                 + (grid[:, k + 1:] - xg)
                 / (grid[:, k + 1:] - grid[:, 1:-k]) * bases[:, :, 1:])
    scaled = spline_w * spline_scaler[:, :, None]
    spline_out = (bases.reshape(x.shape[0], -1)
                  @ scaled.reshape(base_w.shape[0], -1).T)
    return base_out + spline_out


# --------------------------------- model ------------------------------------ #
class KAN:
    """Mirrors WKAN.Module.KAN: 6 KANLinear layers, Sigmoid on the last.

    NOTE: the torch default hidden_dims=[150, 75] is inconsistent with the
    module body (it indexes hidden_dims[2..4]); a 5-element list is required.
    """

    def __init__(self, in_channels, hidden_dims, key):
        assert len(hidden_dims) == 5
        dims = [in_channels] + list(hidden_dims) + [2]
        keys = jax.random.split(key, 6)
        self.fused_weights = []
        self.raw = []
        for i in range(6):
            fused_w, raw = init_kan_linear(keys[i], dims[i], dims[i + 1])
            self.fused_weights.append(fused_w)
            self.raw.append(raw)

    def forward(self, inputs):
        x = inputs[0] if isinstance(inputs, (tuple, list)) else inputs
        z = kan_forward_pallas(x, self.fused_weights)
        return [z, inputs]

    def forward_ref(self, x):
        z = x
        for raw in self.raw:
            z = kan_linear_ref(z, raw)
        return jax.nn.sigmoid(z)


# ---------------------------------- main ------------------------------------ #
if __name__ == "__main__":
    key = jax.random.PRNGKey(0)
    kx, kp = jax.random.split(key)

    batch, in_channels = 8, 16
    hidden_dims = [32, 32, 32, 32, 32]

    x = jax.random.normal(kx, (batch, in_channels), dtype=jnp.float32)
    model = KAN(in_channels, hidden_dims, key=kp)

    out = model.forward([x])
    z = jax.block_until_ready(out[0])

    assert z.shape == (batch, 2)
    z_ref = model.forward_ref(x)
    assert jnp.allclose(z, z_ref, rtol=1e-3, atol=1e-4), "mismatch vs reference"

    print("KERNEL_OK")
</pallas_src>

<mosaic_0001>
module attributes {stable_mosaic.version = 11 : i64} {
  func.func @_kan_fused_kernel(%arg0: i32, %arg1: memref<16x8xf32, #tpu.memory_space<vmem>>, %arg2: memref<32x144xf32, #tpu.memory_space<vmem>>, %arg3: memref<32x288xf32, #tpu.memory_space<vmem>>, %arg4: memref<32x288xf32, #tpu.memory_space<vmem>>, %arg5: memref<32x288xf32, #tpu.memory_space<vmem>>, %arg6: memref<32x288xf32, #tpu.memory_space<vmem>>, %arg7: memref<2x288xf32, #tpu.memory_space<vmem>>, %arg8: memref<2x8xf32, #tpu.memory_space<vmem>>) attributes {dimension_semantics = [#tpu.dimension_semantics<parallel>], iteration_bounds = array<i64: 1>, scalar_prefetch = 0 : i64, scratch_operands = 0 : i64, tpu.core_type = #tpu.core_type<tc>, window_params = [{transform_indices = @transform_0, window_bounds = array<i64: 16, 8>}, {pipeline_mode = #tpu.pipeline_mode<synchronous>, transform_indices = @transform_1, window_bounds = array<i64: 32, 144>}, {pipeline_mode = #tpu.pipeline_mode<synchronous>, transform_indices = @transform_2, window_bounds = array<i64: 32, 288>}, {pipeline_mode = #tpu.pipeline_mode<synchronous>, transform_indices = @transform_3, window_bounds = array<i64: 32, 288>}, {pipeline_mode = #tpu.pipeline_mode<synchronous>, transform_indices = @transform_4, window_bounds = array<i64: 32, 288>}, {pipeline_mode = #tpu.pipeline_mode<synchronous>, transform_indices = @transform_5, window_bounds = array<i64: 32, 288>}, {pipeline_mode = #tpu.pipeline_mode<synchronous>, transform_indices = @transform_6, window_bounds = array<i64: 2, 288>}, {transform_indices = @transform_7, window_bounds = array<i64: 2, 8>}]} {
    %c0 = arith.constant 0 : index
    %c0_0 = arith.constant 0 : index
    %0 = vector.load %arg1[%c0, %c0_0] : memref<16x8xf32, #tpu.memory_space<vmem>>, vector<16x8xf32>
    %1 = arith.negf %0 : vector<16x8xf32>
    %2 = math.exp %1 : vector<16x8xf32>
    %cst = arith.constant 1.000000e+00 : f32
    %3 = vector.broadcast %cst : f32 to vector<16x8xf32>
    %4 = arith.addf %3, %2 : vector<16x8xf32>
    %5 = arith.divf %3, %4 : vector<16x8xf32>
    %6 = arith.mulf %0, %5 : vector<16x8xf32>
    %cst_1 = arith.constant -2.200000e+00 : f32
    %7 = vector.broadcast %cst_1 : f32 to vector<16x8xf32>
    %8 = arith.cmpf oge, %0, %7 : vector<16x8xf32>
    %9 = arith.extui %8 : vector<16x8xi1> to vector<16x8xi32>
    %10 = arith.sitofp %9 : vector<16x8xi32> to vector<16x8xf32>
    %cst_2 = arith.constant -1.800000e+00 : f32
    %11 = vector.broadcast %cst_2 : f32 to vector<16x8xf32>
    %12 = arith.cmpf oge, %0, %11 : vector<16x8xf32>
    %13 = arith.extui %12 : vector<16x8xi1> to vector<16x8xi32>
    %14 = arith.sitofp %13 : vector<16x8xi32> to vector<16x8xf32>
    %cst_3 = arith.constant -1.400000e+00 : f32
    %15 = vector.broadcast %cst_3 : f32 to vector<16x8xf32>
    %16 = arith.cmpf oge, %0, %15 : vector<16x8xf32>
    %17 = arith.extui %16 : vector<16x8xi1> to vector<16x8xi32>
    %18 = arith.sitofp %17 : vector<16x8xi32> to vector<16x8xf32>
    %cst_4 = arith.constant -1.000000e+00 : f32
    %19 = vector.broadcast %cst_4 : f32 to vector<16x8xf32>
    %20 = arith.cmpf oge, %0, %19 : vector<16x8xf32>
    %21 = arith.extui %20 : vector<16x8xi1> to vector<16x8xi32>
    %22 = arith.sitofp %21 : vector<16x8xi32> to vector<16x8xf32>
    %cst_5 = arith.constant -6.000000e-01 : f32
    %23 = vector.broadcast %cst_5 : f32 to vector<16x8xf32>
    %24 = arith.cmpf oge, %0, %23 : vector<16x8xf32>
    %25 = arith.extui %24 : vector<16x8xi1> to vector<16x8xi32>
    %26 = arith.sitofp %25 : vector<16x8xi32> to vector<16x8xf32>
    %cst_6 = arith.constant -2.000000e-01 : f32
    %27 = vector.broadcast %cst_6 : f32 to vector<16x8xf32>
    %28 = arith.cmpf oge, %0, %27 : vector<16x8xf32>
    %29 = arith.extui %28 : vector<16x8xi1> to vector<16x8xi32>
    %30 = arith.sitofp %29 : vector<16x8xi32> to vector<16x8xf32>
    %cst_7 = arith.constant 2.000000e-01 : f32
    %31 = vector.broadcast %cst_7 : f32 to vector<16x8xf32>
    %32 = arith.cmpf oge, %0, %31 : vector<16x8xf32>
    %33 = arith.extui %32 : vector<16x8xi1> to vector<16x8xi32>
    %34 = arith.sitofp %33 : vector<16x8xi32> to vector<16x8xf32>
    %cst_8 = arith.constant 6.000000e-01 : f32
    %35 = vector.broadcast %cst_8 : f32 to vector<16x8xf32>
    %36 = arith.cmpf oge, %0, %35 : vector<16x8xf32>
    %37 = arith.extui %36 : vector<16x8xi1> to vector<16x8xi32>
    %38 = arith.sitofp %37 : vector<16x8xi32> to vector<16x8xf32>
    %cst_9 = arith.constant 1.000000e+00 : f32
    %39 = vector.broadcast %cst_9 : f32 to vector<16x8xf32>
    %40 = arith.cmpf oge, %0, %39 : vector<16x8xf32>
    %41 = arith.extui %40 : vector<16x8xi1> to vector<16x8xi32>
    %42 = arith.sitofp %41 : vector<16x8xi32> to vector<16x8xf32>
    %cst_10 = arith.constant 1.400000e+00 : f32
    %43 = vector.broadcast %cst_10 : f32 to vector<16x8xf32>
    %44 = arith.cmpf oge, %0, %43 : vector<16x8xf32>
    %45 = arith.extui %44 : vector<16x8xi1> to vector<16x8xi32>
    %46 = arith.sitofp %45 : vector<16x8xi32> to vector<16x8xf32>
    %cst_11 = arith.constant 1.800000e+00 : f32
    %47 = vector.broadcast %cst_11 : f32 to vector<16x8xf32>
    %48 = arith.cmpf oge, %0, %47 : vector<16x8xf32>
    %49 = arith.extui %48 : vector<16x8xi1> to vector<16x8xi32>
    %50 = arith.sitofp %49 : vector<16x8xi32> to vector<16x8xf32>
    %cst_12 = arith.constant 2.200000e+00 : f32
    %51 = vector.broadcast %cst_12 : f32 to vector<16x8xf32>
    %52 = arith.cmpf oge, %0, %51 : vector<16x8xf32>
    %53 = arith.extui %52 : vector<16x8xi1> to vector<16x8xi32>
    %54 = arith.sitofp %53 : vector<16x8xi32> to vector<16x8xf32>
    %55 = arith.subf %10, %14 : vector<16x8xf32>
    %56 = arith.subf %14, %18 : vector<16x8xf32>
    %57 = arith.subf %18, %22 : vector<16x8xf32>
    %58 = arith.subf %22, %26 : vector<16x8xf32>
    %59 = arith.subf %26, %30 : vector<16x8xf32>
    %60 = arith.subf %30, %34 : vector<16x8xf32>
    %61 = arith.subf %34, %38 : vector<16x8xf32>
    %62 = arith.subf %38, %42 : vector<16x8xf32>
    %63 = arith.subf %42, %46 : vector<16x8xf32>
    %64 = arith.subf %46, %50 : vector<16x8xf32>
    %65 = arith.subf %50, %54 : vector<16x8xf32>
    %cst_13 = arith.constant -2.200000e+00 : f32
    %66 = vector.broadcast %cst_13 : f32 to vector<16x8xf32>
    %67 = arith.subf %0, %66 : vector<16x8xf32>
    %cst_14 = arith.constant -1.800000e+00 : f32
    %68 = vector.broadcast %cst_14 : f32 to vector<16x8xf32>
    %69 = arith.subf %0, %68 : vector<16x8xf32>
    %cst_15 = arith.constant -1.400000e+00 : f32
    %70 = vector.broadcast %cst_15 : f32 to vector<16x8xf32>
    %71 = arith.subf %0, %70 : vector<16x8xf32>
    %cst_16 = arith.constant -1.000000e+00 : f32
    %72 = vector.broadcast %cst_16 : f32 to vector<16x8xf32>
    %73 = arith.subf %0, %72 : vector<16x8xf32>
    %cst_17 = arith.constant -6.000000e-01 : f32
    %74 = vector.broadcast %cst_17 : f32 to vector<16x8xf32>
    %75 = arith.subf %0, %74 : vector<16x8xf32>
    %cst_18 = arith.constant -2.000000e-01 : f32
    %76 = vector.broadcast %cst_18 : f32 to vector<16x8xf32>
    %77 = arith.subf %0, %76 : vector<16x8xf32>
    %cst_19 = arith.constant 2.000000e-01 : f32
    %78 = vector.broadcast %cst_19 : f32 to vector<16x8xf32>
    %79 = arith.subf %0, %78 : vector<16x8xf32>
    %cst_20 = arith.constant 6.000000e-01 : f32
    %80 = vector.broadcast %cst_20 : f32 to vector<16x8xf32>
    %81 = arith.subf %0, %80 : vector<16x8xf32>
    %cst_21 = arith.constant 1.000000e+00 : f32
    %82 = vector.broadcast %cst_21 : f32 to vector<16x8xf32>
    %83 = arith.subf %0, %82 : vector<16x8xf32>
    %cst_22 = arith.constant 1.400000e+00 : f32
    %84 = vector.broadcast %cst_22 : f32 to vector<16x8xf32>
    %85 = arith.subf %0, %84 : vector<16x8xf32>
    %cst_23 = arith.constant 1.800000e+00 : f32
    %86 = vector.broadcast %cst_23 : f32 to vector<16x8xf32>
    %87 = arith.subf %0, %86 : vector<16x8xf32>
    %cst_24 = arith.constant 2.200000e+00 : f32
    %88 = vector.broadcast %cst_24 : f32 to vector<16x8xf32>
    %89 = arith.subf %0, %88 : vector<16x8xf32>
    %90 = arith.mulf %67, %55 : vector<16x8xf32>
    %91 = arith.mulf %71, %56 : vector<16x8xf32>
    %92 = arith.subf %90, %91 : vector<16x8xf32>
    %93 = arith.mulf %69, %56 : vector<16x8xf32>
    %94 = arith.mulf %73, %57 : vector<16x8xf32>
    %95 = arith.subf %93, %94 : vector<16x8xf32>
    %96 = arith.mulf %71, %57 : vector<16x8xf32>
    %97 = arith.mulf %75, %58 : vector<16x8xf32>
    %98 = arith.subf %96, %97 : vector<16x8xf32>
    %99 = arith.mulf %73, %58 : vector<16x8xf32>
    %100 = arith.mulf %77, %59 : vector<16x8xf32>
    %101 = arith.subf %99, %100 : vector<16x8xf32>
    %102 = arith.mulf %75, %59 : vector<16x8xf32>
    %103 = arith.mulf %79, %60 : vector<16x8xf32>
    %104 = arith.subf %102, %103 : vector<16x8xf32>
    %105 = arith.mulf %77, %60 : vector<16x8xf32>
    %106 = arith.mulf %81, %61 : vector<16x8xf32>
    %107 = arith.subf %105, %106 : vector<16x8xf32>
    %108 = arith.mulf %79, %61 : vector<16x8xf32>
    %109 = arith.mulf %83, %62 : vector<16x8xf32>
    %110 = arith.subf %108, %109 : vector<16x8xf32>
    %111 = arith.mulf %81, %62 : vector<16x8xf32>
    %112 = arith.mulf %85, %63 : vector<16x8xf32>
    %113 = arith.subf %111, %112 : vector<16x8xf32>
    %114 = arith.mulf %83, %63 : vector<16x8xf32>
    %115 = arith.mulf %87, %64 : vector<16x8xf32>
    %116 = arith.subf %114, %115 : vector<16x8xf32>
    %117 = arith.mulf %85, %64 : vector<16x8xf32>
    %118 = arith.mulf %89, %65 : vector<16x8xf32>
    %119 = arith.subf %117, %118 : vector<16x8xf32>
    %120 = arith.mulf %67, %92 : vector<16x8xf32>
    %121 = arith.mulf %73, %95 : vector<16x8xf32>
    %122 = arith.subf %120, %121 : vector<16x8xf32>
    %123 = arith.mulf %69, %95 : vector<16x8xf32>
    %124 = arith.mulf %75, %98 : vector<16x8xf32>
    %125 = arith.subf %123, %124 : vector<16x8xf32>
    %126 = arith.mulf %71, %98 : vector<16x8xf32>
    %127 = arith.mulf %77, %101 : vector<16x8xf32>
    %128 = arith.subf %126, %127 : vector<16x8xf32>
    %129 = arith.mulf %73, %101 : vector<16x8xf32>
    %130 = arith.mulf %79, %104 : vector<16x8xf32>
    %131 = arith.subf %129, %130 : vector<16x8xf32>
    %132 = arith.mulf %75, %104 : vector<16x8xf32>
    %133 = arith.mulf %81, %107 : vector<16x8xf32>
    %134 = arith.subf %132, %133 : vector<16x8xf32>
    %135 = arith.mulf %77, %107 : vector<16x8xf32>
    %136 = arith.mulf %83, %110 : vector<16x8xf32>
    %137 = arith.subf %135, %136 : vector<16x8xf32>
    %138 = arith.mulf %79, %110 : vector<16x8xf32>
    %139 = arith.mulf %85, %113 : vector<16x8xf32>
    %140 = arith.subf %138, %139 : vector<16x8xf32>
    %141 = arith.mulf %81, %113 : vector<16x8xf32>
    %142 = arith.mulf %87, %116 : vector<16x8xf32>
    %143 = arith.subf %141, %142 : vector<16x8xf32>
    %144 = arith.mulf %83, %116 : vector<16x8xf32>
    %145 = arith.mulf %89, %119 : vector<16x8xf32>
    %146 = arith.subf %144, %145 : vector<16x8xf32>
    %147 = arith.mulf %67, %122 : vector<16x8xf32>
    %148 = arith.mulf %75, %125 : vector<16x8xf32>
    %149 = arith.subf %147, %148 : vector<16x8xf32>
    %150 = arith.mulf %69, %125 : vector<16x8xf32>
    %151 = arith.mulf %77, %128 : vector<16x8xf32>
    %152 = arith.subf %150, %151 : vector<16x8xf32>
    %153 = arith.mulf %71, %128 : vector<16x8xf32>
    %154 = arith.mulf %79, %131 : vector<16x8xf32>
    %155 = arith.subf %153, %154 : vector<16x8xf32>
    %156 = arith.mulf %73, %131 : vector<16x8xf32>
    %157 = arith.mulf %81, %134 : vector<16x8xf32>
    %158 = arith.subf %156, %157 : vector<16x8xf32>
    %159 = arith.mulf %75, %134 : vector<16x8xf32>
    %160 = arith.mulf %83, %137 : vector<16x8xf32>
    %161 = arith.subf %159, %160 : vector<16x8xf32>
    %162 = arith.mulf %77, %137 : vector<16x8xf32>
    %163 = arith.mulf %85, %140 : vector<16x8xf32>
    %164 = arith.subf %162, %163 : vector<16x8xf32>
    %165 = arith.mulf %79, %140 : vector<16x8xf32>
    %166 = arith.mulf %87, %143 : vector<16x8xf32>
    %167 = arith.subf %165, %166 : vector<16x8xf32>
    %168 = arith.mulf %81, %143 : vector<16x8xf32>
    %169 = arith.mulf %89, %146 : vector<16x8xf32>
    %170 = arith.subf %168, %169 : vector<16x8xf32>
    %171 = tpu.concatenate %6, %149, %152, %155, %158, %161, %164, %167, %170 in 0 : vector<16x8xf32>, vector<16x8xf32>, vector<16x8xf32>, vector<16x8xf32>, vector<16x8xf32>, vector<16x8xf32>, vector<16x8xf32>, vector<16x8xf32>, vector<16x8xf32> -> vector<144x8xf32>
    %c0_25 = arith.constant 0 : index
    %c0_26 = arith.constant 0 : index
    %172 = vector.load %arg2[%c0_25, %c0_26] : memref<32x144xf32, #tpu.memory_space<vmem>>, vector<32x144xf32>
    %cst_27 = arith.constant dense<0.000000e+00> : vector<32x8xf32>
    %173 = tpu.matmul %172, %171, %cst_27 {dimension_numbers = #tpu.dot_dimension_numbers<[1], [0], [0], [1], [0, 0, 1, 1], [], []>} : vector<32x144xf32>, vector<144x8xf32>, vector<32x8xf32> -> vector<32x8xf32>
    %174 = arith.negf %173 : vector<32x8xf32>
    %175 = math.exp %174 : vector<32x8xf32>
    %cst_28 = arith.constant 1.000000e+00 : f32
    %176 = vector.broadcast %cst_28 : f32 to vector<32x8xf32>
    %177 = arith.addf %176, %175 : vector<32x8xf32>
    %178 = arith.divf %176, %177 : vector<32x8xf32>
    %179 = arith.mulf %173, %178 : vector<32x8xf32>
    %cst_29 = arith.constant -2.200000e+00 : f32
    %180 = vector.broadcast %cst_29 : f32 to vector<32x8xf32>
    %181 = arith.cmpf oge, %173, %180 : vector<32x8xf32>
    %182 = arith.extui %181 : vector<32x8xi1> to vector<32x8xi32>
    %183 = arith.sitofp %182 : vector<32x8xi32> to vector<32x8xf32>
    %cst_30 = arith.constant -1.800000e+00 : f32
    %184 = vector.broadcast %cst_30 : f32 to vector<32x8xf32>
    %185 = arith.cmpf oge, %173, %184 : vector<32x8xf32>
    %186 = arith.extui %185 : vector<32x8xi1> to vector<32x8xi32>
    %187 = arith.sitofp %186 : vector<32x8xi32> to vector<32x8xf32>
    %cst_31 = arith.constant -1.400000e+00 : f32
    %188 = vector.broadcast %cst_31 : f32 to vector<32x8xf32>
    %189 = arith.cmpf oge, %173, %188 : vector<32x8xf32>
    %190 = arith.extui %189 : vector<32x8xi1> to vector<32x8xi32>
    %191 = arith.sitofp %190 : vector<32x8xi32> to vector<32x8xf32>
    %cst_32 = arith.constant -1.000000e+00 : f32
    %192 = vector.broadcast %cst_32 : f32 to vector<32x8xf32>
    %193 = arith.cmpf oge, %173, %192 : vector<32x8xf32>
    %194 = arith.extui %193 : vector<32x8xi1> to vector<32x8xi32>
    %195 = arith.sitofp %194 : vector<32x8xi32> to vector<32x8xf32>
    %cst_33 = arith.constant -6.000000e-01 : f32
    %196 = vector.broadcast %cst_33 : f32 to vector<32x8xf32>
    %197 = arith.cmpf oge, %173, %196 : vector<32x8xf32>
    %198 = arith.extui %197 : vector<32x8xi1> to vector<32x8xi32>
    %199 = arith.sitofp %198 : vector<32x8xi32> to vector<32x8xf32>
    %cst_34 = arith.constant -2.000000e-01 : f32
    %200 = vector.broadcast %cst_34 : f32 to vector<32x8xf32>
    %201 = arith.cmpf oge, %173, %200 : vector<32x8xf32>
    %202 = arith.extui %201 : vector<32x8xi1> to vector<32x8xi32>
    %203 = arith.sitofp %202 : vector<32x8xi32> to vector<32x8xf32>
    %cst_35 = arith.constant 2.000000e-01 : f32
    %204 = vector.broadcast %cst_35 : f32 to vector<32x8xf32>
    %205 = arith.cmpf oge, %173, %204 : vector<32x8xf32>
    %206 = arith.extui %205 : vector<32x8xi1> to vector<32x8xi32>
    %207 = arith.sitofp %206 : vector<32x8xi32> to vector<32x8xf32>
    %cst_36 = arith.constant 6.000000e-01 : f32
    %208 = vector.broadcast %cst_36 : f32 to vector<32x8xf32>
    %209 = arith.cmpf oge, %173, %208 : vector<32x8xf32>
    %210 = arith.extui %209 : vector<32x8xi1> to vector<32x8xi32>
    %211 = arith.sitofp %210 : vector<32x8xi32> to vector<32x8xf32>
    %cst_37 = arith.constant 1.000000e+00 : f32
    %212 = vector.broadcast %cst_37 : f32 to vector<32x8xf32>
    %213 = arith.cmpf oge, %173, %212 : vector<32x8xf32>
    %214 = arith.extui %213 : vector<32x8xi1> to vector<32x8xi32>
    %215 = arith.sitofp %214 : vector<32x8xi32> to vector<32x8xf32>
    %cst_38 = arith.constant 1.400000e+00 : f32
    %216 = vector.broadcast %cst_38 : f32 to vector<32x8xf32>
    %217 = arith.cmpf oge, %173, %216 : vector<32x8xf32>
    %218 = arith.extui %217 : vector<32x8xi1> to vector<32x8xi32>
    %219 = arith.sitofp %218 : vector<32x8xi32> to vector<32x8xf32>
    %cst_39 = arith.constant 1.800000e+00 : f32
    %220 = vector.broadcast %cst_39 : f32 to vector<32x8xf32>
    %221 = arith.cmpf oge, %173, %220 : vector<32x8xf32>
    %222 = arith.extui %221 : vector<32x8xi1> to vector<32x8xi32>
    %223 = arith.sitofp %222 : vector<32x8xi32> to vector<32x8xf32>
    %cst_40 = arith.constant 2.200000e+00 : f32
    %224 = vector.broadcast %cst_40 : f32 to vector<32x8xf32>
    %225 = arith.cmpf oge, %173, %224 : vector<32x8xf32>
    %226 = arith.extui %225 : vector<32x8xi1> to vector<32x8xi32>
    %227 = arith.sitofp %226 : vector<32x8xi32> to vector<32x8xf32>
    %228 = arith.subf %183, %187 : vector<32x8xf32>
    %229 = arith.subf %187, %191 : vector<32x8xf32>
    %230 = arith.subf %191, %195 : vector<32x8xf32>
    %231 = arith.subf %195, %199 : vector<32x8xf32>
    %232 = arith.subf %199, %203 : vector<32x8xf32>
    %233 = arith.subf %203, %207 : vector<32x8xf32>
    %234 = arith.subf %207, %211 : vector<32x8xf32>
    %235 = arith.subf %211, %215 : vector<32x8xf32>
    %236 = arith.subf %215, %219 : vector<32x8xf32>
    %237 = arith.subf %219, %223 : vector<32x8xf32>
    %238 = arith.subf %223, %227 : vector<32x8xf32>
    %cst_41 = arith.constant -2.200000e+00 : f32
    %239 = vector.broadcast %cst_41 : f32 to vector<32x8xf32>
    %240 = arith.subf %173, %239 : vector<32x8xf32>
    %cst_42 = arith.constant -1.800000e+00 : f32
    %241 = vector.broadcast %cst_42 : f32 to vector<32x8xf32>
    %242 = arith.subf %173, %241 : vector<32x8xf32>
    %cst_43 = arith.constant -1.400000e+00 : f32
    %243 = vector.broadcast %cst_43 : f32 to vector<32x8xf32>
    %244 = arith.subf %173, %243 : vector<32x8xf32>
    %cst_44 = arith.constant -1.000000e+00 : f32
    %245 = vector.broadcast %cst_44 : f32 to vector<32x8xf32>
    %246 = arith.subf %173, %245 : vector<32x8xf32>
    %cst_45 = arith.constant -6.000000e-01 : f32
    %247 = vector.broadcast %cst_45 : f32 to vector<32x8xf32>
    %248 = arith.subf %173, %247 : vector<32x8xf32>
    %cst_46 = arith.constant -2.000000e-01 : f32
    %249 = vector.broadcast %cst_46 : f32 to vector<32x8xf32>
    %250 = arith.subf %173, %249 : vector<32x8xf32>
    %cst_47 = arith.constant 2.000000e-01 : f32
    %251 = vector.broadcast %cst_47 : f32 to vector<32x8xf32>
    %252 = arith.subf %173, %251 : vector<32x8xf32>
    %cst_48 = arith.constant 6.000000e-01 : f32
    %253 = vector.broadcast %cst_48 : f32 to vector<32x8xf32>
    %254 = arith.subf %173, %253 : vector<32x8xf32>
    %cst_49 = arith.constant 1.000000e+00 : f32
    %255 = vector.broadcast %cst_49 : f32 to vector<32x8xf32>
    %256 = arith.subf %173, %255 : vector<32x8xf32>
    %cst_50 = arith.constant 1.400000e+00 : f32
    %257 = vector.broadcast %cst_50 : f32 to vector<32x8xf32>
    %258 = arith.subf %173, %257 : vector<32x8xf32>
    %cst_51 = arith.constant 1.800000e+00 : f32
    %259 = vector.broadcast %cst_51 : f32 to vector<32x8xf32>
    %260 = arith.subf %173, %259 : vector<32x8xf32>
    %cst_52 = arith.constant 2.200000e+00 : f32
    %261 = vector.broadcast %cst_52 : f32 to vector<32x8xf32>
    %262 = arith.subf %173, %261 : vector<32x8xf32>
    %263 = arith.mulf %240, %228 : vector<32x8xf32>
    %264 = arith.mulf %244, %229 : vector<32x8xf32>
    %265 = arith.subf %263, %264 : vector<32x8xf32>
    %266 = arith.mulf %242, %229 : vector<32x8xf32>
    %267 = arith.mulf %246, %230 : vector<32x8xf32>
    %268 = arith.subf %266, %267 : vector<32x8xf32>
    %269 = arith.mulf %244, %230 : vector<32x8xf32>
    %270 = arith.mulf %248, %231 : vector<32x8xf32>
    %271 = arith.subf %269, %270 : vector<32x8xf32>
    %272 = arith.mulf %246, %231 : vector<32x8xf32>
    %273 = arith.mulf %250, %232 : vector<32x8xf32>
    %274 = arith.subf %272, %273 : vector<32x8xf32>
    %275 = arith.mulf %248, %232 : vector<32x8xf32>
    %276 = arith.mulf %252, %233 : vector<32x8xf32>
    %277 = arith.subf %275, %276 : vector<32x8xf32>
    %278 = arith.mulf %250, %233 : vector<32x8xf32>
    %279 = arith.mulf %254, %234 : vector<32x8xf32>
    %280 = arith.subf %278, %279 : vector<32x8xf32>
    %281 = arith.mulf %252, %234 : vector<32x8xf32>
    %282 = arith.mulf %256, %235 : vector<32x8xf32>
    %283 = arith.subf %281, %282 : vector<32x8xf32>
    %284 = arith.mulf %254, %235 : vector<32x8xf32>
    %285 = arith.mulf %258, %236 : vector<32x8xf32>
    %286 = arith.subf %284, %285 : vector<32x8xf32>
    %287 = arith.mulf %256, %236 : vector<32x8xf32>
    %288 = arith.mulf %260, %237 : vector<32x8xf32>
    %289 = arith.subf %287, %288 : vector<32x8xf32>
    %290 = arith.mulf %258, %237 : vector<32x8xf32>
    %291 = arith.mulf %262, %238 : vector<32x8xf32>
    %292 = arith.subf %290, %291 : vector<32x8xf32>
    %293 = arith.mulf %240, %265 : vector<32x8xf32>
    %294 = arith.mulf %246, %268 : vector<32x8xf32>
    %295 = arith.subf %293, %294 : vector<32x8xf32>
    %296 = arith.mulf %242, %268 : vector<32x8xf32>
    %297 = arith.mulf %248, %271 : vector<32x8xf32>
    %298 = arith.subf %296, %297 : vector<32x8xf32>
    %299 = arith.mulf %244, %271 : vector<32x8xf32>
    %300 = arith.mulf %250, %274 : vector<32x8xf32>
    %301 = arith.subf %299, %300 : vector<32x8xf32>
    %302 = arith.mulf %246, %274 : vector<32x8xf32>
    %303 = arith.mulf %252, %277 : vector<32x8xf32>
    %304 = arith.subf %302, %303 : vector<32x8xf32>
    %305 = arith.mulf %248, %277 : vector<32x8xf32>
    %306 = arith.mulf %254, %280 : vector<32x8xf32>
    %307 = arith.subf %305, %306 : vector<32x8xf32>
    %308 = arith.mulf %250, %280 : vector<32x8xf32>
    %309 = arith.mulf %256, %283 : vector<32x8xf32>
    %310 = arith.subf %308, %309 : vector<32x8xf32>
    %311 = arith.mulf %252, %283 : vector<32x8xf32>
    %312 = arith.mulf %258, %286 : vector<32x8xf32>
    %313 = arith.subf %311, %312 : vector<32x8xf32>
    %314 = arith.mulf %254, %286 : vector<32x8xf32>
    %315 = arith.mulf %260, %289 : vector<32x8xf32>
    %316 = arith.subf %314, %315 : vector<32x8xf32>
    %317 = arith.mulf %256, %289 : vector<32x8xf32>
    %318 = arith.mulf %262, %292 : vector<32x8xf32>
    %319 = arith.subf %317, %318 : vector<32x8xf32>
    %320 = arith.mulf %240, %295 : vector<32x8xf32>
    %321 = arith.mulf %248, %298 : vector<32x8xf32>
    %322 = arith.subf %320, %321 : vector<32x8xf32>
    %323 = arith.mulf %242, %298 : vector<32x8xf32>
    %324 = arith.mulf %250, %301 : vector<32x8xf32>
    %325 = arith.subf %323, %324 : vector<32x8xf32>
    %326 = arith.mulf %244, %301 : vector<32x8xf32>
    %327 = arith.mulf %252, %304 : vector<32x8xf32>
    %328 = arith.subf %326, %327 : vector<32x8xf32>
    %329 = arith.mulf %246, %304 : vector<32x8xf32>
    %330 = arith.mulf %254, %307 : vector<32x8xf32>
    %331 = arith.subf %329, %330 : vector<32x8xf32>
    %332 = arith.mulf %248, %307 : vector<32x8xf32>
    %333 = arith.mulf %256, %310 : vector<32x8xf32>
    %334 = arith.subf %332, %333 : vector<32x8xf32>
    %335 = arith.mulf %250, %310 : vector<32x8xf32>
    %336 = arith.mulf %258, %313 : vector<32x8xf32>
    %337 = arith.subf %335, %336 : vector<32x8xf32>
    %338 = arith.mulf %252, %313 : vector<32x8xf32>
    %339 = arith.mulf %260, %316 : vector<32x8xf32>
    %340 = arith.subf %338, %339 : vector<32x8xf32>
    %341 = arith.mulf %254, %316 : vector<32x8xf32>
    %342 = arith.mulf %262, %319 : vector<32x8xf32>
    %343 = arith.subf %341, %342 : vector<32x8xf32>
    %344 = tpu.concatenate %179, %322, %325, %328, %331, %334, %337, %340, %343 in 0 : vector<32x8xf32>, vector<32x8xf32>, vector<32x8xf32>, vector<32x8xf32>, vector<32x8xf32>, vector<32x8xf32>, vector<32x8xf32>, vector<32x8xf32>, vector<32x8xf32> -> vector<288x8xf32>
    %c0_53 = arith.constant 0 : index
    %c0_54 = arith.constant 0 : index
    %345 = vector.load %arg3[%c0_53, %c0_54] : memref<32x288xf32, #tpu.memory_space<vmem>>, vector<32x288xf32>
    %cst_55 = arith.constant dense<0.000000e+00> : vector<32x8xf32>
    %346 = tpu.matmul %345, %344, %cst_55 {dimension_numbers = #tpu.dot_dimension_numbers<[1], [0], [0], [1], [0, 0, 1, 1], [], []>} : vector<32x288xf32>, vector<288x8xf32>, vector<32x8xf32> -> vector<32x8xf32>
    %347 = arith.negf %346 : vector<32x8xf32>
    %348 = math.exp %347 : vector<32x8xf32>
    %cst_56 = arith.constant 1.000000e+00 : f32
    %349 = vector.broadcast %cst_56 : f32 to vector<32x8xf32>
    %350 = arith.addf %349, %348 : vector<32x8xf32>
    %351 = arith.divf %349, %350 : vector<32x8xf32>
    %352 = arith.mulf %346, %351 : vector<32x8xf32>
    %cst_57 = arith.constant -2.200000e+00 : f32
    %353 = vector.broadcast %cst_57 : f32 to vector<32x8xf32>
    %354 = arith.cmpf oge, %346, %353 : vector<32x8xf32>
    %355 = arith.extui %354 : vector<32x8xi1> to vector<32x8xi32>
    %356 = arith.sitofp %355 : vector<32x8xi32> to vector<32x8xf32>
    %cst_58 = arith.constant -1.800000e+00 : f32
    %357 = vector.broadcast %cst_58 : f32 to vector<32x8xf32>
    %358 = arith.cmpf oge, %346, %357 : vector<32x8xf32>
    %359 = arith.extui %358 : vector<32x8xi1> to vector<32x8xi32>
    %360 = arith.sitofp %359 : vector<32x8xi32> to vector<32x8xf32>
    %cst_59 = arith.constant -1.400000e+00 : f32
    %361 = vector.broadcast %cst_59 : f32 to vector<32x8xf32>
    %362 = arith.cmpf oge, %346, %361 : vector<32x8xf32>
    %363 = arith.extui %362 : vector<32x8xi1> to vector<32x8xi32>
    %364 = arith.sitofp %363 : vector<32x8xi32> to vector<32x8xf32>
    %cst_60 = arith.constant -1.000000e+00 : f32
    %365 = vector.broadcast %cst_60 : f32 to vector<32x8xf32>
    %366 = arith.cmpf oge, %346, %365 : vector<32x8xf32>
    %367 = arith.extui %366 : vector<32x8xi1> to vector<32x8xi32>
    %368 = arith.sitofp %367 : vector<32x8xi32> to vector<32x8xf32>
    %cst_61 = arith.constant -6.000000e-01 : f32
    %369 = vector.broadcast %cst_61 : f32 to vector<32x8xf32>
    %370 = arith.cmpf oge, %346, %369 : vector<32x8xf32>
    %371 = arith.extui %370 : vector<32x8xi1> to vector<32x8xi32>
    %372 = arith.sitofp %371 : vector<32x8xi32> to vector<32x8xf32>
    %cst_62 = arith.constant -2.000000e-01 : f32
    %373 = vector.broadcast %cst_62 : f32 to vector<32x8xf32>
    %374 = arith.cmpf oge, %346, %373 : vector<32x8xf32>
    %375 = arith.extui %374 : vector<32x8xi1> to vector<32x8xi32>
    %376 = arith.sitofp %375 : vector<32x8xi32> to vector<32x8xf32>
    %cst_63 = arith.constant 2.000000e-01 : f32
    %377 = vector.broadcast %cst_63 : f32 to vector<32x8xf32>
    %378 = arith.cmpf oge, %346, %377 : vector<32x8xf32>
    %379 = arith.extui %378 : vector<32x8xi1> to vector<32x8xi32>
    %380 = arith.sitofp %379 : vector<32x8xi32> to vector<32x8xf32>
    %cst_64 = arith.constant 6.000000e-01 : f32
    %381 = vector.broadcast %cst_64 : f32 to vector<32x8xf32>
    %382 = arith.cmpf oge, %346, %381 : vector<32x8xf32>
    %383 = arith.extui %382 : vector<32x8xi1> to vector<32x8xi32>
    %384 = arith.sitofp %383 : vector<32x8xi32> to vector<32x8xf32>
    %cst_65 = arith.constant 1.000000e+00 : f32
    %385 = vector.broadcast %cst_65 : f32 to vector<32x8xf32>
    %386 = arith.cmpf oge, %346, %385 : vector<32x8xf32>
    %387 = arith.extui %386 : vector<32x8xi1> to vector<32x8xi32>
    %388 = arith.sitofp %387 : vector<32x8xi32> to vector<32x8xf32>
    %cst_66 = arith.constant 1.400000e+00 : f32
    %389 = vector.broadcast %cst_66 : f32 to vector<32x8xf32>
    %390 = arith.cmpf oge, %346, %389 : vector<32x8xf32>
    %391 = arith.extui %390 : vector<32x8xi1> to vector<32x8xi32>
    %392 = arith.sitofp %391 : vector<32x8xi32> to vector<32x8xf32>
    %cst_67 = arith.constant 1.800000e+00 : f32
    %393 = vector.broadcast %cst_67 : f32 to vector<32x8xf32>
    %394 = arith.cmpf oge, %346, %393 : vector<32x8xf32>
    %395 = arith.extui %394 : vector<32x8xi1> to vector<32x8xi32>
    %396 = arith.sitofp %395 : vector<32x8xi32> to vector<32x8xf32>
    %cst_68 = arith.constant 2.200000e+00 : f32
    %397 = vector.broadcast %cst_68 : f32 to vector<32x8xf32>
    %398 = arith.cmpf oge, %346, %397 : vector<32x8xf32>
    %399 = arith.extui %398 : vector<32x8xi1> to vector<32x8xi32>
    %400 = arith.sitofp %399 : vector<32x8xi32> to vector<32x8xf32>
    %401 = arith.subf %356, %360 : vector<32x8xf32>
    %402 = arith.subf %360, %364 : vector<32x8xf32>
    %403 = arith.subf %364, %368 : vector<32x8xf32>
    %404 = arith.subf %368, %372 : vector<32x8xf32>
    %405 = arith.subf %372, %376 : vector<32x8xf32>
    %406 = arith.subf %376, %380 : vector<32x8xf32>
    %407 = arith.subf %380, %384 : vector<32x8xf32>
    %408 = arith.subf %384, %388 : vector<32x8xf32>
    %409 = arith.subf %388, %392 : vector<32x8xf32>
    %410 = arith.subf %392, %396 : vector<32x8xf32>
    %411 = arith.subf %396, %400 : vector<32x8xf32>
    %cst_69 = arith.constant -2.200000e+00 : f32
    %412 = vector.broadcast %cst_69 : f32 to vector<32x8xf32>
    %413 = arith.subf %346, %412 : vector<32x8xf32>
    %cst_70 = arith.constant -1.800000e+00 : f32
    %414 = vector.broadcast %cst_70 : f32 to vector<32x8xf32>
    %415 = arith.subf %346, %414 : vector<32x8xf32>
    %cst_71 = arith.constant -1.400000e+00 : f32
    %416 = vector.broadcast %cst_71 : f32 to vector<32x8xf32>
    %417 = arith.subf %346, %416 : vector<32x8xf32>
    %cst_72 = arith.constant -1.000000e+00 : f32
    %418 = vector.broadcast %cst_72 : f32 to vector<32x8xf32>
    %419 = arith.subf %346, %418 : vector<32x8xf32>
    %cst_73 = arith.constant -6.000000e-01 : f32
    %420 = vector.broadcast %cst_73 : f32 to vector<32x8xf32>
    %421 = arith.subf %346, %420 : vector<32x8xf32>
    %cst_74 = arith.constant -2.000000e-01 : f32
    %422 = vector.broadcast %cst_74 : f32 to vector<32x8xf32>
    %423 = arith.subf %346, %422 : vector<32x8xf32>
    %cst_75 = arith.constant 2.000000e-01 : f32
    %424 = vector.broadcast %cst_75 : f32 to vector<32x8xf32>
    %425 = arith.subf %346, %424 : vector<32x8xf32>
    %cst_76 = arith.constant 6.000000e-01 : f32
    %426 = vector.broadcast %cst_76 : f32 to vector<32x8xf32>
    %427 = arith.subf %346, %426 : vector<32x8xf32>
    %cst_77 = arith.constant 1.000000e+00 : f32
    %428 = vector.broadcast %cst_77 : f32 to vector<32x8xf32>
    %429 = arith.subf %346, %428 : vector<32x8xf32>
    %cst_78 = arith.constant 1.400000e+00 : f32
    %430 = vector.broadcast %cst_78 : f32 to vector<32x8xf32>
    %431 = arith.subf %346, %430 : vector<32x8xf32>
    %cst_79 = arith.constant 1.800000e+00 : f32
    %432 = vector.broadcast %cst_79 : f32 to vector<32x8xf32>
    %433 = arith.subf %346, %432 : vector<32x8xf32>
    %cst_80 = arith.constant 2.200000e+00 : f32
    %434 = vector.broadcast %cst_80 : f32 to vector<32x8xf32>
    %435 = arith.subf %346, %434 : vector<32x8xf32>
    %436 = arith.mulf %413, %401 : vector<32x8xf32>
    %437 = arith.mulf %417, %402 : vector<32x8xf32>
    %438 = arith.subf %436, %437 : vector<32x8xf32>
    %439 = arith.mulf %415, %402 : vector<32x8xf32>
    %440 = arith.mulf %419, %403 : vector<32x8xf32>
    %441 = arith.subf %439, %440 : vector<32x8xf32>
    %442 = arith.mulf %417, %403 : vector<32x8xf32>
    %443 = arith.mulf %421, %404 : vector<32x8xf32>
    %444 = arith.subf %442, %443 : vector<32x8xf32>
    %445 = arith.mulf %419, %404 : vector<32x8xf32>
    %446 = arith.mulf %423, %405 : vector<32x8xf32>
    %447 = arith.subf %445, %446 : vector<32x8xf32>
    %448 = arith.mulf %421, %405 : vector<32x8xf32>
    %449 = arith.mulf %425, %406 : vector<32x8xf32>
    %450 = arith.subf %448, %449 : vector<32x8xf32>
    %451 = arith.mulf %423, %406 : vector<32x8xf32>
    %452 = arith.mulf %427, %407 : vector<32x8xf32>
    %453 = arith.subf %451, %452 : vector<32x8xf32>
    %454 = arith.mulf %425, %407 : vector<32x8xf32>
    %455 = arith.mulf %429, %408 : vector<32x8xf32>
    %456 = arith.subf %454, %455 : vector<32x8xf32>
    %457 = arith.mulf %427, %408 : vector<32x8xf32>
    %458 = arith.mulf %431, %409 : vector<32x8xf32>
    %459 = arith.subf %457, %458 : vector<32x8xf32>
    %460 = arith.mulf %429, %409 : vector<32x8xf32>
    %461 = arith.mulf %433, %410 : vector<32x8xf32>
    %462 = arith.subf %460, %461 : vector<32x8xf32>
    %463 = arith.mulf %431, %410 : vector<32x8xf32>
    %464 = arith.mulf %435, %411 : vector<32x8xf32>
    %465 = arith.subf %463, %464 : vector<32x8xf32>
    %466 = arith.mulf %413, %438 : vector<32x8xf32>
    %467 = arith.mulf %419, %441 : vector<32x8xf32>
    %468 = arith.subf %466, %467 : vector<32x8xf32>
    %469 = arith.mulf %415, %441 : vector<32x8xf32>
    %470 = arith.mulf %421, %444 : vector<32x8xf32>
    %471 = arith.subf %469, %470 : vector<32x8xf32>
    %472 = arith.mulf %417, %444 : vector<32x8xf32>
    %473 = arith.mulf %423, %447 : vector<32x8xf32>
    %474 = arith.subf %472, %473 : vector<32x8xf32>
    %475 = arith.mulf %419, %447 : vector<32x8xf32>
    %476 = arith.mulf %425, %450 : vector<32x8xf32>
    %477 = arith.subf %475, %476 : vector<32x8xf32>
    %478 = arith.mulf %421, %450 : vector<32x8xf32>
    %479 = arith.mulf %427, %453 : vector<32x8xf32>
    %480 = arith.subf %478, %479 : vector<32x8xf32>
    %481 = arith.mulf %423, %453 : vector<32x8xf32>
    %482 = arith.mulf %429, %456 : vector<32x8xf32>
    %483 = arith.subf %481, %482 : vector<32x8xf32>
    %484 = arith.mulf %425, %456 : vector<32x8xf32>
    %485 = arith.mulf %431, %459 : vector<32x8xf32>
    %486 = arith.subf %484, %485 : vector<32x8xf32>
    %487 = arith.mulf %427, %459 : vector<32x8xf32>
    %488 = arith.mulf %433, %462 : vector<32x8xf32>
    %489 = arith.subf %487, %488 : vector<32x8xf32>
    %490 = arith.mulf %429, %462 : vector<32x8xf32>
    %491 = arith.mulf %435, %465 : vector<32x8xf32>
    %492 = arith.subf %490, %491 : vector<32x8xf32>
    %493 = arith.mulf %413, %468 : vector<32x8xf32>
    %494 = arith.mulf %421, %471 : vector<32x8xf32>
    %495 = arith.subf %493, %494 : vector<32x8xf32>
    %496 = arith.mulf %415, %471 : vector<32x8xf32>
    %497 = arith.mulf %423, %474 : vector<32x8xf32>
    %498 = arith.subf %496, %497 : vector<32x8xf32>
    %499 = arith.mulf %417, %474 : vector<32x8xf32>
    %500 = arith.mulf %425, %477 : vector<32x8xf32>
    %501 = arith.subf %499, %500 : vector<32x8xf32>
    %502 = arith.mulf %419, %477 : vector<32x8xf32>
    %503 = arith.mulf %427, %480 : vector<32x8xf32>
    %504 = arith.subf %502, %503 : vector<32x8xf32>
    %505 = arith.mulf %421, %480 : vector<32x8xf32>
    %506 = arith.mulf %429, %483 : vector<32x8xf32>
    %507 = arith.subf %505, %506 : vector<32x8xf32>
    %508 = arith.mulf %423, %483 : vector<32x8xf32>
    %509 = arith.mulf %431, %486 : vector<32x8xf32>
    %510 = arith.subf %508, %509 : vector<32x8xf32>
    %511 = arith.mulf %425, %486 : vector<32x8xf32>
    %512 = arith.mulf %433, %489 : vector<32x8xf32>
    %513 = arith.subf %511, %512 : vector<32x8xf32>
    %514 = arith.mulf %427, %489 : vector<32x8xf32>
    %515 = arith.mulf %435, %492 : vector<32x8xf32>
    %516 = arith.subf %514, %515 : vector<32x8xf32>
    %517 = tpu.concatenate %352, %495, %498, %501, %504, %507, %510, %513, %516 in 0 : vector<32x8xf32>, vector<32x8xf32>, vector<32x8xf32>, vector<32x8xf32>, vector<32x8xf32>, vector<32x8xf32>, vector<32x8xf32>, vector<32x8xf32>, vector<32x8xf32> -> vector<288x8xf32>
    %c0_81 = arith.constant 0 : index
    %c0_82 = arith.constant 0 : index
    %518 = vector.load %arg4[%c0_81, %c0_82] : memref<32x288xf32, #tpu.memory_space<vmem>>, vector<32x288xf32>
    %cst_83 = arith.constant dense<0.000000e+00> : vector<32x8xf32>
    %519 = tpu.matmul %518, %517, %cst_83 {dimension_numbers = #tpu.dot_dimension_numbers<[1], [0], [0], [1], [0, 0, 1, 1], [], []>} : vector<32x288xf32>, vector<288x8xf32>, vector<32x8xf32> -> vector<32x8xf32>
    %520 = arith.negf %519 : vector<32x8xf32>
    %521 = math.exp %520 : vector<32x8xf32>
    %cst_84 = arith.constant 1.000000e+00 : f32
    %522 = vector.broadcast %cst_84 : f32 to vector<32x8xf32>
    %523 = arith.addf %522, %521 : vector<32x8xf32>
    %524 = arith.divf %522, %523 : vector<32x8xf32>
    %525 = arith.mulf %519, %524 : vector<32x8xf32>
    %cst_85 = arith.constant -2.200000e+00 : f32
    %526 = vector.broadcast %cst_85 : f32 to vector<32x8xf32>
    %527 = arith.cmpf oge, %519, %526 : vector<32x8xf32>
    %528 = arith.extui %527 : vector<32x8xi1> to vector<32x8xi32>
    %529 = arith.sitofp %528 : vector<32x8xi32> to vector<32x8xf32>
    %cst_86 = arith.constant -1.800000e+00 : f32
    %530 = vector.broadcast %cst_86 : f32 to vector<32x8xf32>
    %531 = arith.cmpf oge, %519, %530 : vector<32x8xf32>
    %532 = arith.extui %531 : vector<32x8xi1> to vector<32x8xi32>
    %533 = arith.sitofp %532 : vector<32x8xi32> to vector<32x8xf32>
    %cst_87 = arith.constant -1.400000e+00 : f32
    %534 = vector.broadcast %cst_87 : f32 to vector<32x8xf32>
    %535 = arith.cmpf oge, %519, %534 : vector<32x8xf32>
    %536 = arith.extui %535 : vector<32x8xi1> to vector<32x8xi32>
    %537 = arith.sitofp %536 : vector<32x8xi32> to vector<32x8xf32>
    %cst_88 = arith.constant -1.000000e+00 : f32
    %538 = vector.broadcast %cst_88 : f32 to vector<32x8xf32>
    %539 = arith.cmpf oge, %519, %538 : vector<32x8xf32>
    %540 = arith.extui %539 : vector<32x8xi1> to vector<32x8xi32>
    %541 = arith.sitofp %540 : vector<32x8xi32> to vector<32x8xf32>
    %cst_89 = arith.constant -6.000000e-01 : f32
    %542 = vector.broadcast %cst_89 : f32 to vector<32x8xf32>
    %543 = arith.cmpf oge, %519, %542 : vector<32x8xf32>
    %544 = arith.extui %543 : vector<32x8xi1> to vector<32x8xi32>
    %545 = arith.sitofp %544 : vector<32x8xi32> to vector<32x8xf32>
    %cst_90 = arith.constant -2.000000e-01 : f32
    %546 = vector.broadcast %cst_90 : f32 to vector<32x8xf32>
    %547 = arith.cmpf oge, %519, %546 : vector<32x8xf32>
    %548 = arith.extui %547 : vector<32x8xi1> to vector<32x8xi32>
    %549 = arith.sitofp %548 : vector<32x8xi32> to vector<32x8xf32>
    %cst_91 = arith.constant 2.000000e-01 : f32
    %550 = vector.broadcast %cst_91 : f32 to vector<32x8xf32>
    %551 = arith.cmpf oge, %519, %550 : vector<32x8xf32>
    %552 = arith.extui %551 : vector<32x8xi1> to vector<32x8xi32>
    %553 = arith.sitofp %552 : vector<32x8xi32> to vector<32x8xf32>
    %cst_92 = arith.constant 6.000000e-01 : f32
    %554 = vector.broadcast %cst_92 : f32 to vector<32x8xf32>
    %555 = arith.cmpf oge, %519, %554 : vector<32x8xf32>
    %556 = arith.extui %555 : vector<32x8xi1> to vector<32x8xi32>
    %557 = arith.sitofp %556 : vector<32x8xi32> to vector<32x8xf32>
    %cst_93 = arith.constant 1.000000e+00 : f32
    %558 = vector.broadcast %cst_93 : f32 to vector<32x8xf32>
    %559 = arith.cmpf oge, %519, %558 : vector<32x8xf32>
    %560 = arith.extui %559 : vector<32x8xi1> to vector<32x8xi32>
    %561 = arith.sitofp %560 : vector<32x8xi32> to vector<32x8xf32>
    %cst_94 = arith.constant 1.400000e+00 : f32
    %562 = vector.broadcast %cst_94 : f32 to vector<32x8xf32>
    %563 = arith.cmpf oge, %519, %562 : vector<32x8xf32>
    %564 = arith.extui %563 : vector<32x8xi1> to vector<32x8xi32>
    %565 = arith.sitofp %564 : vector<32x8xi32> to vector<32x8xf32>
    %cst_95 = arith.constant 1.800000e+00 : f32
    %566 = vector.broadcast %cst_95 : f32 to vector<32x8xf32>
    %567 = arith.cmpf oge, %519, %566 : vector<32x8xf32>
    %568 = arith.extui %567 : vector<32x8xi1> to vector<32x8xi32>
    %569 = arith.sitofp %568 : vector<32x8xi32> to vector<32x8xf32>
    %cst_96 = arith.constant 2.200000e+00 : f32
    %570 = vector.broadcast %cst_96 : f32 to vector<32x8xf32>
    %571 = arith.cmpf oge, %519, %570 : vector<32x8xf32>
    %572 = arith.extui %571 : vector<32x8xi1> to vector<32x8xi32>
    %573 = arith.sitofp %572 : vector<32x8xi32> to vector<32x8xf32>
    %574 = arith.subf %529, %533 : vector<32x8xf32>
    %575 = arith.subf %533, %537 : vector<32x8xf32>
    %576 = arith.subf %537, %541 : vector<32x8xf32>
    %577 = arith.subf %541, %545 : vector<32x8xf32>
    %578 = arith.subf %545, %549 : vector<32x8xf32>
    %579 = arith.subf %549, %553 : vector<32x8xf32>
    %580 = arith.subf %553, %557 : vector<32x8xf32>
    %581 = arith.subf %557, %561 : vector<32x8xf32>
    %582 = arith.subf %561, %565 : vector<32x8xf32>
    %583 = arith.subf %565, %569 : vector<32x8xf32>
    %584 = arith.subf %569, %573 : vector<32x8xf32>
    %cst_97 = arith.constant -2.200000e+00 : f32
    %585 = vector.broadcast %cst_97 : f32 to vector<32x8xf32>
    %586 = arith.subf %519, %585 : vector<32x8xf32>
    %cst_98 = arith.constant -1.800000e+00 : f32
    %587 = vector.broadcast %cst_98 : f32 to vector<32x8xf32>
    %588 = arith.subf %519, %587 : vector<32x8xf32>
    %cst_99 = arith.constant -1.400000e+00 : f32
    %589 = vector.broadcast %cst_99 : f32 to vector<32x8xf32>
    %590 = arith.subf %519, %589 : vector<32x8xf32>
    %cst_100 = arith.constant -1.000000e+00 : f32
    %591 = vector.broadcast %cst_100 : f32 to vector<32x8xf32>
    %592 = arith.subf %519, %591 : vector<32x8xf32>
    %cst_101 = arith.constant -6.000000e-01 : f32
    %593 = vector.broadcast %cst_101 : f32 to vector<32x8xf32>
    %594 = arith.subf %519, %593 : vector<32x8xf32>
    %cst_102 = arith.constant -2.000000e-01 : f32
    %595 = vector.broadcast %cst_102 : f32 to vector<32x8xf32>
    %596 = arith.subf %519, %595 : vector<32x8xf32>
    %cst_103 = arith.constant 2.000000e-01 : f32
    %597 = vector.broadcast %cst_103 : f32 to vector<32x8xf32>
    %598 = arith.subf %519, %597 : vector<32x8xf32>
    %cst_104 = arith.constant 6.000000e-01 : f32
    %599 = vector.broadcast %cst_104 : f32 to vector<32x8xf32>
    %600 = arith.subf %519, %599 : vector<32x8xf32>
    %cst_105 = arith.constant 1.000000e+00 : f32
    %601 = vector.broadcast %cst_105 : f32 to vector<32x8xf32>
    %602 = arith.subf %519, %601 : vector<32x8xf32>
    %cst_106 = arith.constant 1.400000e+00 : f32
    %603 = vector.broadcast %cst_106 : f32 to vector<32x8xf32>
    %604 = arith.subf %519, %603 : vector<32x8xf32>
    %cst_107 = arith.constant 1.800000e+00 : f32
    %605 = vector.broadcast %cst_107 : f32 to vector<32x8xf32>
    %606 = arith.subf %519, %605 : vector<32x8xf32>
    %cst_108 = arith.constant 2.200000e+00 : f32
    %607 = vector.broadcast %cst_108 : f32 to vector<32x8xf32>
    %608 = arith.subf %519, %607 : vector<32x8xf32>
    %609 = arith.mulf %586, %574 : vector<32x8xf32>
    %610 = arith.mulf %590, %575 : vector<32x8xf32>
    %611 = arith.subf %609, %610 : vector<32x8xf32>
    %612 = arith.mulf %588, %575 : vector<32x8xf32>
    %613 = arith.mulf %592, %576 : vector<32x8xf32>
    %614 = arith.subf %612, %613 : vector<32x8xf32>
    %615 = arith.mulf %590, %576 : vector<32x8xf32>
    %616 = arith.mulf %594, %577 : vector<32x8xf32>
    %617 = arith.subf %615, %616 : vector<32x8xf32>
    %618 = arith.mulf %592, %577 : vector<32x8xf32>
    %619 = arith.mulf %596, %578 : vector<32x8xf32>
    %620 = arith.subf %618, %619 : vector<32x8xf32>
    %621 = arith.mulf %594, %578 : vector<32x8xf32>
    %622 = arith.mulf %598, %579 : vector<32x8xf32>
    %623 = arith.subf %621, %622 : vector<32x8xf32>
    %624 = arith.mulf %596, %579 : vector<32x8xf32>
    %625 = arith.mulf %600, %580 : vector<32x8xf32>
    %626 = arith.subf %624, %625 : vector<32x8xf32>
    %627 = arith.mulf %598, %580 : vector<32x8xf32>
    %628 = arith.mulf %602, %581 : vector<32x8xf32>
    %629 = arith.subf %627, %628 : vector<32x8xf32>
    %630 = arith.mulf %600, %581 : vector<32x8xf32>
    %631 = arith.mulf %604, %582 : vector<32x8xf32>
    %632 = arith.subf %630, %631 : vector<32x8xf32>
    %633 = arith.mulf %602, %582 : vector<32x8xf32>
    %634 = arith.mulf %606, %583 : vector<32x8xf32>
    %635 = arith.subf %633, %634 : vector<32x8xf32>
    %636 = arith.mulf %604, %583 : vector<32x8xf32>
    %637 = arith.mulf %608, %584 : vector<32x8xf32>
    %638 = arith.subf %636, %637 : vector<32x8xf32>
    %639 = arith.mulf %586, %611 : vector<32x8xf32>
    %640 = arith.mulf %592, %614 : vector<32x8xf32>
    %641 = arith.subf %639, %640 : vector<32x8xf32>
    %642 = arith.mulf %588, %614 : vector<32x8xf32>
    %643 = arith.mulf %594, %617 : vector<32x8xf32>
    %644 = arith.subf %642, %643 : vector<32x8xf32>
    %645 = arith.mulf %590, %617 : vector<32x8xf32>
    %646 = arith.mulf %596, %620 : vector<32x8xf32>
    %647 = arith.subf %645, %646 : vector<32x8xf32>
    %648 = arith.mulf %592, %620 : vector<32x8xf32>
    %649 = arith.mulf %598, %623 : vector<32x8xf32>
    %650 = arith.subf %648, %649 : vector<32x8xf32>
    %651 = arith.mulf %594, %623 : vector<32x8xf32>
    %652 = arith.mulf %600, %626 : vector<32x8xf32>
    %653 = arith.subf %651, %652 : vector<32x8xf32>
    %654 = arith.mulf %596, %626 : vector<32x8xf32>
    %655 = arith.mulf %602, %629 : vector<32x8xf32>
    %656 = arith.subf %654, %655 : vector<32x8xf32>
    %657 = arith.mulf %598, %629 : vector<32x8xf32>
    %658 = arith.mulf %604, %632 : vector<32x8xf32>
    %659 = arith.subf %657, %658 : vector<32x8xf32>
    %660 = arith.mulf %600, %632 : vector<32x8xf32>
    %661 = arith.mulf %606, %635 : vector<32x8xf32>
    %662 = arith.subf %660, %661 : vector<32x8xf32>
    %663 = arith.mulf %602, %635 : vector<32x8xf32>
    %664 = arith.mulf %608, %638 : vector<32x8xf32>
    %665 = arith.subf %663, %664 : vector<32x8xf32>
    %666 = arith.mulf %586, %641 : vector<32x8xf32>
    %667 = arith.mulf %594, %644 : vector<32x8xf32>
    %668 = arith.subf %666, %667 : vector<32x8xf32>
    %669 = arith.mulf %588, %644 : vector<32x8xf32>
    %670 = arith.mulf %596, %647 : vector<32x8xf32>
    %671 = arith.subf %669, %670 : vector<32x8xf32>
    %672 = arith.mulf %590, %647 : vector<32x8xf32>
    %673 = arith.mulf %598, %650 : vector<32x8xf32>
    %674 = arith.subf %672, %673 : vector<32x8xf32>
    %675 = arith.mulf %592, %650 : vector<32x8xf32>
    %676 = arith.mulf %600, %653 : vector<32x8xf32>
    %677 = arith.subf %675, %676 : vector<32x8xf32>
    %678 = arith.mulf %594, %653 : vector<32x8xf32>
    %679 = arith.mulf %602, %656 : vector<32x8xf32>
    %680 = arith.subf %678, %679 : vector<32x8xf32>
    %681 = arith.mulf %596, %656 : vector<32x8xf32>
    %682 = arith.mulf %604, %659 : vector<32x8xf32>
    %683 = arith.subf %681, %682 : vector<32x8xf32>
    %684 = arith.mulf %598, %659 : vector<32x8xf32>
    %685 = arith.mulf %606, %662 : vector<32x8xf32>
    %686 = arith.subf %684, %685 : vector<32x8xf32>
    %687 = arith.mulf %600, %662 : vector<32x8xf32>
    %688 = arith.mulf %608, %665 : vector<32x8xf32>
    %689 = arith.subf %687, %688 : vector<32x8xf32>
    %690 = tpu.concatenate %525, %668, %671, %674, %677, %680, %683, %686, %689 in 0 : vector<32x8xf32>, vector<32x8xf32>, vector<32x8xf32>, vector<32x8xf32>, vector<32x8xf32>, vector<32x8xf32>, vector<32x8xf32>, vector<32x8xf32>, vector<32x8xf32> -> vector<288x8xf32>
    %c0_109 = arith.constant 0 : index
    %c0_110 = arith.constant 0 : index
    %691 = vector.load %arg5[%c0_109, %c0_110] : memref<32x288xf32, #tpu.memory_space<vmem>>, vector<32x288xf32>
    %cst_111 = arith.constant dense<0.000000e+00> : vector<32x8xf32>
    %692 = tpu.matmul %691, %690, %cst_111 {dimension_numbers = #tpu.dot_dimension_numbers<[1], [0], [0], [1], [0, 0, 1, 1], [], []>} : vector<32x288xf32>, vector<288x8xf32>, vector<32x8xf32> -> vector<32x8xf32>
    %693 = arith.negf %692 : vector<32x8xf32>
    %694 = math.exp %693 : vector<32x8xf32>
    %cst_112 = arith.constant 1.000000e+00 : f32
    %695 = vector.broadcast %cst_112 : f32 to vector<32x8xf32>
    %696 = arith.addf %695, %694 : vector<32x8xf32>
    %697 = arith.divf %695, %696 : vector<32x8xf32>
    %698 = arith.mulf %692, %697 : vector<32x8xf32>
    %cst_113 = arith.constant -2.200000e+00 : f32
    %699 = vector.broadcast %cst_113 : f32 to vector<32x8xf32>
    %700 = arith.cmpf oge, %692, %699 : vector<32x8xf32>
    %701 = arith.extui %700 : vector<32x8xi1> to vector<32x8xi32>
    %702 = arith.sitofp %701 : vector<32x8xi32> to vector<32x8xf32>
    %cst_114 = arith.constant -1.800000e+00 : f32
    %703 = vector.broadcast %cst_114 : f32 to vector<32x8xf32>
    %704 = arith.cmpf oge, %692, %703 : vector<32x8xf32>
    %705 = arith.extui %704 : vector<32x8xi1> to vector<32x8xi32>
    %706 = arith.sitofp %705 : vector<32x8xi32> to vector<32x8xf32>
    %cst_115 = arith.constant -1.400000e+00 : f32
    %707 = vector.broadcast %cst_115 : f32 to vector<32x8xf32>
    %708 = arith.cmpf oge, %692, %707 : vector<32x8xf32>
    %709 = arith.extui %708 : vector<32x8xi1> to vector<32x8xi32>
    %710 = arith.sitofp %709 : vector<32x8xi32> to vector<32x8xf32>
    %cst_116 = arith.constant -1.000000e+00 : f32
    %711 = vector.broadcast %cst_116 : f32 to vector<32x8xf32>
    %712 = arith.cmpf oge, %692, %711 : vector<32x8xf32>
    %713 = arith.extui %712 : vector<32x8xi1> to vector<32x8xi32>
    %714 = arith.sitofp %713 : vector<32x8xi32> to vector<32x8xf32>
    %cst_117 = arith.constant -6.000000e-01 : f32
    %715 = vector.broadcast %cst_117 : f32 to vector<32x8xf32>
    %716 = arith.cmpf oge, %692, %715 : vector<32x8xf32>
    %717 = arith.extui %716 : vector<32x8xi1> to vector<32x8xi32>
    %718 = arith.sitofp %717 : vector<32x8xi32> to vector<32x8xf32>
    %cst_118 = arith.constant -2.000000e-01 : f32
    %719 = vector.broadcast %cst_118 : f32 to vector<32x8xf32>
    %720 = arith.cmpf oge, %692, %719 : vector<32x8xf32>
    %721 = arith.extui %720 : vector<32x8xi1> to vector<32x8xi32>
    %722 = arith.sitofp %721 : vector<32x8xi32> to vector<32x8xf32>
    %cst_119 = arith.constant 2.000000e-01 : f32
    %723 = vector.broadcast %cst_119 : f32 to vector<32x8xf32>
    %724 = arith.cmpf oge, %692, %723 : vector<32x8xf32>
    %725 = arith.extui %724 : vector<32x8xi1> to vector<32x8xi32>
    %726 = arith.sitofp %725 : vector<32x8xi32> to vector<32x8xf32>
    %cst_120 = arith.constant 6.000000e-01 : f32
    %727 = vector.broadcast %cst_120 : f32 to vector<32x8xf32>
    %728 = arith.cmpf oge, %692, %727 : vector<32x8xf32>
    %729 = arith.extui %728 : vector<32x8xi1> to vector<32x8xi32>
    %730 = arith.sitofp %729 : vector<32x8xi32> to vector<32x8xf32>
    %cst_121 = arith.constant 1.000000e+00 : f32
    %731 = vector.broadcast %cst_121 : f32 to vector<32x8xf32>
    %732 = arith.cmpf oge, %692, %731 : vector<32x8xf32>
    %733 = arith.extui %732 : vector<32x8xi1> to vector<32x8xi32>
    %734 = arith.sitofp %733 : vector<32x8xi32> to vector<32x8xf32>
    %cst_122 = arith.constant 1.400000e+00 : f32
    %735 = vector.broadcast %cst_122 : f32 to vector<32x8xf32>
    %736 = arith.cmpf oge, %692, %735 : vector<32x8xf32>
    %737 = arith.extui %736 : vector<32x8xi1> to vector<32x8xi32>
    %738 = arith.sitofp %737 : vector<32x8xi32> to vector<32x8xf32>
    %cst_123 = arith.constant 1.800000e+00 : f32
    %739 = vector.broadcast %cst_123 : f32 to vector<32x8xf32>
    %740 = arith.cmpf oge, %692, %739 : vector<32x8xf32>
    %741 = arith.extui %740 : vector<32x8xi1> to vector<32x8xi32>
    %742 = arith.sitofp %741 : vector<32x8xi32> to vector<32x8xf32>
    %cst_124 = arith.constant 2.200000e+00 : f32
    %743 = vector.broadcast %cst_124 : f32 to vector<32x8xf32>
    %744 = arith.cmpf oge, %692, %743 : vector<32x8xf32>
    %745 = arith.extui %744 : vector<32x8xi1> to vector<32x8xi32>
    %746 = arith.sitofp %745 : vector<32x8xi32> to vector<32x8xf32>
    %747 = arith.subf %702, %706 : vector<32x8xf32>
    %748 = arith.subf %706, %710 : vector<32x8xf32>
    %749 = arith.subf %710, %714 : vector<32x8xf32>
    %750 = arith.subf %714, %718 : vector<32x8xf32>
    %751 = arith.subf %718, %722 : vector<32x8xf32>
    %752 = arith.subf %722, %726 : vector<32x8xf32>
    %753 = arith.subf %726, %730 : vector<32x8xf32>
    %754 = arith.subf %730, %734 : vector<32x8xf32>
    %755 = arith.subf %734, %738 : vector<32x8xf32>
    %756 = arith.subf %738, %742 : vector<32x8xf32>
    %757 = arith.subf %742, %746 : vector<32x8xf32>
    %cst_125 = arith.constant -2.200000e+00 : f32
    %758 = vector.broadcast %cst_125 : f32 to vector<32x8xf32>
    %759 = arith.subf %692, %758 : vector<32x8xf32>
    %cst_126 = arith.constant -1.800000e+00 : f32
    %760 = vector.broadcast %cst_126 : f32 to vector<32x8xf32>
    %761 = arith.subf %692, %760 : vector<32x8xf32>
    %cst_127 = arith.constant -1.400000e+00 : f32
    %762 = vector.broadcast %cst_127 : f32 to vector<32x8xf32>
    %763 = arith.subf %692, %762 : vector<32x8xf32>
    %cst_128 = arith.constant -1.000000e+00 : f32
    %764 = vector.broadcast %cst_128 : f32 to vector<32x8xf32>
    %765 = arith.subf %692, %764 : vector<32x8xf32>
    %cst_129 = arith.constant -6.000000e-01 : f32
    %766 = vector.broadcast %cst_129 : f32 to vector<32x8xf32>
    %767 = arith.subf %692, %766 : vector<32x8xf32>
    %cst_130 = arith.constant -2.000000e-01 : f32
    %768 = vector.broadcast %cst_130 : f32 to vector<32x8xf32>
    %769 = arith.subf %692, %768 : vector<32x8xf32>
    %cst_131 = arith.constant 2.000000e-01 : f32
    %770 = vector.broadcast %cst_131 : f32 to vector<32x8xf32>
    %771 = arith.subf %692, %770 : vector<32x8xf32>
    %cst_132 = arith.constant 6.000000e-01 : f32
    %772 = vector.broadcast %cst_132 : f32 to vector<32x8xf32>
    %773 = arith.subf %692, %772 : vector<32x8xf32>
    %cst_133 = arith.constant 1.000000e+00 : f32
    %774 = vector.broadcast %cst_133 : f32 to vector<32x8xf32>
    %775 = arith.subf %692, %774 : vector<32x8xf32>
    %cst_134 = arith.constant 1.400000e+00 : f32
    %776 = vector.broadcast %cst_134 : f32 to vector<32x8xf32>
    %777 = arith.subf %692, %776 : vector<32x8xf32>
    %cst_135 = arith.constant 1.800000e+00 : f32
    %778 = vector.broadcast %cst_135 : f32 to vector<32x8xf32>
    %779 = arith.subf %692, %778 : vector<32x8xf32>
    %cst_136 = arith.constant 2.200000e+00 : f32
    %780 = vector.broadcast %cst_136 : f32 to vector<32x8xf32>
    %781 = arith.subf %692, %780 : vector<32x8xf32>
    %782 = arith.mulf %759, %747 : vector<32x8xf32>
    %783 = arith.mulf %763, %748 : vector<32x8xf32>
    %784 = arith.subf %782, %783 : vector<32x8xf32>
    %785 = arith.mulf %761, %748 : vector<32x8xf32>
    %786 = arith.mulf %765, %749 : vector<32x8xf32>
    %787 = arith.subf %785, %786 : vector<32x8xf32>
    %788 = arith.mulf %763, %749 : vector<32x8xf32>
    %789 = arith.mulf %767, %750 : vector<32x8xf32>
    %790 = arith.subf %788, %789 : vector<32x8xf32>
    %791 = arith.mulf %765, %750 : vector<32x8xf32>
    %792 = arith.mulf %769, %751 : vector<32x8xf32>
    %793 = arith.subf %791, %792 : vector<32x8xf32>
    %794 = arith.mulf %767, %751 : vector<32x8xf32>
    %795 = arith.mulf %771, %752 : vector<32x8xf32>
    %796 = arith.subf %794, %795 : vector<32x8xf32>
    %797 = arith.mulf %769, %752 : vector<32x8xf32>
    %798 = arith.mulf %773, %753 : vector<32x8xf32>
    %799 = arith.subf %797, %798 : vector<32x8xf32>
    %800 = arith.mulf %771, %753 : vector<32x8xf32>
    %801 = arith.mulf %775, %754 : vector<32x8xf32>
    %802 = arith.subf %800, %801 : vector<32x8xf32>
    %803 = arith.mulf %773, %754 : vector<32x8xf32>
    %804 = arith.mulf %777, %755 : vector<32x8xf32>
    %805 = arith.subf %803, %804 : vector<32x8xf32>
    %806 = arith.mulf %775, %755 : vector<32x8xf32>
    %807 = arith.mulf %779, %756 : vector<32x8xf32>
    %808 = arith.subf %806, %807 : vector<32x8xf32>
    %809 = arith.mulf %777, %756 : vector<32x8xf32>
    %810 = arith.mulf %781, %757 : vector<32x8xf32>
    %811 = arith.subf %809, %810 : vector<32x8xf32>
    %812 = arith.mulf %759, %784 : vector<32x8xf32>
    %813 = arith.mulf %765, %787 : vector<32x8xf32>
    %814 = arith.subf %812, %813 : vector<32x8xf32>
    %815 = arith.mulf %761, %787 : vector<32x8xf32>
    %816 = arith.mulf %767, %790 : vector<32x8xf32>
    %817 = arith.subf %815, %816 : vector<32x8xf32>
    %818 = arith.mulf %763, %790 : vector<32x8xf32>
    %819 = arith.mulf %769, %793 : vector<32x8xf32>
    %820 = arith.subf %818, %819 : vector<32x8xf32>
    %821 = arith.mulf %765, %793 : vector<32x8xf32>
    %822 = arith.mulf %771, %796 : vector<32x8xf32>
    %823 = arith.subf %821, %822 : vector<32x8xf32>
    %824 = arith.mulf %767, %796 : vector<32x8xf32>
    %825 = arith.mulf %773, %799 : vector<32x8xf32>
    %826 = arith.subf %824, %825 : vector<32x8xf32>
    %827 = arith.mulf %769, %799 : vector<32x8xf32>
    %828 = arith.mulf %775, %802 : vector<32x8xf32>
    %829 = arith.subf %827, %828 : vector<32x8xf32>
    %830 = arith.mulf %771, %802 : vector<32x8xf32>
    %831 = arith.mulf %777, %805 : vector<32x8xf32>
    %832 = arith.subf %830, %831 : vector<32x8xf32>
    %833 = arith.mulf %773, %805 : vector<32x8xf32>
    %834 = arith.mulf %779, %808 : vector<32x8xf32>
    %835 = arith.subf %833, %834 : vector<32x8xf32>
    %836 = arith.mulf %775, %808 : vector<32x8xf32>
    %837 = arith.mulf %781, %811 : vector<32x8xf32>
    %838 = arith.subf %836, %837 : vector<32x8xf32>
    %839 = arith.mulf %759, %814 : vector<32x8xf32>
    %840 = arith.mulf %767, %817 : vector<32x8xf32>
    %841 = arith.subf %839, %840 : vector<32x8xf32>
    %842 = arith.mulf %761, %817 : vector<32x8xf32>
    %843 = arith.mulf %769, %820 : vector<32x8xf32>
    %844 = arith.subf %842, %843 : vector<32x8xf32>
    %845 = arith.mulf %763, %820 : vector<32x8xf32>
    %846 = arith.mulf %771, %823 : vector<32x8xf32>
    %847 = arith.subf %845, %846 : vector<32x8xf32>
    %848 = arith.mulf %765, %823 : vector<32x8xf32>
    %849 = arith.mulf %773, %826 : vector<32x8xf32>
    %850 = arith.subf %848, %849 : vector<32x8xf32>
    %851 = arith.mulf %767, %826 : vector<32x8xf32>
    %852 = arith.mulf %775, %829 : vector<32x8xf32>
    %853 = arith.subf %851, %852 : vector<32x8xf32>
    %854 = arith.mulf %769, %829 : vector<32x8xf32>
    %855 = arith.mulf %777, %832 : vector<32x8xf32>
    %856 = arith.subf %854, %855 : vector<32x8xf32>
    %857 = arith.mulf %771, %832 : vector<32x8xf32>
    %858 = arith.mulf %779, %835 : vector<32x8xf32>
    %859 = arith.subf %857, %858 : vector<32x8xf32>
    %860 = arith.mulf %773, %835 : vector<32x8xf32>
    %861 = arith.mulf %781, %838 : vector<32x8xf32>
    %862 = arith.subf %860, %861 : vector<32x8xf32>
    %863 = tpu.concatenate %698, %841, %844, %847, %850, %853, %856, %859, %862 in 0 : vector<32x8xf32>, vector<32x8xf32>, vector<32x8xf32>, vector<32x8xf32>, vector<32x8xf32>, vector<32x8xf32>, vector<32x8xf32>, vector<32x8xf32>, vector<32x8xf32> -> vector<288x8xf32>
    %c0_137 = arith.constant 0 : index
    %c0_138 = arith.constant 0 : index
    %864 = vector.load %arg6[%c0_137, %c0_138] : memref<32x288xf32, #tpu.memory_space<vmem>>, vector<32x288xf32>
    %cst_139 = arith.constant dense<0.000000e+00> : vector<32x8xf32>
    %865 = tpu.matmul %864, %863, %cst_139 {dimension_numbers = #tpu.dot_dimension_numbers<[1], [0], [0], [1], [0, 0, 1, 1], [], []>} : vector<32x288xf32>, vector<288x8xf32>, vector<32x8xf32> -> vector<32x8xf32>
    %866 = arith.negf %865 : vector<32x8xf32>
    %867 = math.exp %866 : vector<32x8xf32>
    %cst_140 = arith.constant 1.000000e+00 : f32
    %868 = vector.broadcast %cst_140 : f32 to vector<32x8xf32>
    %869 = arith.addf %868, %867 : vector<32x8xf32>
    %870 = arith.divf %868, %869 : vector<32x8xf32>
    %871 = arith.mulf %865, %870 : vector<32x8xf32>
    %cst_141 = arith.constant -2.200000e+00 : f32
    %872 = vector.broadcast %cst_141 : f32 to vector<32x8xf32>
    %873 = arith.cmpf oge, %865, %872 : vector<32x8xf32>
    %874 = arith.extui %873 : vector<32x8xi1> to vector<32x8xi32>
    %875 = arith.sitofp %874 : vector<32x8xi32> to vector<32x8xf32>
    %cst_142 = arith.constant -1.800000e+00 : f32
    %876 = vector.broadcast %cst_142 : f32 to vector<32x8xf32>
    %877 = arith.cmpf oge, %865, %876 : vector<32x8xf32>
    %878 = arith.extui %877 : vector<32x8xi1> to vector<32x8xi32>
    %879 = arith.sitofp %878 : vector<32x8xi32> to vector<32x8xf32>
    %cst_143 = arith.constant -1.400000e+00 : f32
    %880 = vector.broadcast %cst_143 : f32 to vector<32x8xf32>
    %881 = arith.cmpf oge, %865, %880 : vector<32x8xf32>
    %882 = arith.extui %881 : vector<32x8xi1> to vector<32x8xi32>
    %883 = arith.sitofp %882 : vector<32x8xi32> to vector<32x8xf32>
    %cst_144 = arith.constant -1.000000e+00 : f32
    %884 = vector.broadcast %cst_144 : f32 to vector<32x8xf32>
    %885 = arith.cmpf oge, %865, %884 : vector<32x8xf32>
    %886 = arith.extui %885 : vector<32x8xi1> to vector<32x8xi32>
    %887 = arith.sitofp %886 : vector<32x8xi32> to vector<32x8xf32>
    %cst_145 = arith.constant -6.000000e-01 : f32
    %888 = vector.broadcast %cst_145 : f32 to vector<32x8xf32>
    %889 = arith.cmpf oge, %865, %888 : vector<32x8xf32>
    %890 = arith.extui %889 : vector<32x8xi1> to vector<32x8xi32>
    %891 = arith.sitofp %890 : vector<32x8xi32> to vector<32x8xf32>
    %cst_146 = arith.constant -2.000000e-01 : f32
    %892 = vector.broadcast %cst_146 : f32 to vector<32x8xf32>
    %893 = arith.cmpf oge, %865, %892 : vector<32x8xf32>
    %894 = arith.extui %893 : vector<32x8xi1> to vector<32x8xi32>
    %895 = arith.sitofp %894 : vector<32x8xi32> to vector<32x8xf32>
    %cst_147 = arith.constant 2.000000e-01 : f32
    %896 = vector.broadcast %cst_147 : f32 to vector<32x8xf32>
    %897 = arith.cmpf oge, %865, %896 : vector<32x8xf32>
    %898 = arith.extui %897 : vector<32x8xi1> to vector<32x8xi32>
    %899 = arith.sitofp %898 : vector<32x8xi32> to vector<32x8xf32>
    %cst_148 = arith.constant 6.000000e-01 : f32
    %900 = vector.broadcast %cst_148 : f32 to vector<32x8xf32>
    %901 = arith.cmpf oge, %865, %900 : vector<32x8xf32>
    %902 = arith.extui %901 : vector<32x8xi1> to vector<32x8xi32>
    %903 = arith.sitofp %902 : vector<32x8xi32> to vector<32x8xf32>
    %cst_149 = arith.constant 1.000000e+00 : f32
    %904 = vector.broadcast %cst_149 : f32 to vector<32x8xf32>
    %905 = arith.cmpf oge, %865, %904 : vector<32x8xf32>
    %906 = arith.extui %905 : vector<32x8xi1> to vector<32x8xi32>
    %907 = arith.sitofp %906 : vector<32x8xi32> to vector<32x8xf32>
    %cst_150 = arith.constant 1.400000e+00 : f32
    %908 = vector.broadcast %cst_150 : f32 to vector<32x8xf32>
    %909 = arith.cmpf oge, %865, %908 : vector<32x8xf32>
    %910 = arith.extui %909 : vector<32x8xi1> to vector<32x8xi32>
    %911 = arith.sitofp %910 : vector<32x8xi32> to vector<32x8xf32>
    %cst_151 = arith.constant 1.800000e+00 : f32
    %912 = vector.broadcast %cst_151 : f32 to vector<32x8xf32>
    %913 = arith.cmpf oge, %865, %912 : vector<32x8xf32>
    %914 = arith.extui %913 : vector<32x8xi1> to vector<32x8xi32>
    %915 = arith.sitofp %914 : vector<32x8xi32> to vector<32x8xf32>
    %cst_152 = arith.constant 2.200000e+00 : f32
    %916 = vector.broadcast %cst_152 : f32 to vector<32x8xf32>
    %917 = arith.cmpf oge, %865, %916 : vector<32x8xf32>
    %918 = arith.extui %917 : vector<32x8xi1> to vector<32x8xi32>
    %919 = arith.sitofp %918 : vector<32x8xi32> to vector<32x8xf32>
    %920 = arith.subf %875, %879 : vector<32x8xf32>
    %921 = arith.subf %879, %883 : vector<32x8xf32>
    %922 = arith.subf %883, %887 : vector<32x8xf32>
    %923 = arith.subf %887, %891 : vector<32x8xf32>
    %924 = arith.subf %891, %895 : vector<32x8xf32>
    %925 = arith.subf %895, %899 : vector<32x8xf32>
    %926 = arith.subf %899, %903 : vector<32x8xf32>
    %927 = arith.subf %903, %907 : vector<32x8xf32>
    %928 = arith.subf %907, %911 : vector<32x8xf32>
    %929 = arith.subf %911, %915 : vector<32x8xf32>
    %930 = arith.subf %915, %919 : vector<32x8xf32>
    %cst_153 = arith.constant -2.200000e+00 : f32
    %931 = vector.broadcast %cst_153 : f32 to vector<32x8xf32>
    %932 = arith.subf %865, %931 : vector<32x8xf32>
    %cst_154 = arith.constant -1.800000e+00 : f32
    %933 = vector.broadcast %cst_154 : f32 to vector<32x8xf32>
    %934 = arith.subf %865, %933 : vector<32x8xf32>
    %cst_155 = arith.constant -1.400000e+00 : f32
    %935 = vector.broadcast %cst_155 : f32 to vector<32x8xf32>
    %936 = arith.subf %865, %935 : vector<32x8xf32>
    %cst_156 = arith.constant -1.000000e+00 : f32
    %937 = vector.broadcast %cst_156 : f32 to vector<32x8xf32>
    %938 = arith.subf %865, %937 : vector<32x8xf32>
    %cst_157 = arith.constant -6.000000e-01 : f32
    %939 = vector.broadcast %cst_157 : f32 to vector<32x8xf32>
    %940 = arith.subf %865, %939 : vector<32x8xf32>
    %cst_158 = arith.constant -2.000000e-01 : f32
    %941 = vector.broadcast %cst_158 : f32 to vector<32x8xf32>
    %942 = arith.subf %865, %941 : vector<32x8xf32>
    %cst_159 = arith.constant 2.000000e-01 : f32
    %943 = vector.broadcast %cst_159 : f32 to vector<32x8xf32>
    %944 = arith.subf %865, %943 : vector<32x8xf32>
    %cst_160 = arith.constant 6.000000e-01 : f32
    %945 = vector.broadcast %cst_160 : f32 to vector<32x8xf32>
    %946 = arith.subf %865, %945 : vector<32x8xf32>
    %cst_161 = arith.constant 1.000000e+00 : f32
    %947 = vector.broadcast %cst_161 : f32 to vector<32x8xf32>
    %948 = arith.subf %865, %947 : vector<32x8xf32>
    %cst_162 = arith.constant 1.400000e+00 : f32
    %949 = vector.broadcast %cst_162 : f32 to vector<32x8xf32>
    %950 = arith.subf %865, %949 : vector<32x8xf32>
    %cst_163 = arith.constant 1.800000e+00 : f32
    %951 = vector.broadcast %cst_163 : f32 to vector<32x8xf32>
    %952 = arith.subf %865, %951 : vector<32x8xf32>
    %cst_164 = arith.constant 2.200000e+00 : f32
    %953 = vector.broadcast %cst_164 : f32 to vector<32x8xf32>
    %954 = arith.subf %865, %953 : vector<32x8xf32>
    %955 = arith.mulf %932, %920 : vector<32x8xf32>
    %956 = arith.mulf %936, %921 : vector<32x8xf32>
    %957 = arith.subf %955, %956 : vector<32x8xf32>
    %958 = arith.mulf %934, %921 : vector<32x8xf32>
    %959 = arith.mulf %938, %922 : vector<32x8xf32>
    %960 = arith.subf %958, %959 : vector<32x8xf32>
    %961 = arith.mulf %936, %922 : vector<32x8xf32>
    %962 = arith.mulf %940, %923 : vector<32x8xf32>
    %963 = arith.subf %961, %962 : vector<32x8xf32>
    %964 = arith.mulf %938, %923 : vector<32x8xf32>
    %965 = arith.mulf %942, %924 : vector<32x8xf32>
    %966 = arith.subf %964, %965 : vector<32x8xf32>
    %967 = arith.mulf %940, %924 : vector<32x8xf32>
    %968 = arith.mulf %944, %925 : vector<32x8xf32>
    %969 = arith.subf %967, %968 : vector<32x8xf32>
    %970 = arith.mulf %942, %925 : vector<32x8xf32>
    %971 = arith.mulf %946, %926 : vector<32x8xf32>
    %972 = arith.subf %970, %971 : vector<32x8xf32>
    %973 = arith.mulf %944, %926 : vector<32x8xf32>
    %974 = arith.mulf %948, %927 : vector<32x8xf32>
    %975 = arith.subf %973, %974 : vector<32x8xf32>
    %976 = arith.mulf %946, %927 : vector<32x8xf32>
    %977 = arith.mulf %950, %928 : vector<32x8xf32>
    %978 = arith.subf %976, %977 : vector<32x8xf32>
    %979 = arith.mulf %948, %928 : vector<32x8xf32>
    %980 = arith.mulf %952, %929 : vector<32x8xf32>
    %981 = arith.subf %979, %980 : vector<32x8xf32>
    %982 = arith.mulf %950, %929 : vector<32x8xf32>
    %983 = arith.mulf %954, %930 : vector<32x8xf32>
    %984 = arith.subf %982, %983 : vector<32x8xf32>
    %985 = arith.mulf %932, %957 : vector<32x8xf32>
    %986 = arith.mulf %938, %960 : vector<32x8xf32>
    %987 = arith.subf %985, %986 : vector<32x8xf32>
    %988 = arith.mulf %934, %960 : vector<32x8xf32>
    %989 = arith.mulf %940, %963 : vector<32x8xf32>
    %990 = arith.subf %988, %989 : vector<32x8xf32>
    %991 = arith.mulf %936, %963 : vector<32x8xf32>
    %992 = arith.mulf %942, %966 : vector<32x8xf32>
    %993 = arith.subf %991, %992 : vector<32x8xf32>
    %994 = arith.mulf %938, %966 : vector<32x8xf32>
    %995 = arith.mulf %944, %969 : vector<32x8xf32>
    %996 = arith.subf %994, %995 : vector<32x8xf32>
    %997 = arith.mulf %940, %969 : vector<32x8xf32>
    %998 = arith.mulf %946, %972 : vector<32x8xf32>
    %999 = arith.subf %997, %998 : vector<32x8xf32>
    %1000 = arith.mulf %942, %972 : vector<32x8xf32>
    %1001 = arith.mulf %948, %975 : vector<32x8xf32>
    %1002 = arith.subf %1000, %1001 : vector<32x8xf32>
    %1003 = arith.mulf %944, %975 : vector<32x8xf32>
    %1004 = arith.mulf %950, %978 : vector<32x8xf32>
    %1005 = arith.subf %1003, %1004 : vector<32x8xf32>
    %1006 = arith.mulf %946, %978 : vector<32x8xf32>
    %1007 = arith.mulf %952, %981 : vector<32x8xf32>
    %1008 = arith.subf %1006, %1007 : vector<32x8xf32>
    %1009 = arith.mulf %948, %981 : vector<32x8xf32>
    %1010 = arith.mulf %954, %984 : vector<32x8xf32>
    %1011 = arith.subf %1009, %1010 : vector<32x8xf32>
    %1012 = arith.mulf %932, %987 : vector<32x8xf32>
    %1013 = arith.mulf %940, %990 : vector<32x8xf32>
    %1014 = arith.subf %1012, %1013 : vector<32x8xf32>
    %1015 = arith.mulf %934, %990 : vector<32x8xf32>
    %1016 = arith.mulf %942, %993 : vector<32x8xf32>
    %1017 = arith.subf %1015, %1016 : vector<32x8xf32>
    %1018 = arith.mulf %936, %993 : vector<32x8xf32>
    %1019 = arith.mulf %944, %996 : vector<32x8xf32>
    %1020 = arith.subf %1018, %1019 : vector<32x8xf32>
    %1021 = arith.mulf %938, %996 : vector<32x8xf32>
    %1022 = arith.mulf %946, %999 : vector<32x8xf32>
    %1023 = arith.subf %1021, %1022 : vector<32x8xf32>
    %1024 = arith.mulf %940, %999 : vector<32x8xf32>
    %1025 = arith.mulf %948, %1002 : vector<32x8xf32>
    %1026 = arith.subf %1024, %1025 : vector<32x8xf32>
    %1027 = arith.mulf %942, %1002 : vector<32x8xf32>
    %1028 = arith.mulf %950, %1005 : vector<32x8xf32>
    %1029 = arith.subf %1027, %1028 : vector<32x8xf32>
    %1030 = arith.mulf %944, %1005 : vector<32x8xf32>
    %1031 = arith.mulf %952, %1008 : vector<32x8xf32>
    %1032 = arith.subf %1030, %1031 : vector<32x8xf32>
    %1033 = arith.mulf %946, %1008 : vector<32x8xf32>
    %1034 = arith.mulf %954, %1011 : vector<32x8xf32>
    %1035 = arith.subf %1033, %1034 : vector<32x8xf32>
    %1036 = tpu.concatenate %871, %1014, %1017, %1020, %1023, %1026, %1029, %1032, %1035 in 0 : vector<32x8xf32>, vector<32x8xf32>, vector<32x8xf32>, vector<32x8xf32>, vector<32x8xf32>, vector<32x8xf32>, vector<32x8xf32>, vector<32x8xf32>, vector<32x8xf32> -> vector<288x8xf32>
    %c0_165 = arith.constant 0 : index
    %c0_166 = arith.constant 0 : index
    %1037 = vector.load %arg7[%c0_165, %c0_166] : memref<2x288xf32, #tpu.memory_space<vmem>>, vector<2x288xf32>
    %cst_167 = arith.constant dense<0.000000e+00> : vector<2x8xf32>
    %1038 = tpu.matmul %1037, %1036, %cst_167 {dimension_numbers = #tpu.dot_dimension_numbers<[1], [0], [0], [1], [0, 0, 1, 1], [], []>} : vector<2x288xf32>, vector<288x8xf32>, vector<2x8xf32> -> vector<2x8xf32>
    %1039 = arith.negf %1038 : vector<2x8xf32>
    %1040 = math.exp %1039 : vector<2x8xf32>
    %cst_168 = arith.constant 1.000000e+00 : f32
    %1041 = vector.broadcast %cst_168 : f32 to vector<2x8xf32>
    %1042 = arith.addf %1041, %1040 : vector<2x8xf32>
    %1043 = arith.divf %1041, %1042 : vector<2x8xf32>
    %c0_169 = arith.constant 0 : index
    %c0_170 = arith.constant 0 : index
    %1044 = vector.load %arg8[%c0_169, %c0_170] : memref<2x8xf32, #tpu.memory_space<vmem>>, vector<2x8xf32>
    tpu.vector_store %arg8[%c0_169, %c0_170], %1043 {strides = array<i32>} : memref<2x8xf32, #tpu.memory_space<vmem>>, vector<2x8xf32>,
    return
  }
  func.func @transform_0(%arg0: i32) -> (i32, i32) {
    %c0_i32 = arith.constant 0 : i32
    %c0_i32_0 = arith.constant 0 : i32
    return %c0_i32, %arg0 : i32, i32
  }
  func.func @transform_1(%arg0: i32) -> (i32, i32) {
    %c0_i32 = arith.constant 0 : i32
    %c0_i32_0 = arith.constant 0 : i32
    %c0_i32_1 = arith.constant 0 : i32
    return %c0_i32, %c0_i32_0 : i32, i32
  }
  func.func @transform_2(%arg0: i32) -> (i32, i32) {
    %c0_i32 = arith.constant 0 : i32
    %c0_i32_0 = arith.constant 0 : i32
    %c0_i32_1 = arith.constant 0 : i32
    return %c0_i32, %c0_i32_0 : i32, i32
  }
  func.func @transform_3(%arg0: i32) -> (i32, i32) {
    %c0_i32 = arith.constant 0 : i32
    %c0_i32_0 = arith.constant 0 : i32
    %c0_i32_1 = arith.constant 0 : i32
    return %c0_i32, %c0_i32_0 : i32, i32
  }
  func.func @transform_4(%arg0: i32) -> (i32, i32) {
    %c0_i32 = arith.constant 0 : i32
    %c0_i32_0 = arith.constant 0 : i32
    %c0_i32_1 = arith.constant 0 : i32
    return %c0_i32, %c0_i32_0 : i32, i32
  }
  func.func @transform_5(%arg0: i32) -> (i32, i32) {
    %c0_i32 = arith.constant 0 : i32
    %c0_i32_0 = arith.constant 0 : i32
    %c0_i32_1 = arith.constant 0 : i32
    return %c0_i32, %c0_i32_0 : i32, i32
  }
  func.func @transform_6(%arg0: i32) -> (i32, i32) {
    %c0_i32 = arith.constant 0 : i32
    %c0_i32_0 = arith.constant 0 : i32
    %c0_i32_1 = arith.constant 0 : i32
    return %c0_i32, %c0_i32_0 : i32, i32
  }
  func.func @transform_7(%arg0: i32) -> (i32, i32) {
    %c0_i32 = arith.constant 0 : i32
    %c0_i32_0 = arith.constant 0 : i32
    return %c0_i32, %arg0 : i32, i32
  }
}

</mosaic_0001>

<llo_original>
// kernel: tpu_custom_call.1
$region0: #{tpu_custom_call.1}
  #allocation0 [shape = 'u32[]', space=smem, size = 0x4, offset = 0x4, fixed_abs, tag = 'smem constant byte address 0x4 - core index']
  #allocation1 [shape = 'u32[144,128]{1,0:T(1,128)}', space=vmem, size = 0x12000, scoped, tag = 'internal scratch']
  %s0 = inlined_call_operand.vmem [shape: f32[16,8], index: 0, kind: input, shape index: {}]
  %s1 = inlined_call_operand.hbm [shape: f32[32,144], index: 1, kind: input, shape index: {}]
  %s2 = inlined_call_operand.hbm [shape: f32[32,288], index: 2, kind: input, shape index: {}]
  %s3 = inlined_call_operand.hbm [shape: f32[32,288], index: 3, kind: input, shape index: {}]
  %s4 = inlined_call_operand.hbm [shape: f32[32,288], index: 4, kind: input, shape index: {}]
  %s5 = inlined_call_operand.hbm [shape: f32[32,288], index: 5, kind: input, shape index: {}]
  %s6 = inlined_call_operand.vmem [shape: f32[2,288], index: 6, kind: input, shape index: {}]
  %s7 = inlined_call_operand.hbm [shape: f32[2,8], index: 7, kind: output, shape index: {}]
  %s8 = sld [smem:[#allocation0]]
  $region58: #{tpu_custom_call.1} parent=0
    _
  %s10 = ssub.s32 1, %s8
  %s11 = scalar_select 0, %s10, %s8
  $region1: #{tpu_custom_call.1} parent=0
    #allocation2 [shape = 'u8[32768]{0}', space=vmem, size = 0x8000, scoped, tag = 'input window, operand 1, single buffered']
    #allocation3 [shape = 's32[1]{0}', space=sflag, size = 0x4, scoped, tag = 'scoped memory for tpu_custom_call.1']
    #allocation4 [shape = 's32[1]{0}', space=sflag, size = 0x4, scoped, tag = 'scoped memory for tpu_custom_call.1']
    #allocation5 [shape = 'u8[49152]{0}', space=vmem, size = 0xc000, scoped, tag = 'input window, operand 2, single buffered']
    #allocation6 [shape = 's32[1]{0}', space=sflag, size = 0x4, scoped, tag = 'scoped memory for tpu_custom_call.1']
    #allocation7 [shape = 'u8[49152]{0}', space=vmem, size = 0xc000, scoped, tag = 'input window, operand 3, single buffered']
    #allocation8 [shape = 'u8[49152]{0}', space=vmem, size = 0xc000, scoped, tag = 'input window, operand 4, single buffered']
    #allocation9 [shape = 's32[1]{0}', space=sflag, size = 0x4, scoped, tag = 'scoped memory for tpu_custom_call.1']
    #allocation10 [shape = 'u8[49152]{0}', space=vmem, size = 0xc000, scoped, tag = 'input window, operand 5, single buffered']
    #allocation11 [shape = 'u8[1024]{0}', space=vmem, size = 0x400, scoped, tag = 'output window, operand 0, single buffered']
    %12 = vsyncpa [#allocation3], 0
    %13 = vsyncpa [#allocation6], 0
    %14 = vsyncpa [#allocation9], 0
    %15 = vsyncpa [#allocation4], 0
    // Predicated region
    $region2: #{tpu_custom_call.1} parent=1 // pred_check
      _
    $region3: #{tpu_custom_call.1} parent=1 // pred_check_branch
      %17 = sbr.rel (0) target = $region5
    $region4: #{tpu_custom_call.1} parent=1 // pred_region
      _
    $region5: #{tpu_custom_call.1} parent=1 // pred_fallthru
      _
    // Predicated region
    $region6: #{tpu_custom_call.1} parent=1 // pred_check
      _
    $region7: #{tpu_custom_call.1} parent=1 // pred_check_branch
      %19 = sbr.rel (0) target = $region9
    $region8: #{tpu_custom_call.1} parent=1 // pred_region
      %s21 = ssub.s32 1024, 1024
      %22 = vsyncadd [#allocation3], %s21
      %s23 = sshll.u32 [#allocation2], 4
      %s24 = int_to_ptr.vmem [resolvable:$true] %s23
      %29 = dma.hbm_to_vmem [thread:$0]  %s1, 1024, %s24, [#allocation3], 256, 256, 16
    $region9: #{tpu_custom_call.1} parent=1 // pred_fallthru
      _
    // Predicated region
    $region10: #{tpu_custom_call.1} parent=1 // pred_check
      _
    $region11: #{tpu_custom_call.1} parent=1 // pred_check_branch
      %31 = sbr.rel (0) target = $region13
    $region12: #{tpu_custom_call.1} parent=1 // pred_region
      %s33 = ssub.s32 1536, 1536
      %34 = vsyncadd [#allocation6], %s33
      %s35 = sshll.u32 [#allocation5], 4
      %s36 = int_to_ptr.vmem [resolvable:$true] %s35
      %41 = dma.hbm_to_vmem [thread:$0]  %s2, 1536, %s36, [#allocation6], 384, 384, 24
    $region13: #{tpu_custom_call.1} parent=1 // pred_fallthru
      _
    // Predicated region
    $region14: #{tpu_custom_call.1} parent=1 // pred_check
      _
    $region15: #{tpu_custom_call.1} parent=1 // pred_check_branch
      %43 = sbr.rel (0) target = $region17
    $region16: #{tpu_custom_call.1} parent=1 // pred_region
      %s45 = ssub.s32 1536, 1536
      %46 = vsyncadd [#allocation6], %s45
      %s47 = sshll.u32 [#allocation7], 4
      %s48 = int_to_ptr.vmem [resolvable:$true] %s47
      %53 = dma.hbm_to_vmem [thread:$0]  %s3, 1536, %s48, [#allocation6], 384, 384, 24
    $region17: #{tpu_custom_call.1} parent=1 // pred_fallthru
      _
    // Predicated region
    $region18: #{tpu_custom_call.1} parent=1 // pred_check
      _
    $region19: #{tpu_custom_call.1} parent=1 // pred_check_branch
      %55 = sbr.rel (0) target = $region21
    $region20: #{tpu_custom_call.1} parent=1 // pred_region
      %s57 = ssub.s32 1536, 1536
      %58 = vsyncadd [#allocation9], %s57
      %s59 = sshll.u32 [#allocation8], 4
      %s60 = int_to_ptr.vmem [resolvable:$true] %s59
      %65 = dma.hbm_to_vmem [thread:$0]  %s4, 1536, %s60, [#allocation9], 384, 384, 24
    $region21: #{tpu_custom_call.1} parent=1 // pred_fallthru
      _
    // Predicated region
    $region22: #{tpu_custom_call.1} parent=1 // pred_check
      _
    $region23: #{tpu_custom_call.1} parent=1 // pred_check_branch
      %67 = sbr.rel (0) target = $region25
    $region24: #{tpu_custom_call.1} parent=1 // pred_region
      %s69 = ssub.s32 1536, 1536
      %70 = vsyncadd [#allocation9], %s69
      %s71 = sshll.u32 [#allocation10], 4
      %s72 = int_to_ptr.vmem [resolvable:$true] %s71
      %77 = dma.hbm_to_vmem [thread:$0]  %s5, 1536, %s72, [#allocation9], 384, 384, 24
    $region25: #{tpu_custom_call.1} parent=1 // pred_fallthru
      _
    // Predicated region
    $region26: #{tpu_custom_call.1} parent=1 // pred_check
      _
    $region27: #{tpu_custom_call.1} parent=1 // pred_check_branch
      %79 = sbr.rel (0) target = $region29
    $region28: #{tpu_custom_call.1} parent=1 // pred_region
      _
    $region29: #{tpu_custom_call.1} parent=1 // pred_fallthru
      _
    // Predicated region
    $region30: #{tpu_custom_call.1} parent=1 // pred_check
      _
    $region31: #{tpu_custom_call.1} parent=1 // pred_check_branch
      %81 = sbr.rel (0) target = $region33
    $region32: #{tpu_custom_call.1} parent=1 // pred_region
      %82 = dma.done [#allocation3], 1024
    $region33: #{tpu_custom_call.1} parent=1 // pred_fallthru
      _
    // Predicated region
    $region34: #{tpu_custom_call.1} parent=1 // pred_check
      _
    $region35: #{tpu_custom_call.1} parent=1 // pred_check_branch
      %84 = sbr.rel (0) target = $region37
    $region36: #{tpu_custom_call.1} parent=1 // pred_region
      %85 = dma.done [#allocation6], 1536
    $region37: #{tpu_custom_call.1} parent=1 // pred_fallthru
      _
    // Predicated region
    $region38: #{tpu_custom_call.1} parent=1 // pred_check
      _
    $region39: #{tpu_custom_call.1} parent=1 // pred_check_branch
      %87 = sbr.rel (0) target = $region41
    $region40: #{tpu_custom_call.1} parent=1 // pred_region
      %88 = dma.done [#allocation6], 1536
    $region41: #{tpu_custom_call.1} parent=1 // pred_fallthru
      _
    // Predicated region
    $region42: #{tpu_custom_call.1} parent=1 // pred_check
      _
    $region43: #{tpu_custom_call.1} parent=1 // pred_check_branch
      %90 = sbr.rel (0) target = $region45
    $region44: #{tpu_custom_call.1} parent=1 // pred_region
      %91 = dma.done [#allocation9], 1536
    $region45: #{tpu_custom_call.1} parent=1 // pred_fallthru
      _
    // Predicated region
    $region46: #{tpu_custom_call.1} parent=1 // pred_check
      _
    $region47: #{tpu_custom_call.1} parent=1 // pred_check_branch
      %93 = sbr.rel (0) target = $region49
    $region48: #{tpu_custom_call.1} parent=1 // pred_region
      %94 = dma.done [#allocation9], 1536
    $region49: #{tpu_custom_call.1} parent=1 // pred_fallthru
      _
    %v95 = vld [vmem:[%s0] sm:$0xff]
    %v96 = vld [vmem:[%s0 + $0x8] sm:$0xff]
    %v97 = vxor.u32 %v95, 2147483648
    %v98 = vxor.u32 %v96, 2147483648
    %v99 = vmul.f32 %v97, 1.442695
    %v100 = vpow.pop %v99
    %v101 = vmul.f32 %v98, 1.442695
    %v102 = vpow.pop %v101
    %v103 = vadd.f32 %v100, 1.0
    %v104 = vadd.f32 %v102, 1.0
    %v105 = vrcp.pop %v103
    %v106 = vmul.f32 1.0, %v105
    %v107 = vrcp.pop %v104
    %v108 = vmul.f32 1.0, %v107
    %v109 = vmul.f32 %v95, %v106
    %v110 = vmul.f32 %v96, %v108
    %vm111 = vcmp.ge.f32.partialorder %v95, -2.2
    %vm112 = vcmp.ge.f32.partialorder %v96, -2.2
    %v113 = vsel %vm111, 1, 0
    %v114 = vsel %vm112, 1, 0
    %v115 = vcvt.s32.f32 %v113
    %v116 = vcvt.s32.f32 %v114
    %vm117 = vcmp.ge.f32.partialorder %v95, -1.8
    %vm118 = vcmp.ge.f32.partialorder %v96, -1.8
    %v119 = vsel %vm117, 1, 0
    %v120 = vsel %vm118, 1, 0
    %v121 = vcvt.s32.f32 %v119
    %v122 = vcvt.s32.f32 %v120
    %vm123 = vcmp.ge.f32.partialorder %v95, -1.4
    %vm124 = vcmp.ge.f32.partialorder %v96, -1.4
    %v125 = vsel %vm123, 1, 0
    %v126 = vsel %vm124, 1, 0
    %v127 = vcvt.s32.f32 %v125
    %v128 = vcvt.s32.f32 %v126
    %vm129 = vcmp.ge.f32.partialorder %v95, -1.0
    %vm130 = vcmp.ge.f32.partialorder %v96, -1.0
    %v131 = vsel %vm129, 1, 0
    %v132 = vsel %vm130, 1, 0
    %v133 = vcvt.s32.f32 %v131
    %v134 = vcvt.s32.f32 %v132
    %vm135 = vcmp.ge.f32.partialorder %v95, -0.6
    %vm136 = vcmp.ge.f32.partialorder %v96, -0.6
    %v137 = vsel %vm135, 1, 0
    %v138 = vsel %vm136, 1, 0
    %v139 = vcvt.s32.f32 %v137
    %v140 = vcvt.s32.f32 %v138
    %vm141 = vcmp.ge.f32.partialorder %v95, -0.2
    %vm142 = vcmp.ge.f32.partialorder %v96, -0.2
    %v143 = vsel %vm141, 1, 0
    %v144 = vsel %vm142, 1, 0
    %v145 = vcvt.s32.f32 %v143
    %v146 = vcvt.s32.f32 %v144
    %vm147 = vcmp.ge.f32.partialorder %v95, 0.2
    %vm148 = vcmp.ge.f32.partialorder %v96, 0.2
    %v149 = vsel %vm147, 1, 0
    %v150 = vsel %vm148, 1, 0
    %v151 = vcvt.s32.f32 %v149
    %v152 = vcvt.s32.f32 %v150
    %vm153 = vcmp.ge.f32.partialorder %v95, 0.6
    %vm154 = vcmp.ge.f32.partialorder %v96, 0.6
    %v155 = vsel %vm153, 1, 0
    %v156 = vsel %vm154, 1, 0
    %v157 = vcvt.s32.f32 %v155
    %v158 = vcvt.s32.f32 %v156
    %vm159 = vcmp.ge.f32.partialorder %v95, 1.0
    %vm160 = vcmp.ge.f32.partialorder %v96, 1.0
    %v161 = vsel %vm159, 1, 0
    %v162 = vsel %vm160, 1, 0
    %v163 = vcvt.s32.f32 %v161
    %v164 = vcvt.s32.f32 %v162
    %vm165 = vcmp.ge.f32.partialorder %v95, 1.4
    %vm166 = vcmp.ge.f32.partialorder %v96, 1.4
    %v167 = vsel %vm165, 1, 0
    %v168 = vsel %vm166, 1, 0
    %v169 = vcvt.s32.f32 %v167
    %v170 = vcvt.s32.f32 %v168
    %vm171 = vcmp.ge.f32.partialorder %v95, 1.8
    %vm172 = vcmp.ge.f32.partialorder %v96, 1.8
    %v173 = vsel %vm171, 1, 0
    %v174 = vsel %vm172, 1, 0
    %v175 = vcvt.s32.f32 %v173
    %v176 = vcvt.s32.f32 %v174
    %vm177 = vcmp.ge.f32.partialorder %v95, 2.2
    %vm178 = vcmp.ge.f32.partialorder %v96, 2.2
    %v179 = vsel %vm177, 1, 0
    %v180 = vsel %vm178, 1, 0
    %v181 = vcvt.s32.f32 %v179
    %v182 = vcvt.s32.f32 %v180
    %v183 = vsub.f32 %v115, %v121
    %v184 = vsub.f32 %v116, %v122
    %v185 = vsub.f32 %v121, %v127
    %v186 = vsub.f32 %v122, %v128
    %v187 = vsub.f32 %v127, %v133
    %v188 = vsub.f32 %v128, %v134
    %v189 = vsub.f32 %v133, %v139
    %v190 = vsub.f32 %v134, %v140
    %v191 = vsub.f32 %v139, %v145
    %v192 = vsub.f32 %v140, %v146
    %v193 = vsub.f32 %v145, %v151
    %v194 = vsub.f32 %v146, %v152
    %v195 = vsub.f32 %v151, %v157
    %v196 = vsub.f32 %v152, %v158
    %v197 = vsub.f32 %v157, %v163
    %v198 = vsub.f32 %v158, %v164
    %v199 = vsub.f32 %v163, %v169
    %v200 = vsub.f32 %v164, %v170
    %v201 = vsub.f32 %v169, %v175
    %v202 = vsub.f32 %v170, %v176
    %v203 = vsub.f32 %v175, %v181
    %v204 = vsub.f32 %v176, %v182
    %v205 = vsub.f32 %v95, -2.2
    %v206 = vsub.f32 %v96, -2.2
    %v207 = vsub.f32 %v95, -1.8
    %v208 = vsub.f32 %v96, -1.8
    %v209 = vsub.f32 %v95, -1.4
    %v210 = vsub.f32 %v96, -1.4
    %v211 = vsub.f32 %v95, -1.0
    %v212 = vsub.f32 %v96, -1.0
    %v213 = vsub.f32 %v95, -0.6
    %v214 = vsub.f32 %v96, -0.6
    %v215 = vsub.f32 %v95, -0.2
    %v216 = vsub.f32 %v96, -0.2
    %v217 = vsub.f32 %v95, 0.2
    %v218 = vsub.f32 %v96, 0.2
    %v219 = vsub.f32 %v95, 0.6
    %v220 = vsub.f32 %v96, 0.6
    %v221 = vsub.f32 %v95, 1.0
    %v222 = vsub.f32 %v96, 1.0
    %v223 = vsub.f32 %v95, 1.4
    %v224 = vsub.f32 %v96, 1.4
    %v225 = vsub.f32 %v95, 1.8
    %v226 = vsub.f32 %v96, 1.8
    %v227 = vsub.f32 %v95, 2.2
    %v228 = vsub.f32 %v96, 2.2
    %v229 = vmul.f32 %v205, %v183
    %v230 = vmul.f32 %v206, %v184
    %v231 = vmul.f32 %v209, %v185
    %v232 = vmul.f32 %v210, %v186
    %v233 = vsub.f32 %v229, %v231
    %v234 = vsub.f32 %v230, %v232
    %v235 = vmul.f32 %v207, %v185
    %v236 = vmul.f32 %v208, %v186
    %v237 = vmul.f32 %v211, %v187
    %v238 = vmul.f32 %v212, %v188
    %v239 = vsub.f32 %v235, %v237
    %v240 = vsub.f32 %v236, %v238
    %v241 = vmul.f32 %v209, %v187
    %v242 = vmul.f32 %v210, %v188
    %v243 = vmul.f32 %v213, %v189
    %v244 = vmul.f32 %v214, %v190
    %v245 = vsub.f32 %v241, %v243
    %v246 = vsub.f32 %v242, %v244
    %v247 = vmul.f32 %v211, %v189
    %v248 = vmul.f32 %v212, %v190
    %v249 = vmul.f32 %v215, %v191
    %v250 = vmul.f32 %v216, %v192
    %v251 = vsub.f32 %v247, %v249
    %v252 = vsub.f32 %v248, %v250
    %v253 = vmul.f32 %v213, %v191
    %v254 = vmul.f32 %v214, %v192
    %v255 = vmul.f32 %v217, %v193
    %v256 = vmul.f32 %v218, %v194
    %v257 = vsub.f32 %v253, %v255
    %v258 = vsub.f32 %v254, %v256
    %v259 = vmul.f32 %v215, %v193
    %v260 = vmul.f32 %v216, %v194
    %v261 = vmul.f32 %v219, %v195
    %v262 = vmul.f32 %v220, %v196
    %v263 = vsub.f32 %v259, %v261
    %v264 = vsub.f32 %v260, %v262
    %v265 = vmul.f32 %v217, %v195
    %v266 = vmul.f32 %v218, %v196
    %v267 = vmul.f32 %v221, %v197
    %v268 = vmul.f32 %v222, %v198
    %v269 = vsub.f32 %v265, %v267
    %v270 = vsub.f32 %v266, %v268
    %v271 = vmul.f32 %v219, %v197
    %v272 = vmul.f32 %v220, %v198
    %v273 = vmul.f32 %v223, %v199
    %v274 = vmul.f32 %v224, %v200
    %v275 = vsub.f32 %v271, %v273
    %v276 = vsub.f32 %v272, %v274
    %v277 = vmul.f32 %v221, %v199
    %v278 = vmul.f32 %v222, %v200
    %v279 = vmul.f32 %v225, %v201
    %v280 = vmul.f32 %v226, %v202
    %v281 = vsub.f32 %v277, %v279
    %v282 = vsub.f32 %v278, %v280
    %v283 = vmul.f32 %v223, %v201
    %v284 = vmul.f32 %v224, %v202
    %v285 = vmul.f32 %v227, %v203
    %v286 = vmul.f32 %v228, %v204
    %v287 = vsub.f32 %v283, %v285
    %v288 = vsub.f32 %v284, %v286
    %v289 = vmul.f32 %v205, %v233
    %v290 = vmul.f32 %v206, %v234
    %v291 = vmul.f32 %v211, %v239
    %v292 = vmul.f32 %v212, %v240
    %v293 = vsub.f32 %v289, %v291
    %v294 = vsub.f32 %v290, %v292
    %v295 = vmul.f32 %v207, %v239
    %v296 = vmul.f32 %v208, %v240
    %v297 = vmul.f32 %v213, %v245
    %v298 = vmul.f32 %v214, %v246
    %v299 = vsub.f32 %v295, %v297
    %v300 = vsub.f32 %v296, %v298
    %v301 = vmul.f32 %v209, %v245
    %v302 = vmul.f32 %v210, %v246
    %v303 = vmul.f32 %v215, %v251
    %v304 = vmul.f32 %v216, %v252
    %v305 = vsub.f32 %v301, %v303
    %v306 = vsub.f32 %v302, %v304
    %v307 = vmul.f32 %v211, %v251
    %v308 = vmul.f32 %v212, %v252
    %v309 = vmul.f32 %v217, %v257
    %v310 = vmul.f32 %v218, %v258
    %v311 = vsub.f32 %v307, %v309
    %v312 = vsub.f32 %v308, %v310
    %v313 = vmul.f32 %v213, %v257
    %v314 = vmul.f32 %v214, %v258
    %v315 = vmul.f32 %v219, %v263
    %v316 = vmul.f32 %v220, %v264
    %v317 = vsub.f32 %v313, %v315
    %v318 = vsub.f32 %v314, %v316
    %v319 = vmul.f32 %v215, %v263
    %v320 = vmul.f32 %v216, %v264
    %v321 = vmul.f32 %v221, %v269
    %v322 = vmul.f32 %v222, %v270
    %v323 = vsub.f32 %v319, %v321
    %v324 = vsub.f32 %v320, %v322
    %v325 = vmul.f32 %v217, %v269
    %v326 = vmul.f32 %v218, %v270
    %v327 = vmul.f32 %v223, %v275
    %v328 = vmul.f32 %v224, %v276
    %v329 = vsub.f32 %v325, %v327
    %v330 = vsub.f32 %v326, %v328
    %v331 = vmul.f32 %v219, %v275
    %v332 = vmul.f32 %v220, %v276
    %v333 = vmul.f32 %v225, %v281
    %v334 = vmul.f32 %v226, %v282
    %v335 = vsub.f32 %v331, %v333
    %v336 = vsub.f32 %v332, %v334
    %v337 = vmul.f32 %v221, %v281
    %v338 = vmul.f32 %v222, %v282
    %v339 = vmul.f32 %v227, %v287
    %v340 = vmul.f32 %v228, %v288
    %v341 = vsub.f32 %v337, %v339
    %v342 = vsub.f32 %v338, %v340
    %v343 = vmul.f32 %v205, %v293
    %v344 = vmul.f32 %v206, %v294
    %v345 = vmul.f32 %v213, %v299
    %v346 = vmul.f32 %v214, %v300
    %v347 = vsub.f32 %v343, %v345
    %v348 = vsub.f32 %v344, %v346
    %v349 = vmul.f32 %v207, %v299
    %v350 = vmul.f32 %v208, %v300
    %v351 = vmul.f32 %v215, %v305
    %v352 = vmul.f32 %v216, %v306
    %v353 = vsub.f32 %v349, %v351
    %v354 = vsub.f32 %v350, %v352
    %v355 = vmul.f32 %v209, %v305
    %v356 = vmul.f32 %v210, %v306
    %v357 = vmul.f32 %v217, %v311
    %v358 = vmul.f32 %v218, %v312
    %v359 = vsub.f32 %v355, %v357
    %v360 = vsub.f32 %v356, %v358
    %v361 = vmul.f32 %v211, %v311
    %v362 = vmul.f32 %v212, %v312
    %v363 = vmul.f32 %v219, %v317
    %v364 = vmul.f32 %v220, %v318
    %v365 = vsub.f32 %v361, %v363
    %v366 = vsub.f32 %v362, %v364
    %v367 = vmul.f32 %v213, %v317
    %v368 = vmul.f32 %v214, %v318
    %v369 = vmul.f32 %v221, %v323
    %v370 = vmul.f32 %v222, %v324
    %v371 = vsub.f32 %v367, %v369
    %v372 = vsub.f32 %v368, %v370
    %v373 = vmul.f32 %v215, %v323
    %v374 = vmul.f32 %v216, %v324
    %v375 = vmul.f32 %v223, %v329
    %v376 = vmul.f32 %v224, %v330
    %v377 = vsub.f32 %v373, %v375
    %v378 = vsub.f32 %v374, %v376
    %v379 = vmul.f32 %v217, %v329
    %v380 = vmul.f32 %v218, %v330
    %v381 = vmul.f32 %v225, %v335
    %v382 = vmul.f32 %v226, %v336
    %v383 = vsub.f32 %v379, %v381
    %v384 = vsub.f32 %v380, %v382
    %v385 = vmul.f32 %v219, %v335
    %v386 = vmul.f32 %v220, %v336
    %v387 = vmul.f32 %v227, %v341
    %v388 = vmul.f32 %v228, %v342
    %v389 = vsub.f32 %v385, %v387
    %v390 = vsub.f32 %v386, %v388
    %v391 = vld [vmem:[#allocation2] sm:$0xff]
    %v392 = vld [vmem:[#allocation2 + $0x8] sm:$0xff]
    %v393 = vld [vmem:[#allocation2 + $0x10] sm:$0xff]
    %v394 = vld [vmem:[#allocation2 + $0x18] sm:$0xff]
    %v395 = vld [vmem:[#allocation2 + $0x20] sm:$0xff]
    %v396 = vld [vmem:[#allocation2 + $0x28] sm:$0xff]
    %v397 = vld [vmem:[#allocation2 + $0x30] sm:$0xff]
    %v398 = vld [vmem:[#allocation2 + $0x38] sm:$0xff]
    %vm399 = vcmask 130048
    %v401 = vsel %vm399, %v392, 0
    %v404 = vsel %vm399, %v394, 0
    %v407 = vsel %vm399, %v396, 0
    %v410 = vsel %vm399, %v398, 0
    %412 = vmatprep.subr.mxu0 0.0
    %413 = vmatpush1.msra.mxu0 %v384
    %414 = vmatprep.subr.mxu0 0.0
    %415 = vmatpush1.msra.mxu0 %v383
    %416 = vmatprep.subr.mxu0 0.0
    %417 = vmatpush1.msra.mxu0 %v378
    %418 = vmatprep.subr.mxu0 0.0
    %419 = vmatpush1.msra.mxu0 %v377
    %420 = vmatprep.subr.mxu0 0.0
    %421 = vmatpush1.msra.mxu0 %v372
    %422 = vmatprep.subr.mxu0 0.0
    %423 = vmatpush1.msra.mxu0 %v371
    %424 = vmatprep.subr.mxu0 0.0
    %425 = vmatpush1.msra.mxu0 %v366
    %426 = vmatprep.subr.mxu0 0.0
    %427 = vmatpush1.msra.mxu0 %v365
    %428 = vmatprep.subr.mxu0 0.0
    %429 = vmatpush1.msra.mxu0 %v360
    %430 = vmatprep.subr.mxu0 0.0
    %431 = vmatpush1.msra.mxu0 %v359
    %432 = vmatprep.subr.mxu0 0.0
    %433 = vmatpush1.msra.mxu0 %v354
    %434 = vmatprep.subr.mxu0 0.0
    %435 = vmatpush1.msra.mxu0 %v353
    %436 = vmatprep.subr.mxu0 0.0
    %437 = vmatpush1.msra.mxu0 %v348
    %438 = vmatprep.subr.mxu0 0.0
    %439 = vmatpush1.msra.mxu0 %v347
    %440 = vmatprep.subr.mxu0 0.0
    %441 = vmatpush1.msra.mxu0 %v110
    %442 = vmatprep.subr.mxu0 0.0
    %443 = vmatpush1.msra.mxu0 %v109
    %444 = vmatprep.subr.mxu0 0.0
    %445 = vmatpush2.msra.mxu0 0.0
    %446 = vmatprep.subr.mxu0 0.0
    %447 = vmatpush2.msra.mxu0 0.0
    %448 = vmatprep.subr.mxu0 0.0
    %449 = vmatpush2.msra.mxu0 0.0
    %450 = vmatprep.subr.mxu0 0.0
    %451 = vmatpush2.msra.mxu0 0.0
    %452 = vmatprep.subr.mxu0 0.0
    %453 = vmatpush2.msra.mxu0 0.0
    %454 = vmatprep.subr.mxu0 0.0
    %455 = vmatpush2.msra.mxu0 0.0
    %456 = vmatprep.subr.mxu0 0.0
    %457 = vmatpush2.msra.mxu0 0.0
    %458 = vmatprep.subr.mxu0 0.0
    %459 = vmatpush2.msra.mxu0 0.0
    %460 = vmatprep.subr.mxu0 0.0
    %461 = vmatpush2.msra.mxu0 0.0
    %462 = vmatprep.subr.mxu0 0.0
    %463 = vmatpush2.msra.mxu0 0.0
    %464 = vmatprep.subr.mxu0 0.0
    %465 = vmatpush2.msra.mxu0 0.0
    %466 = vmatprep.subr.mxu0 0.0
    %467 = vmatpush2.msra.mxu0 0.0
    %468 = vmatprep.subr.mxu0 0.0
    %469 = vmatpush2.msra.mxu0 0.0
    %470 = vmatprep.subr.mxu0 0.0
    %471 = vmatpush2.msra.mxu0 0.0
    %472 = vmatprep.subr.mxu0 0.0
    %473 = vmatpush2.msra.mxu0 %v390
    %474 = vmatprep.subr.mxu0 0.0
    %475 = vmatpush2.msra.mxu0 %v389
    %476 = vmatprep.mubr.f32.mxu0 %v401
    %477 = vmatmul.mubr.f32.gmra.mxu0 %v391
    %v478 = vpop.f32.mrf.mxu0
    %v479 = vadd.f32 0.0, %v478
    %v480 = vpop.f32.mrf.mxu0
    %481 = vmatprep.mubr.f32.mxu0 %v404
    %482 = vmatmul.mubr.f32.gmra.mxu0 %v393
    %v483 = vpop.f32.mrf.mxu0
    %v484 = vadd.f32 0.0, %v483
    %v485 = vpop.f32.mrf.mxu0
    %486 = vmatprep.mubr.f32.mxu0 %v407
    %487 = vmatmul.mubr.f32.gmra.mxu0 %v395
    %v488 = vpop.f32.mrf.mxu0
    %v489 = vadd.f32 0.0, %v488
    %v490 = vpop.f32.mrf.mxu0
    %491 = vmatprep.mubr.f32.mxu0 %v410
    %492 = vmatmul.mubr.f32.gmra.mxu0 %v397
    %v493 = vpop.f32.mrf.mxu0
    %v494 = vadd.f32 0.0, %v493
    %v495 = vpop.f32.mrf.mxu0
    %496 = vdwg.mxu0
    %v497 = vxor.u32 %v479, 2147483648
    %v498 = vxor.u32 %v484, 2147483648
    %v499 = vxor.u32 %v489, 2147483648
    %v500 = vxor.u32 %v494, 2147483648
    %v501 = vmul.f32 %v497, 1.442695
    %v502 = vpow.pop %v501
    %v503 = vmul.f32 %v498, 1.442695
    %v504 = vpow.pop %v503
    %v505 = vmul.f32 %v499, 1.442695
    %v506 = vpow.pop %v505
    %v507 = vmul.f32 %v500, 1.442695
    %v508 = vpow.pop %v507
    %v509 = vadd.f32 %v502, 1.0
    %v510 = vadd.f32 %v504, 1.0
    %v511 = vadd.f32 %v506, 1.0
    %v512 = vadd.f32 %v508, 1.0
    %v513 = vrcp.pop %v509
    %v514 = vmul.f32 1.0, %v513
    %v515 = vrcp.pop %v510
    %v516 = vmul.f32 1.0, %v515
    %v517 = vrcp.pop %v511
    %v518 = vmul.f32 1.0, %v517
    %v519 = vrcp.pop %v512
    %v520 = vmul.f32 1.0, %v519
    %v521 = vmul.f32 %v479, %v514
    %v522 = vmul.f32 %v484, %v516
    %v523 = vmul.f32 %v489, %v518
    %v524 = vmul.f32 %v494, %v520
    %vm525 = vcmp.ge.f32.partialorder %v479, -2.2
    %vm526 = vcmp.ge.f32.partialorder %v484, -2.2
    %vm527 = vcmp.ge.f32.partialorder %v489, -2.2
    %vm528 = vcmp.ge.f32.partialorder %v494, -2.2
    %v529 = vsel %vm525, 1, 0
    %v530 = vsel %vm526, 1, 0
    %v531 = vsel %vm527, 1, 0
    %v532 = vsel %vm528, 1, 0
    %v533 = vcvt.s32.f32 %v529
    %v534 = vcvt.s32.f32 %v530
    %v535 = vcvt.s32.f32 %v531
    %v536 = vcvt.s32.f32 %v532
    %vm537 = vcmp.ge.f32.partialorder %v479, -1.8
    %vm538 = vcmp.ge.f32.partialorder %v484, -1.8
    %vm539 = vcmp.ge.f32.partialorder %v489, -1.8
    %vm540 = vcmp.ge.f32.partialorder %v494, -1.8
    %v541 = vsel %vm537, 1, 0
    %v542 = vsel %vm538, 1, 0
    %v543 = vsel %vm539, 1, 0
    %v544 = vsel %vm540, 1, 0
    %v545 = vcvt.s32.f32 %v541
    %v546 = vcvt.s32.f32 %v542
    %v547 = vcvt.s32.f32 %v543
    %v548 = vcvt.s32.f32 %v544
    %vm549 = vcmp.ge.f32.partialorder %v479, -1.4
    %vm550 = vcmp.ge.f32.partialorder %v484, -1.4
    %vm551 = vcmp.ge.f32.partialorder %v489, -1.4
    %vm552 = vcmp.ge.f32.partialorder %v494, -1.4
    %v553 = vsel %vm549, 1, 0
    %v554 = vsel %vm550, 1, 0
    %v555 = vsel %vm551, 1, 0
    %v556 = vsel %vm552, 1, 0
    %v557 = vcvt.s32.f32 %v553
    %v558 = vcvt.s32.f32 %v554
    %v559 = vcvt.s32.f32 %v555
    %v560 = vcvt.s32.f32 %v556
    %vm561 = vcmp.ge.f32.partialorder %v479, -1.0
    %vm562 = vcmp.ge.f32.partialorder %v484, -1.0
    %vm563 = vcmp.ge.f32.partialorder %v489, -1.0
    %vm564 = vcmp.ge.f32.partialorder %v494, -1.0
    %v565 = vsel %vm561, 1, 0
    %v566 = vsel %vm562, 1, 0
    %v567 = vsel %vm563, 1, 0
    %v568 = vsel %vm564, 1, 0
    %v569 = vcvt.s32.f32 %v565
    %v570 = vcvt.s32.f32 %v566
    %v571 = vcvt.s32.f32 %v567
    %v572 = vcvt.s32.f32 %v568
    %vm573 = vcmp.ge.f32.partialorder %v479, -0.6
    %vm574 = vcmp.ge.f32.partialorder %v484, -0.6
    %vm575 = vcmp.ge.f32.partialorder %v489, -0.6
    %vm576 = vcmp.ge.f32.partialorder %v494, -0.6
    %v577 = vsel %vm573, 1, 0
    %v578 = vsel %vm574, 1, 0
    %v579 = vsel %vm575, 1, 0
    %v580 = vsel %vm576, 1, 0
    %v581 = vcvt.s32.f32 %v577
    %v582 = vcvt.s32.f32 %v578
    %v583 = vcvt.s32.f32 %v579
    %v584 = vcvt.s32.f32 %v580
    %vm585 = vcmp.ge.f32.partialorder %v479, -0.2
    %vm586 = vcmp.ge.f32.partialorder %v484, -0.2
    %vm587 = vcmp.ge.f32.partialorder %v489, -0.2
    %vm588 = vcmp.ge.f32.partialorder %v494, -0.2
    %v589 = vsel %vm585, 1, 0
    %v590 = vsel %vm586, 1, 0
    %v591 = vsel %vm587, 1, 0
    %v592 = vsel %vm588, 1, 0
    %v593 = vcvt.s32.f32 %v589
    %v594 = vcvt.s32.f32 %v590
    %v595 = vcvt.s32.f32 %v591
    %v596 = vcvt.s32.f32 %v592
    %vm597 = vcmp.ge.f32.partialorder %v479, 0.2
    %vm598 = vcmp.ge.f32.partialorder %v484, 0.2
    %vm599 = vcmp.ge.f32.partialorder %v489, 0.2
    %vm600 = vcmp.ge.f32.partialorder %v494, 0.2
    %v601 = vsel %vm597, 1, 0
    %v602 = vsel %vm598, 1, 0
    %v603 = vsel %vm599, 1, 0
    %v604 = vsel %vm600, 1, 0
    %v605 = vcvt.s32.f32 %v601
    %v606 = vcvt.s32.f32 %v602
    %v607 = vcvt.s32.f32 %v603
    %v608 = vcvt.s32.f32 %v604
    %vm609 = vcmp.ge.f32.partialorder %v479, 0.6
    %vm610 = vcmp.ge.f32.partialorder %v484, 0.6
    %vm611 = vcmp.ge.f32.partialorder %v489, 0.6
    %vm612 = vcmp.ge.f32.partialorder %v494, 0.6
    %v613 = vsel %vm609, 1, 0
    %v614 = vsel %vm610, 1, 0
    %v615 = vsel %vm611, 1, 0
    %v616 = vsel %vm612, 1, 0
    %v617 = vcvt.s32.f32 %v613
    %v618 = vcvt.s32.f32 %v614
    %v619 = vcvt.s32.f32 %v615
    %v620 = vcvt.s32.f32 %v616
    %vm621 = vcmp.ge.f32.partialorder %v479, 1.0
    %vm622 = vcmp.ge.f32.partialorder %v484, 1.0
    %vm623 = vcmp.ge.f32.partialorder %v489, 1.0
    %vm624 = vcmp.ge.f32.partialorder %v494, 1.0
    %v625 = vsel %vm621, 1, 0
    %v626 = vsel %vm622, 1, 0
    %v627 = vsel %vm623, 1, 0
    %v628 = vsel %vm624, 1, 0
    %v629 = vcvt.s32.f32 %v625
    %v630 = vcvt.s32.f32 %v626
    %v631 = vcvt.s32.f32 %v627
    %v632 = vcvt.s32.f32 %v628
    %vm633 = vcmp.ge.f32.partialorder %v479, 1.4
    %vm634 = vcmp.ge.f32.partialorder %v484, 1.4
    %vm635 = vcmp.ge.f32.partialorder %v489, 1.4
    %vm636 = vcmp.ge.f32.partialorder %v494, 1.4
    %v637 = vsel %vm633, 1, 0
    %v638 = vsel %vm634, 1, 0
    %v639 = vsel %vm635, 1, 0
    %v640 = vsel %vm636, 1, 0
    %v641 = vcvt.s32.f32 %v637
    %v642 = vcvt.s32.f32 %v638
    %v643 = vcvt.s32.f32 %v639
    %v644 = vcvt.s32.f32 %v640
    %vm645 = vcmp.ge.f32.partialorder %v479, 1.8
    %vm646 = vcmp.ge.f32.partialorder %v484, 1.8
    %vm647 = vcmp.ge.f32.partialorder %v489, 1.8
    %vm648 = vcmp.ge.f32.partialorder %v494, 1.8
    %v649 = vsel %vm645, 1, 0
    %v650 = vsel %vm646, 1, 0
    %v651 = vsel %vm647, 1, 0
    %v652 = vsel %vm648, 1, 0
    %v653 = vcvt.s32.f32 %v649
    %v654 = vcvt.s32.f32 %v650
    %v655 = vcvt.s32.f32 %v651
    %v656 = vcvt.s32.f32 %v652
    %vm657 = vcmp.ge.f32.partialorder %v479, 2.2
    %vm658 = vcmp.ge.f32.partialorder %v484, 2.2
    %vm659 = vcmp.ge.f32.partialorder %v489, 2.2
    %vm660 = vcmp.ge.f32.partialorder %v494, 2.2
    %v661 = vsel %vm657, 1, 0
    %v662 = vsel %vm658, 1, 0
    %v663 = vsel %vm659, 1, 0
    %v664 = vsel %vm660, 1, 0
    %v665 = vcvt.s32.f32 %v661
    %v666 = vcvt.s32.f32 %v662
    %v667 = vcvt.s32.f32 %v663
    %v668 = vcvt.s32.f32 %v664
    %v669 = vsub.f32 %v533, %v545
    %v670 = vsub.f32 %v534, %v546
    %v671 = vsub.f32 %v535, %v547
    %v672 = vsub.f32 %v536, %v548
    %v673 = vsub.f32 %v545, %v557
    %v674 = vsub.f32 %v546, %v558
    %v675 = vsub.f32 %v547, %v559
    %v676 = vsub.f32 %v548, %v560
    %v677 = vsub.f32 %v557, %v569
    %v678 = vsub.f32 %v558, %v570
    %v679 = vsub.f32 %v559, %v571
    %v680 = vsub.f32 %v560, %v572
    %v681 = vsub.f32 %v569, %v581
    %v682 = vsub.f32 %v570, %v582
    %v683 = vsub.f32 %v571, %v583
    %v684 = vsub.f32 %v572, %v584
    %v685 = vsub.f32 %v581, %v593
    %v686 = vsub.f32 %v582, %v594
    %v687 = vsub.f32 %v583, %v595
    %v688 = vsub.f32 %v584, %v596
    %v689 = vsub.f32 %v593, %v605
    %v690 = vsub.f32 %v594, %v606
    %v691 = vsub.f32 %v595, %v607
    %v692 = vsub.f32 %v596, %v608
    %v693 = vsub.f32 %v605, %v617
    %v694 = vsub.f32 %v606, %v618
    %v695 = vsub.f32 %v607, %v619
    %v696 = vsub.f32 %v608, %v620
    %v697 = vsub.f32 %v617, %v629
    %v698 = vsub.f32 %v618, %v630
    %v699 = vsub.f32 %v619, %v631
    %v700 = vsub.f32 %v620, %v632
    %v701 = vsub.f32 %v629, %v641
    %v702 = vsub.f32 %v630, %v642
    %v703 = vsub.f32 %v631, %v643
    %v704 = vsub.f32 %v632, %v644
    %v705 = vsub.f32 %v641, %v653
    %v706 = vsub.f32 %v642, %v654
    %v707 = vsub.f32 %v643, %v655
    %v708 = vsub.f32 %v644, %v656
    %v709 = vsub.f32 %v653, %v665
    %v710 = vsub.f32 %v654, %v666
    %v711 = vsub.f32 %v655, %v667
    %v712 = vsub.f32 %v656, %v668
    %v713 = vsub.f32 %v479, -2.2
    %v714 = vsub.f32 %v484, -2.2
    %v715 = vsub.f32 %v489, -2.2
    %v716 = vsub.f32 %v494, -2.2
    %v717 = vsub.f32 %v479, -1.8
    %v718 = vsub.f32 %v484, -1.8
    %v719 = vsub.f32 %v489, -1.8
    %v720 = vsub.f32 %v494, -1.8
    %v721 = vsub.f32 %v479, -1.4
    %v722 = vsub.f32 %v484, -1.4
    %v723 = vsub.f32 %v489, -1.4
    %v724 = vsub.f32 %v494, -1.4
    %v725 = vsub.f32 %v479, -1.0
    %v726 = vsub.f32 %v484, -1.0
    %v727 = vsub.f32 %v489, -1.0
    %v728 = vsub.f32 %v494, -1.0
    %v729 = vsub.f32 %v479, -0.6
    %v730 = vsub.f32 %v484, -0.6
    %v731 = vsub.f32 %v489, -0.6
    %v732 = vsub.f32 %v494, -0.6
    %v733 = vsub.f32 %v479, -0.2
    %v734 = vsub.f32 %v484, -0.2
    %v735 = vsub.f32 %v489, -0.2
    %v736 = vsub.f32 %v494, -0.2
    %v737 = vsub.f32 %v479, 0.2
    %v738 = vsub.f32 %v484, 0.2
    %v739 = vsub.f32 %v489, 0.2
    %v740 = vsub.f32 %v494, 0.2
    %v741 = vsub.f32 %v479, 0.6
    %v742 = vsub.f32 %v484, 0.6
    %v743 = vsub.f32 %v489, 0.6
    %v744 = vsub.f32 %v494, 0.6
    %v745 = vsub.f32 %v479, 1.0
    %v746 = vsub.f32 %v484, 1.0
    %v747 = vsub.f32 %v489, 1.0
    %v748 = vsub.f32 %v494, 1.0
    %v749 = vsub.f32 %v479, 1.4
    %v750 = vsub.f32 %v484, 1.4
    %v751 = vsub.f32 %v489, 1.4
    %v752 = vsub.f32 %v494, 1.4
    %v753 = vsub.f32 %v479, 1.8
    %v754 = vsub.f32 %v484, 1.8
    %v755 = vsub.f32 %v489, 1.8
    %v756 = vsub.f32 %v494, 1.8
    %v757 = vsub.f32 %v479, 2.2
    %v758 = vsub.f32 %v484, 2.2
    %v759 = vsub.f32 %v489, 2.2
    %v760 = vsub.f32 %v494, 2.2
    %v761 = vmul.f32 %v713, %v669
    %v762 = vmul.f32 %v714, %v670
    %v763 = vmul.f32 %v715, %v671
    %v764 = vmul.f32 %v716, %v672
    %v765 = vmul.f32 %v721, %v673
    %v766 = vmul.f32 %v722, %v674
    %v767 = vmul.f32 %v723, %v675
    %v768 = vmul.f32 %v724, %v676
    %v769 = vsub.f32 %v761, %v765
    %v770 = vsub.f32 %v762, %v766
    %v771 = vsub.f32 %v763, %v767
    %v772 = vsub.f32 %v764, %v768
    %v773 = vmul.f32 %v717, %v673
    %v774 = vmul.f32 %v718, %v674
    %v775 = vmul.f32 %v719, %v675
    %v776 = vmul.f32 %v720, %v676
    %v777 = vmul.f32 %v725, %v677
    %v778 = vmul.f32 %v726, %v678
    %v779 = vmul.f32 %v727, %v679
    %v780 = vmul.f32 %v728, %v680
    %v781 = vsub.f32 %v773, %v777
    %v782 = vsub.f32 %v774, %v778
    %v783 = vsub.f32 %v775, %v779
    %v784 = vsub.f32 %v776, %v780
    %v785 = vmul.f32 %v721, %v677
    %v786 = vmul.f32 %v722, %v678
    %v787 = vmul.f32 %v723, %v679
    %v788 = vmul.f32 %v724, %v680
    %v789 = vmul.f32 %v729, %v681
    %v790 = vmul.f32 %v730, %v682
    %v791 = vmul.f32 %v731, %v683
    %v792 = vmul.f32 %v732, %v684
    %v793 = vsub.f32 %v785, %v789
    %v794 = vsub.f32 %v786, %v790
    %v795 = vsub.f32 %v787, %v791
    %v796 = vsub.f32 %v788, %v792
    %v797 = vmul.f32 %v725, %v681
    %v798 = vmul.f32 %v726, %v682
    %v799 = vmul.f32 %v727, %v683
    %v800 = vmul.f32 %v728, %v684
    %v801 = vmul.f32 %v733, %v685
    %v802 = vmul.f32 %v734, %v686
    %v803 = vmul.f32 %v735, %v687
    %v804 = vmul.f32 %v736, %v688
    %v805 = vsub.f32 %v797, %v801
    %v806 = vsub.f32 %v798, %v802
    %v807 = vsub.f32 %v799, %v803
    %v808 = vsub.f32 %v800, %v804
    %v809 = vmul.f32 %v729, %v685
    %v810 = vmul.f32 %v730, %v686
    %v811 = vmul.f32 %v731, %v687
    %v812 = vmul.f32 %v732, %v688
    %v813 = vmul.f32 %v737, %v689
    %v814 = vmul.f32 %v738, %v690
    %v815 = vmul.f32 %v739, %v691
    %v816 = vmul.f32 %v740, %v692
    %v817 = vsub.f32 %v809, %v813
    %v818 = vsub.f32 %v810, %v814
    %v819 = vsub.f32 %v811, %v815
    %v820 = vsub.f32 %v812, %v816
    %v821 = vmul.f32 %v733, %v689
    %v822 = vmul.f32 %v734, %v690
    %v823 = vmul.f32 %v735, %v691
    %v824 = vmul.f32 %v736, %v692
    %v825 = vmul.f32 %v741, %v693
    %v826 = vmul.f32 %v742, %v694
    %v827 = vmul.f32 %v743, %v695
    %v828 = vmul.f32 %v744, %v696
    %v829 = vsub.f32 %v821, %v825
    %v830 = vsub.f32 %v822, %v826
    %v831 = vsub.f32 %v823, %v827
    %v832 = vsub.f32 %v824, %v828
    %v833 = vmul.f32 %v737, %v693
    %v834 = vmul.f32 %v738, %v694
    %v835 = vmul.f32 %v739, %v695
    %v836 = vmul.f32 %v740, %v696
    %v837 = vmul.f32 %v745, %v697
    %v838 = vmul.f32 %v746, %v698
    %v839 = vmul.f32 %v747, %v699
    %v840 = vmul.f32 %v748, %v700
    %v841 = vsub.f32 %v833, %v837
    %v842 = vsub.f32 %v834, %v838
    %v843 = vsub.f32 %v835, %v839
    %v844 = vsub.f32 %v836, %v840
    %v845 = vmul.f32 %v741, %v697
    %v846 = vmul.f32 %v742, %v698
    %v847 = vmul.f32 %v743, %v699
    %v848 = vmul.f32 %v744, %v700
    %v849 = vmul.f32 %v749, %v701
    %v850 = vmul.f32 %v750, %v702
    %v851 = vmul.f32 %v751, %v703
    %v852 = vmul.f32 %v752, %v704
    %v853 = vsub.f32 %v845, %v849
    %v854 = vsub.f32 %v846, %v850
    %v855 = vsub.f32 %v847, %v851
    %v856 = vsub.f32 %v848, %v852
    %v857 = vmul.f32 %v745, %v701
    %v858 = vmul.f32 %v746, %v702
    %v859 = vmul.f32 %v747, %v703
    %v860 = vmul.f32 %v748, %v704
    %v861 = vmul.f32 %v753, %v705
    %v862 = vmul.f32 %v754, %v706
    %v863 = vmul.f32 %v755, %v707
    %v864 = vmul.f32 %v756, %v708
    %v865 = vsub.f32 %v857, %v861
    %v866 = vsub.f32 %v858, %v862
    %v867 = vsub.f32 %v859, %v863
    %v868 = vsub.f32 %v860, %v864
    %v869 = vmul.f32 %v749, %v705
    %v870 = vmul.f32 %v750, %v706
    %v871 = vmul.f32 %v751, %v707
    %v872 = vmul.f32 %v752, %v708
    %v873 = vmul.f32 %v757, %v709
    %v874 = vmul.f32 %v758, %v710
    %v875 = vmul.f32 %v759, %v711
    %v876 = vmul.f32 %v760, %v712
    %v877 = vsub.f32 %v869, %v873
    %v878 = vsub.f32 %v870, %v874
    %v879 = vsub.f32 %v871, %v875
    %v880 = vsub.f32 %v872, %v876
    %v881 = vmul.f32 %v713, %v769
    %v882 = vmul.f32 %v714, %v770
    %v883 = vmul.f32 %v715, %v771
    %v884 = vmul.f32 %v716, %v772
    %v885 = vmul.f32 %v725, %v781
    %v886 = vmul.f32 %v726, %v782
    %v887 = vmul.f32 %v727, %v783
    %v888 = vmul.f32 %v728, %v784
    %v889 = vsub.f32 %v881, %v885
    %v890 = vsub.f32 %v882, %v886
    %v891 = vsub.f32 %v883, %v887
    %v892 = vsub.f32 %v884, %v888
    %v893 = vmul.f32 %v717, %v781
    %v894 = vmul.f32 %v718, %v782
    %v895 = vmul.f32 %v719, %v783
    %v896 = vmul.f32 %v720, %v784
    %v897 = vmul.f32 %v729, %v793
    %v898 = vmul.f32 %v730, %v794
    %v899 = vmul.f32 %v731, %v795
    %v900 = vmul.f32 %v732, %v796
    %v901 = vsub.f32 %v893, %v897
    %v902 = vsub.f32 %v894, %v898
    %v903 = vsub.f32 %v895, %v899
    %v904 = vsub.f32 %v896, %v900
    %v905 = vmul.f32 %v721, %v793
    %v906 = vmul.f32 %v722, %v794
    %v907 = vmul.f32 %v723, %v795
    %v908 = vmul.f32 %v724, %v796
    %v909 = vmul.f32 %v733, %v805
    %v910 = vmul.f32 %v734, %v806
    %v911 = vmul.f32 %v735, %v807
    %v912 = vmul.f32 %v736, %v808
    %v913 = vsub.f32 %v905, %v909
    %v914 = vsub.f32 %v906, %v910
    %v915 = vsub.f32 %v907, %v911
    %v916 = vsub.f32 %v908, %v912
    %v917 = vmul.f32 %v725, %v805
    %v918 = vmul.f32 %v726, %v806
    %v919 = vmul.f32 %v727, %v807
    %v920 = vmul.f32 %v728, %v808
    %v921 = vmul.f32 %v737, %v817
    %v922 = vmul.f32 %v738, %v818
    %v923 = vmul.f32 %v739, %v819
    %v924 = vmul.f32 %v740, %v820
    %v925 = vsub.f32 %v917, %v921
    %v926 = vsub.f32 %v918, %v922
    %v927 = vsub.f32 %v919, %v923
    %v928 = vsub.f32 %v920, %v924
    %v929 = vmul.f32 %v729, %v817
    %v930 = vmul.f32 %v730, %v818
    %v931 = vmul.f32 %v731, %v819
    %v932 = vmul.f32 %v732, %v820
    %v933 = vmul.f32 %v741, %v829
    %v934 = vmul.f32 %v742, %v830
    %v935 = vmul.f32 %v743, %v831
    %v936 = vmul.f32 %v744, %v832
    %v937 = vsub.f32 %v929, %v933
    %v938 = vsub.f32 %v930, %v934
    %v939 = vsub.f32 %v931, %v935
    %v940 = vsub.f32 %v932, %v936
    %v941 = vmul.f32 %v733, %v829
    %v942 = vmul.f32 %v734, %v830
    %v943 = vmul.f32 %v735, %v831
    %v944 = vmul.f32 %v736, %v832
    %v945 = vmul.f32 %v745, %v841
    %v946 = vmul.f32 %v746, %v842
    %v947 = vmul.f32 %v747, %v843
    %v948 = vmul.f32 %v748, %v844
    %v949 = vsub.f32 %v941, %v945
    %v950 = vsub.f32 %v942, %v946
    %v951 = vsub.f32 %v943, %v947
    %v952 = vsub.f32 %v944, %v948
    %v953 = vmul.f32 %v737, %v841
    %v954 = vmul.f32 %v738, %v842
    %v955 = vmul.f32 %v739, %v843
    %v956 = vmul.f32 %v740, %v844
    %v957 = vmul.f32 %v749, %v853
    %v958 = vmul.f32 %v750, %v854
    %v959 = vmul.f32 %v751, %v855
    %v960 = vmul.f32 %v752, %v856
    %v961 = vsub.f32 %v953, %v957
    %v962 = vsub.f32 %v954, %v958
    %v963 = vsub.f32 %v955, %v959
    %v964 = vsub.f32 %v956, %v960
    %v965 = vmul.f32 %v741, %v853
    %v966 = vmul.f32 %v742, %v854
    %v967 = vmul.f32 %v743, %v855
    %v968 = vmul.f32 %v744, %v856
    %v969 = vmul.f32 %v753, %v865
    %v970 = vmul.f32 %v754, %v866
    %v971 = vmul.f32 %v755, %v867
    %v972 = vmul.f32 %v756, %v868
    %v973 = vsub.f32 %v965, %v969
    %v974 = vsub.f32 %v966, %v970
    %v975 = vsub.f32 %v967, %v971
    %v976 = vsub.f32 %v968, %v972
    %v977 = vmul.f32 %v745, %v865
    %v978 = vmul.f32 %v746, %v866
    %v979 = vmul.f32 %v747, %v867
    %v980 = vmul.f32 %v748, %v868
    %v981 = vmul.f32 %v757, %v877
    %v982 = vmul.f32 %v758, %v878
    %v983 = vmul.f32 %v759, %v879
    %v984 = vmul.f32 %v760, %v880
    %v985 = vsub.f32 %v977, %v981
    %v986 = vsub.f32 %v978, %v982
    %v987 = vsub.f32 %v979, %v983
    %v988 = vsub.f32 %v980, %v984
    %v989 = vmul.f32 %v713, %v889
    %v990 = vmul.f32 %v714, %v890
    %v991 = vmul.f32 %v715, %v891
    %v992 = vmul.f32 %v716, %v892
    %v993 = vmul.f32 %v729, %v901
    %v994 = vmul.f32 %v730, %v902
    %v995 = vmul.f32 %v731, %v903
    %v996 = vmul.f32 %v732, %v904
    %v997 = vsub.f32 %v989, %v993
    %v998 = vsub.f32 %v990, %v994
    %v999 = vsub.f32 %v991, %v995
    %v1000 = vsub.f32 %v992, %v996
    %v1001 = vmul.f32 %v717, %v901
    %v1002 = vmul.f32 %v718, %v902
    %v1003 = vmul.f32 %v719, %v903
    %v1004 = vmul.f32 %v720, %v904
    %v1005 = vmul.f32 %v733, %v913
    %v1006 = vmul.f32 %v734, %v914
    %v1007 = vmul.f32 %v735, %v915
    %v1008 = vmul.f32 %v736, %v916
    %v1009 = vsub.f32 %v1001, %v1005
    %v1010 = vsub.f32 %v1002, %v1006
    %v1011 = vsub.f32 %v1003, %v1007
    %v1012 = vsub.f32 %v1004, %v1008
    %v1013 = vmul.f32 %v721, %v913
    %v1014 = vmul.f32 %v722, %v914
    %v1015 = vmul.f32 %v723, %v915
    %v1016 = vmul.f32 %v724, %v916
    %v1017 = vmul.f32 %v737, %v925
    %v1018 = vmul.f32 %v738, %v926
    %v1019 = vmul.f32 %v739, %v927
    %v1020 = vmul.f32 %v740, %v928
    %v1021 = vsub.f32 %v1013, %v1017
    %v1022 = vsub.f32 %v1014, %v1018
    %v1023 = vsub.f32 %v1015, %v1019
    %v1024 = vsub.f32 %v1016, %v1020
    %v1025 = vmul.f32 %v725, %v925
    %v1026 = vmul.f32 %v726, %v926
    %v1027 = vmul.f32 %v727, %v927
    %v1028 = vmul.f32 %v728, %v928
    %v1029 = vmul.f32 %v741, %v937
    %v1030 = vmul.f32 %v742, %v938
    %v1031 = vmul.f32 %v743, %v939
    %v1032 = vmul.f32 %v744, %v940
    %v1033 = vsub.f32 %v1025, %v1029
    %v1034 = vsub.f32 %v1026, %v1030
    %v1035 = vsub.f32 %v1027, %v1031
    %v1036 = vsub.f32 %v1028, %v1032
    %v1037 = vmul.f32 %v729, %v937
    %v1038 = vmul.f32 %v730, %v938
    %v1039 = vmul.f32 %v731, %v939
    %v1040 = vmul.f32 %v732, %v940
    %v1041 = vmul.f32 %v745, %v949
    %v1042 = vmul.f32 %v746, %v950
    %v1043 = vmul.f32 %v747, %v951
    %v1044 = vmul.f32 %v748, %v952
    %v1045 = vsub.f32 %v1037, %v1041
    %v1046 = vsub.f32 %v1038, %v1042
    %v1047 = vsub.f32 %v1039, %v1043
    %v1048 = vsub.f32 %v1040, %v1044
    %v1049 = vmul.f32 %v733, %v949
    %v1050 = vmul.f32 %v734, %v950
    %v1051 = vmul.f32 %v735, %v951
    %v1052 = vmul.f32 %v736, %v952
    %v1053 = vmul.f32 %v749, %v961
    %v1054 = vmul.f32 %v750, %v962
    %v1055 = vmul.f32 %v751, %v963
    %v1056 = vmul.f32 %v752, %v964
    %v1057 = vsub.f32 %v1049, %v1053
    %v1058 = vsub.f32 %v1050, %v1054
    %v1059 = vsub.f32 %v1051, %v1055
    %v1060 = vsub.f32 %v1052, %v1056
    %v1061 = vmul.f32 %v737, %v961
    %v1062 = vmul.f32 %v738, %v962
    %v1063 = vmul.f32 %v739, %v963
    %v1064 = vmul.f32 %v740, %v964
    %v1065 = vmul.f32 %v753, %v973
    %v1066 = vmul.f32 %v754, %v974
    %v1067 = vmul.f32 %v755, %v975
    %v1068 = vmul.f32 %v756, %v976
    %v1069 = vsub.f32 %v1061, %v1065
    %v1070 = vsub.f32 %v1062, %v1066
    %v1071 = vsub.f32 %v1063, %v1067
    %v1072 = vsub.f32 %v1064, %v1068
    %v1073 = vmul.f32 %v741, %v973
    %v1074 = vmul.f32 %v742, %v974
    %v1075 = vmul.f32 %v743, %v975
    %v1076 = vmul.f32 %v744, %v976
    %v1077 = vmul.f32 %v757, %v985
    %v1078 = vmul.f32 %v758, %v986
    %v1079 = vmul.f32 %v759, %v987
    %v1080 = vmul.f32 %v760, %v988
    %v1081 = vsub.f32 %v1073, %v1077
    %v1082 = vsub.f32 %v1074, %v1078
    %v1083 = vsub.f32 %v1075, %v1079
    %v1084 = vsub.f32 %v1076, %v1080
    %v1085 = vld [vmem:[#allocation5] sm:$0xff]
    %v1086 = vld [vmem:[#allocation5 + $0x8] sm:$0xff]
    %v1087 = vld [vmem:[#allocation5 + $0x10] sm:$0xff]
    %v1088 = vld [vmem:[#allocation5 + $0x18] sm:$0xff]
    %v1089 = vld [vmem:[#allocation5 + $0x20] sm:$0xff]
    %v1090 = vld [vmem:[#allocation5 + $0x28] sm:$0xff]
    %v1091 = vld [vmem:[#allocation5 + $0x30] sm:$0xff]
    %v1092 = vld [vmem:[#allocation5 + $0x38] sm:$0xff]
    %v1093 = vld [vmem:[#allocation5 + $0x40] sm:$0xff]
    %v1094 = vld [vmem:[#allocation5 + $0x48] sm:$0xff]
    %v1095 = vld [vmem:[#allocation5 + $0x50] sm:$0xff]
    %v1096 = vld [vmem:[#allocation5 + $0x58] sm:$0xff]
    %vm1097 = vcmask 261120
    %v1099 = vsel %vm1097, %v1087, 0
    %v1102 = vsel %vm1097, %v1090, 0
    %v1105 = vsel %vm1097, %v1093, 0
    %v1108 = vsel %vm1097, %v1096, 0
    %1110 = vmatprep.subr.mxu0 0.0
    %1111 = vmatpush1.msra.mxu0 %v1024
    %1112 = vmatprep.subr.mxu0 0.0
    %1113 = vmatpush1.msra.mxu0 %v1023
    %1114 = vmatprep.subr.mxu0 0.0
    %1115 = vmatpush1.msra.mxu0 %v1022
    %1116 = vmatprep.subr.mxu0 0.0
    %1117 = vmatpush1.msra.mxu0 %v1021
    %1118 = vmatprep.subr.mxu0 0.0
    %1119 = vmatpush1.msra.mxu0 %v1012
    %1120 = vmatprep.subr.mxu0 0.0
    %1121 = vmatpush1.msra.mxu0 %v1011
    %1122 = vmatprep.subr.mxu0 0.0
    %1123 = vmatpush1.msra.mxu0 %v1010
    %1124 = vmatprep.subr.mxu0 0.0
    %1125 = vmatpush1.msra.mxu0 %v1009
    %1126 = vmatprep.subr.mxu0 0.0
    %1127 = vmatpush1.msra.mxu0 %v1000
    %1128 = vmatprep.subr.mxu0 0.0
    %1129 = vmatpush1.msra.mxu0 %v999
    %1130 = vmatprep.subr.mxu0 0.0
    %1131 = vmatpush1.msra.mxu0 %v998
    %1132 = vmatprep.subr.mxu0 0.0
    %1133 = vmatpush1.msra.mxu0 %v997
    %1134 = vmatprep.subr.mxu0 0.0
    %1135 = vmatpush1.msra.mxu0 %v524
    %1136 = vmatprep.subr.mxu0 0.0
    %1137 = vmatpush1.msra.mxu0 %v523
    %1138 = vmatprep.subr.mxu0 0.0
    %1139 = vmatpush1.msra.mxu0 %v522
    %1140 = vmatprep.subr.mxu0 0.0
    %1141 = vmatpush1.msra.mxu0 %v521
    %1142 = vmatprep.subr.mxu0 0.0
    %1143 = vmatpush2.msra.mxu0 %v1072
    %1144 = vmatprep.subr.mxu0 0.0
    %1145 = vmatpush2.msra.mxu0 %v1071
    %1146 = vmatprep.subr.mxu0 0.0
    %1147 = vmatpush2.msra.mxu0 %v1070
    %1148 = vmatprep.subr.mxu0 0.0
    %1149 = vmatpush2.msra.mxu0 %v1069
    %1150 = vmatprep.subr.mxu0 0.0
    %1151 = vmatpush2.msra.mxu0 %v1060
    %1152 = vmatprep.subr.mxu0 0.0
    %1153 = vmatpush2.msra.mxu0 %v1059
    %1154 = vmatprep.subr.mxu0 0.0
    %1155 = vmatpush2.msra.mxu0 %v1058
    %1156 = vmatprep.subr.mxu0 0.0
    %1157 = vmatpush2.msra.mxu0 %v1057
    %1158 = vmatprep.subr.mxu0 0.0
    %1159 = vmatpush2.msra.mxu0 %v1048
    %1160 = vmatprep.subr.mxu0 0.0
    %1161 = vmatpush2.msra.mxu0 %v1047
    %1162 = vmatprep.subr.mxu0 0.0
    %1163 = vmatpush2.msra.mxu0 %v1046
    %1164 = vmatprep.subr.mxu0 0.0
    %1165 = vmatpush2.msra.mxu0 %v1045
    %1166 = vmatprep.subr.mxu0 0.0
    %1167 = vmatpush2.msra.mxu0 %v1036
    %1168 = vmatprep.subr.mxu0 0.0
    %1169 = vmatpush2.msra.mxu0 %v1035
    %1170 = vmatprep.subr.mxu0 0.0
    %1171 = vmatpush2.msra.mxu0 %v1034
    %1172 = vmatprep.subr.mxu0 0.0
    %1173 = vmatpush2.msra.mxu0 %v1033
    %1174 = vmatprep.mubr.f32.mxu0 %v1086
    %1175 = vmatmul.mubr.f32.gmra.mxu0 %v1085
    %v1176 = vpop.f32.mrf.mxu0
    %v1177 = vadd.f32 0.0, %v1176
    %v1178 = vpop.f32.mrf.mxu0
    %1179 = vmatprep.mubr.f32.mxu0 %v1089
    %1180 = vmatmul.mubr.f32.gmra.mxu0 %v1088
    %v1181 = vpop.f32.mrf.mxu0
    %v1182 = vadd.f32 0.0, %v1181
    %v1183 = vpop.f32.mrf.mxu0
    %1184 = vmatprep.mubr.f32.mxu0 %v1092
    %1185 = vmatmul.mubr.f32.gmra.mxu0 %v1091
    %v1186 = vpop.f32.mrf.mxu0
    %v1187 = vadd.f32 0.0, %v1186
    %v1188 = vpop.f32.mrf.mxu0
    %1189 = vmatprep.mubr.f32.mxu0 %v1095
    %1190 = vmatmul.mubr.f32.gmra.mxu0 %v1094
    %v1191 = vpop.f32.mrf.mxu0
    %v1192 = vadd.f32 0.0, %v1191
    %v1193 = vpop.f32.mrf.mxu0
    %1194 = vdwg.mxu0
    %1195 = vmatprep.subr.mxu0 0.0
    %1196 = vmatpush1.msra.mxu0 0.0
    %1197 = vmatprep.subr.mxu0 0.0
    %1198 = vmatpush1.msra.mxu0 0.0
    %1199 = vmatprep.subr.mxu0 0.0
    %1200 = vmatpush1.msra.mxu0 0.0
    %1201 = vmatprep.subr.mxu0 0.0
    %1202 = vmatpush1.msra.mxu0 0.0
    %1203 = vmatprep.subr.mxu0 0.0
    %1204 = vmatpush1.msra.mxu0 0.0
    %1205 = vmatprep.subr.mxu0 0.0
    %1206 = vmatpush1.msra.mxu0 0.0
    %1207 = vmatprep.subr.mxu0 0.0
    %1208 = vmatpush1.msra.mxu0 0.0
    %1209 = vmatprep.subr.mxu0 0.0
    %1210 = vmatpush1.msra.mxu0 0.0
    %1211 = vmatprep.subr.mxu0 0.0
    %1212 = vmatpush1.msra.mxu0 0.0
    %1213 = vmatprep.subr.mxu0 0.0
    %1214 = vmatpush1.msra.mxu0 0.0
    %1215 = vmatprep.subr.mxu0 0.0
    %1216 = vmatpush1.msra.mxu0 0.0
    %1217 = vmatprep.subr.mxu0 0.0
    %1218 = vmatpush1.msra.mxu0 0.0
    %1219 = vmatprep.subr.mxu0 0.0
    %1220 = vmatpush1.msra.mxu0 %v1084
    %1221 = vmatprep.subr.mxu0 0.0
    %1222 = vmatpush1.msra.mxu0 %v1083
    %1223 = vmatprep.subr.mxu0 0.0
    %1224 = vmatpush1.msra.mxu0 %v1082
    %1225 = vmatprep.subr.mxu0 0.0
    %1226 = vmatpush1.msra.mxu0 %v1081
    %1227 = vmatprep.subr.mxu0 0.0
    %1228 = vmatpush2.msra.mxu0 0.0
    %1229 = vmatprep.subr.mxu0 0.0
    %1230 = vmatpush2.msra.mxu0 0.0
    %1231 = vmatprep.subr.mxu0 0.0
    %1232 = vmatpush2.msra.mxu0 0.0
    %1233 = vmatprep.subr.mxu0 0.0
    %1234 = vmatpush2.msra.mxu0 0.0
    %1235 = vmatprep.subr.mxu0 0.0
    %1236 = vmatpush2.msra.mxu0 0.0
    %1237 = vmatprep.subr.mxu0 0.0
    %1238 = vmatpush2.msra.mxu0 0.0
    %1239 = vmatprep.subr.mxu0 0.0
    %1240 = vmatpush2.msra.mxu0 0.0
    %1241 = vmatprep.subr.mxu0 0.0
    %1242 = vmatpush2.msra.mxu0 0.0
    %1243 = vmatprep.subr.mxu0 0.0
    %1244 = vmatpush2.msra.mxu0 0.0
    %1245 = vmatprep.subr.mxu0 0.0
    %1246 = vmatpush2.msra.mxu0 0.0
    %1247 = vmatprep.subr.mxu0 0.0
    %1248 = vmatpush2.msra.mxu0 0.0
    %1249 = vmatprep.subr.mxu0 0.0
    %1250 = vmatpush2.msra.mxu0 0.0
    %1251 = vmatprep.subr.mxu0 0.0
    %1252 = vmatpush2.msra.mxu0 0.0
    %1253 = vmatprep.subr.mxu0 0.0
    %1254 = vmatpush2.msra.mxu0 0.0
    %1255 = vmatprep.subr.mxu0 0.0
    %1256 = vmatpush2.msra.mxu0 0.0
    %1257 = vmatprep.subr.mxu0 0.0
    %1258 = vmatpush2.msra.mxu0 0.0
    %1259 = vmatprep.mubr.f32.mxu0 0.0
    %1260 = vmatmul.mubr.f32.gmra.mxu0 %v1099
    %v1261 = vpop.f32.mrf.mxu0
    %v1262 = vadd.f32 %v1177, %v1261
    %v1263 = vpop.f32.mrf.mxu0
    %1264 = vmatprep.mubr.f32.mxu0 0.0
    %1265 = vmatmul.mubr.f32.gmra.mxu0 %v1102
    %v1266 = vpop.f32.mrf.mxu0
    %v1267 = vadd.f32 %v1182, %v1266
    %v1268 = vpop.f32.mrf.mxu0
    %1269 = vmatprep.mubr.f32.mxu0 0.0
    %1270 = vmatmul.mubr.f32.gmra.mxu0 %v1105
    %v1271 = vpop.f32.mrf.mxu0
    %v1272 = vadd.f32 %v1187, %v1271
    %v1273 = vpop.f32.mrf.mxu0
    %1274 = vmatprep.mubr.f32.mxu0 0.0
    %1275 = vmatmul.mubr.f32.gmra.mxu0 %v1108
    %v1276 = vpop.f32.mrf.mxu0
    %v1277 = vadd.f32 %v1192, %v1276
    %v1278 = vpop.f32.mrf.mxu0
    %1279 = vdwg.mxu0
    %v1280 = vxor.u32 %v1262, 2147483648
    %v1281 = vxor.u32 %v1267, 2147483648
    %v1282 = vxor.u32 %v1272, 2147483648
    %v1283 = vxor.u32 %v1277, 2147483648
    %v1284 = vmul.f32 %v1280, 1.442695
    %v1285 = vpow.pop %v1284
    %v1286 = vmul.f32 %v1281, 1.442695
    %v1287 = vpow.pop %v1286
    %v1288 = vmul.f32 %v1282, 1.442695
    %v1289 = vpow.pop %v1288
    %v1290 = vmul.f32 %v1283, 1.442695
    %v1291 = vpow.pop %v1290
    %v1292 = vadd.f32 %v1285, 1.0
    %v1293 = vadd.f32 %v1287, 1.0
    %v1294 = vadd.f32 %v1289, 1.0
    %v1295 = vadd.f32 %v1291, 1.0
    %v1296 = vrcp.pop %v1292
    %v1297 = vmul.f32 1.0, %v1296
    %v1298 = vrcp.pop %v1293
    %v1299 = vmul.f32 1.0, %v1298
    %v1300 = vrcp.pop %v1294
    %v1301 = vmul.f32 1.0, %v1300
    %v1302 = vrcp.pop %v1295
    %v1303 = vmul.f32 1.0, %v1302
    %v1304 = vmul.f32 %v1262, %v1297
    %v1305 = vmul.f32 %v1267, %v1299
    %v1306 = vmul.f32 %v1272, %v1301
    %v1307 = vmul.f32 %v1277, %v1303
    %vm1308 = vcmp.ge.f32.partialorder %v1262, -2.2
    %vm1309 = vcmp.ge.f32.partialorder %v1267, -2.2
    %vm1310 = vcmp.ge.f32.partialorder %v1272, -2.2
    %vm1311 = vcmp.ge.f32.partialorder %v1277, -2.2
    %v1312 = vsel %vm1308, 1, 0
    %v1313 = vsel %vm1309, 1, 0
    %v1314 = vsel %vm1310, 1, 0
    %v1315 = vsel %vm1311, 1, 0
    %v1316 = vcvt.s32.f32 %v1312
    %v1317 = vcvt.s32.f32 %v1313
    %v1318 = vcvt.s32.f32 %v1314
    %v1319 = vcvt.s32.f32 %v1315
    %vm1320 = vcmp.ge.f32.partialorder %v1262, -1.8
    %vm1321 = vcmp.ge.f32.partialorder %v1267, -1.8
    %vm1322 = vcmp.ge.f32.partialorder %v1272, -1.8
    %vm1323 = vcmp.ge.f32.partialorder %v1277, -1.8
    %v1324 = vsel %vm1320, 1, 0
    %v1325 = vsel %vm1321, 1, 0
    %v1326 = vsel %vm1322, 1, 0
    %v1327 = vsel %vm1323, 1, 0
    %v1328 = vcvt.s32.f32 %v1324
    %v1329 = vcvt.s32.f32 %v1325
    %v1330 = vcvt.s32.f32 %v1326
    %v1331 = vcvt.s32.f32 %v1327
    %vm1332 = vcmp.ge.f32.partialorder %v1262, -1.4
    %vm1333 = vcmp.ge.f32.partialorder %v1267, -1.4
    %vm1334 = vcmp.ge.f32.partialorder %v1272, -1.4
    %vm1335 = vcmp.ge.f32.partialorder %v1277, -1.4
    %v1336 = vsel %vm1332, 1, 0
    %v1337 = vsel %vm1333, 1, 0
    %v1338 = vsel %vm1334, 1, 0
    %v1339 = vsel %vm1335, 1, 0
    %v1340 = vcvt.s32.f32 %v1336
    %v1341 = vcvt.s32.f32 %v1337
    %v1342 = vcvt.s32.f32 %v1338
    %v1343 = vcvt.s32.f32 %v1339
    %vm1344 = vcmp.ge.f32.partialorder %v1262, -1.0
    %vm1345 = vcmp.ge.f32.partialorder %v1267, -1.0
    %vm1346 = vcmp.ge.f32.partialorder %v1272, -1.0
    %vm1347 = vcmp.ge.f32.partialorder %v1277, -1.0
    %v1348 = vsel %vm1344, 1, 0
    %v1349 = vsel %vm1345, 1, 0
    %v1350 = vsel %vm1346, 1, 0
    %v1351 = vsel %vm1347, 1, 0
    %v1352 = vcvt.s32.f32 %v1348
    %v1353 = vcvt.s32.f32 %v1349
    %v1354 = vcvt.s32.f32 %v1350
    %v1355 = vcvt.s32.f32 %v1351
    %vm1356 = vcmp.ge.f32.partialorder %v1262, -0.6
    %vm1357 = vcmp.ge.f32.partialorder %v1267, -0.6
    %vm1358 = vcmp.ge.f32.partialorder %v1272, -0.6
    %vm1359 = vcmp.ge.f32.partialorder %v1277, -0.6
    %v1360 = vsel %vm1356, 1, 0
    %v1361 = vsel %vm1357, 1, 0
    %v1362 = vsel %vm1358, 1, 0
    %v1363 = vsel %vm1359, 1, 0
    %v1364 = vcvt.s32.f32 %v1360
    %v1365 = vcvt.s32.f32 %v1361
    %v1366 = vcvt.s32.f32 %v1362
    %v1367 = vcvt.s32.f32 %v1363
    %vm1368 = vcmp.ge.f32.partialorder %v1262, -0.2
    %vm1369 = vcmp.ge.f32.partialorder %v1267, -0.2
    %vm1370 = vcmp.ge.f32.partialorder %v1272, -0.2
    %vm1371 = vcmp.ge.f32.partialorder %v1277, -0.2
    %v1372 = vsel %vm1368, 1, 0
    %v1373 = vsel %vm1369, 1, 0
    %v1374 = vsel %vm1370, 1, 0
    %v1375 = vsel %vm1371, 1, 0
    %v1376 = vcvt.s32.f32 %v1372
    %v1377 = vcvt.s32.f32 %v1373
    %v1378 = vcvt.s32.f32 %v1374
    %v1379 = vcvt.s32.f32 %v1375
    %vm1380 = vcmp.ge.f32.partialorder %v1262, 0.2
    %vm1381 = vcmp.ge.f32.partialorder %v1267, 0.2
    %vm1382 = vcmp.ge.f32.partialorder %v1272, 0.2
    %vm1383 = vcmp.ge.f32.partialorder %v1277, 0.2
    %v1384 = vsel %vm1380, 1, 0
    %v1385 = vsel %vm1381, 1, 0
    %v1386 = vsel %vm1382, 1, 0
    %v1387 = vsel %vm1383, 1, 0
    %v1388 = vcvt.s32.f32 %v1384
    %v1389 = vcvt.s32.f32 %v1385
    %v1390 = vcvt.s32.f32 %v1386
    %v1391 = vcvt.s32.f32 %v1387
    %vm1392 = vcmp.ge.f32.partialorder %v1262, 0.6
    %vm1393 = vcmp.ge.f32.partialorder %v1267, 0.6
    %vm1394 = vcmp.ge.f32.partialorder %v1272, 0.6
    %vm1395 = vcmp.ge.f32.partialorder %v1277, 0.6
    %v1396 = vsel %vm1392, 1, 0
    %v1397 = vsel %vm1393, 1, 0
    %v1398 = vsel %vm1394, 1, 0
    %v1399 = vsel %vm1395, 1, 0
    %v1400 = vcvt.s32.f32 %v1396
    %v1401 = vcvt.s32.f32 %v1397
    %v1402 = vcvt.s32.f32 %v1398
    %v1403 = vcvt.s32.f32 %v1399
    %vm1404 = vcmp.ge.f32.partialorder %v1262, 1.0
    %vm1405 = vcmp.ge.f32.partialorder %v1267, 1.0
    %vm1406 = vcmp.ge.f32.partialorder %v1272, 1.0
    %vm1407 = vcmp.ge.f32.partialorder %v1277, 1.0
    %v1408 = vsel %vm1404, 1, 0
    %v1409 = vsel %vm1405, 1, 0
    %v1410 = vsel %vm1406, 1, 0
    %v1411 = vsel %vm1407, 1, 0
    %v1412 = vcvt.s32.f32 %v1408
    %v1413 = vcvt.s32.f32 %v1409
    %v1414 = vcvt.s32.f32 %v1410
    %v1415 = vcvt.s32.f32 %v1411
    %vm1416 = vcmp.ge.f32.partialorder %v1262, 1.4
    %vm1417 = vcmp.ge.f32.partialorder %v1267, 1.4
    %vm1418 = vcmp.ge.f32.partialorder %v1272, 1.4
    %vm1419 = vcmp.ge.f32.partialorder %v1277, 1.4
    %v1420 = vsel %vm1416, 1, 0
    %v1421 = vsel %vm1417, 1, 0
    %v1422 = vsel %vm1418, 1, 0
    %v1423 = vsel %vm1419, 1, 0
    %v1424 = vcvt.s32.f32 %v1420
    %v1425 = vcvt.s32.f32 %v1421
    %v1426 = vcvt.s32.f32 %v1422
    %v1427 = vcvt.s32.f32 %v1423
    %vm1428 = vcmp.ge.f32.partialorder %v1262, 1.8
    %vm1429 = vcmp.ge.f32.partialorder %v1267, 1.8
    %vm1430 = vcmp.ge.f32.partialorder %v1272, 1.8
    %vm1431 = vcmp.ge.f32.partialorder %v1277, 1.8
    %v1432 = vsel %vm1428, 1, 0
    %v1433 = vsel %vm1429, 1, 0
    %v1434 = vsel %vm1430, 1, 0
    %v1435 = vsel %vm1431, 1, 0
    %v1436 = vcvt.s32.f32 %v1432
    %v1437 = vcvt.s32.f32 %v1433
    %v1438 = vcvt.s32.f32 %v1434
    %v1439 = vcvt.s32.f32 %v1435
    %vm1440 = vcmp.ge.f32.partialorder %v1262, 2.2
    %vm1441 = vcmp.ge.f32.partialorder %v1267, 2.2
    %vm1442 = vcmp.ge.f32.partialorder %v1272, 2.2
    %vm1443 = vcmp.ge.f32.partialorder %v1277, 2.2
    %v1444 = vsel %vm1440, 1, 0
    %v1445 = vsel %vm1441, 1, 0
    %v1446 = vsel %vm1442, 1, 0
    %v1447 = vsel %vm1443, 1, 0
    %v1448 = vcvt.s32.f32 %v1444
    %v1449 = vcvt.s32.f32 %v1445
    %v1450 = vcvt.s32.f32 %v1446
    %v1451 = vcvt.s32.f32 %v1447
    %v1452 = vsub.f32 %v1316, %v1328
    %v1453 = vsub.f32 %v1317, %v1329
    %v1454 = vsub.f32 %v1318, %v1330
    %v1455 = vsub.f32 %v1319, %v1331
    %v1456 = vsub.f32 %v1328, %v1340
    %v1457 = vsub.f32 %v1329, %v1341
    %v1458 = vsub.f32 %v1330, %v1342
    %v1459 = vsub.f32 %v1331, %v1343
    %v1460 = vsub.f32 %v1340, %v1352
    %v1461 = vsub.f32 %v1341, %v1353
    %v1462 = vsub.f32 %v1342, %v1354
    %v1463 = vsub.f32 %v1343, %v1355
    %v1464 = vsub.f32 %v1352, %v1364
    %v1465 = vsub.f32 %v1353, %v1365
    %v1466 = vsub.f32 %v1354, %v1366
    %v1467 = vsub.f32 %v1355, %v1367
    %v1468 = vsub.f32 %v1364, %v1376
    %v1469 = vsub.f32 %v1365, %v1377
    %v1470 = vsub.f32 %v1366, %v1378
    %v1471 = vsub.f32 %v1367, %v1379
    %v1472 = vsub.f32 %v1376, %v1388
    %v1473 = vsub.f32 %v1377, %v1389
    %v1474 = vsub.f32 %v1378, %v1390
    %v1475 = vsub.f32 %v1379, %v1391
    %v1476 = vsub.f32 %v1388, %v1400
    %v1477 = vsub.f32 %v1389, %v1401
    %v1478 = vsub.f32 %v1390, %v1402
    %v1479 = vsub.f32 %v1391, %v1403
    %v1480 = vsub.f32 %v1400, %v1412
    %v1481 = vsub.f32 %v1401, %v1413
    %v1482 = vsub.f32 %v1402, %v1414
    %v1483 = vsub.f32 %v1403, %v1415
    %v1484 = vsub.f32 %v1412, %v1424
    %v1485 = vsub.f32 %v1413, %v1425
    %v1486 = vsub.f32 %v1414, %v1426
    %v1487 = vsub.f32 %v1415, %v1427
    %v1488 = vsub.f32 %v1424, %v1436
    %v1489 = vsub.f32 %v1425, %v1437
    %v1490 = vsub.f32 %v1426, %v1438
    %v1491 = vsub.f32 %v1427, %v1439
    %v1492 = vsub.f32 %v1436, %v1448
    %v1493 = vsub.f32 %v1437, %v1449
    %v1494 = vsub.f32 %v1438, %v1450
    %v1495 = vsub.f32 %v1439, %v1451
    %v1496 = vsub.f32 %v1262, -2.2
    %v1497 = vsub.f32 %v1267, -2.2
    %v1498 = vsub.f32 %v1272, -2.2
    %v1499 = vsub.f32 %v1277, -2.2
    %v1500 = vsub.f32 %v1262, -1.8
    %v1501 = vsub.f32 %v1267, -1.8
    %v1502 = vsub.f32 %v1272, -1.8
    %v1503 = vsub.f32 %v1277, -1.8
    %v1504 = vsub.f32 %v1262, -1.4
    %v1505 = vsub.f32 %v1267, -1.4
    %v1506 = vsub.f32 %v1272, -1.4
    %v1507 = vsub.f32 %v1277, -1.4
    %v1508 = vsub.f32 %v1262, -1.0
    %v1509 = vsub.f32 %v1267, -1.0
    %v1510 = vsub.f32 %v1272, -1.0
    %v1511 = vsub.f32 %v1277, -1.0
    %v1512 = vsub.f32 %v1262, -0.6
    %v1513 = vsub.f32 %v1267, -0.6
    %v1514 = vsub.f32 %v1272, -0.6
    %v1515 = vsub.f32 %v1277, -0.6
    %v1516 = vsub.f32 %v1262, -0.2
    %v1517 = vsub.f32 %v1267, -0.2
    %v1518 = vsub.f32 %v1272, -0.2
    %v1519 = vsub.f32 %v1277, -0.2
    %v1520 = vsub.f32 %v1262, 0.2
    %v1521 = vsub.f32 %v1267, 0.2
    %v1522 = vsub.f32 %v1272, 0.2
    %v1523 = vsub.f32 %v1277, 0.2
    %v1524 = vsub.f32 %v1262, 0.6
    %v1525 = vsub.f32 %v1267, 0.6
    %v1526 = vsub.f32 %v1272, 0.6
    %v1527 = vsub.f32 %v1277, 0.6
    %v1528 = vsub.f32 %v1262, 1.0
    %v1529 = vsub.f32 %v1267, 1.0
    %v1530 = vsub.f32 %v1272, 1.0
    %v1531 = vsub.f32 %v1277, 1.0
    %v1532 = vsub.f32 %v1262, 1.4
    %v1533 = vsub.f32 %v1267, 1.4
    %v1534 = vsub.f32 %v1272, 1.4
    %v1535 = vsub.f32 %v1277, 1.4
    %v1536 = vsub.f32 %v1262, 1.8
    %v1537 = vsub.f32 %v1267, 1.8
    %v1538 = vsub.f32 %v1272, 1.8
    %v1539 = vsub.f32 %v1277, 1.8
    %v1540 = vsub.f32 %v1262, 2.2
    %v1541 = vsub.f32 %v1267, 2.2
    %v1542 = vsub.f32 %v1272, 2.2
    %v1543 = vsub.f32 %v1277, 2.2
    %v1544 = vmul.f32 %v1496, %v1452
    %v1545 = vmul.f32 %v1497, %v1453
    %v1546 = vmul.f32 %v1498, %v1454
    %v1547 = vmul.f32 %v1499, %v1455
    %v1548 = vmul.f32 %v1504, %v1456
    %v1549 = vmul.f32 %v1505, %v1457
    %v1550 = vmul.f32 %v1506, %v1458
    %v1551 = vmul.f32 %v1507, %v1459
    %v1552 = vsub.f32 %v1544, %v1548
    %v1553 = vsub.f32 %v1545, %v1549
    %v1554 = vsub.f32 %v1546, %v1550
    %v1555 = vsub.f32 %v1547, %v1551
    %v1556 = vmul.f32 %v1500, %v1456
    %v1557 = vmul.f32 %v1501, %v1457
    %v1558 = vmul.f32 %v1502, %v1458
    %v1559 = vmul.f32 %v1503, %v1459
    %v1560 = vmul.f32 %v1508, %v1460
    %v1561 = vmul.f32 %v1509, %v1461
    %v1562 = vmul.f32 %v1510, %v1462
    %v1563 = vmul.f32 %v1511, %v1463
    %v1564 = vsub.f32 %v1556, %v1560
    %v1565 = vsub.f32 %v1557, %v1561
    %v1566 = vsub.f32 %v1558, %v1562
    %v1567 = vsub.f32 %v1559, %v1563
    %v1568 = vmul.f32 %v1504, %v1460
    %v1569 = vmul.f32 %v1505, %v1461
    %v1570 = vmul.f32 %v1506, %v1462
    %v1571 = vmul.f32 %v1507, %v1463
    %v1572 = vmul.f32 %v1512, %v1464
    %v1573 = vmul.f32 %v1513, %v1465
    %v1574 = vmul.f32 %v1514, %v1466
    %v1575 = vmul.f32 %v1515, %v1467
    %v1576 = vsub.f32 %v1568, %v1572
    %v1577 = vsub.f32 %v1569, %v1573
    %v1578 = vsub.f32 %v1570, %v1574
    %v1579 = vsub.f32 %v1571, %v1575
    %v1580 = vmul.f32 %v1508, %v1464
    %v1581 = vmul.f32 %v1509, %v1465
    %v1582 = vmul.f32 %v1510, %v1466
    %v1583 = vmul.f32 %v1511, %v1467
    %v1584 = vmul.f32 %v1516, %v1468
    %v1585 = vmul.f32 %v1517, %v1469
    %v1586 = vmul.f32 %v1518, %v1470
    %v1587 = vmul.f32 %v1519, %v1471
    %v1588 = vsub.f32 %v1580, %v1584
    %v1589 = vsub.f32 %v1581, %v1585
    %v1590 = vsub.f32 %v1582, %v1586
    %v1591 = vsub.f32 %v1583, %v1587
    %v1592 = vmul.f32 %v1512, %v1468
    %v1593 = vmul.f32 %v1513, %v1469
    %v1594 = vmul.f32 %v1514, %v1470
    %v1595 = vmul.f32 %v1515, %v1471
    %v1596 = vmul.f32 %v1520, %v1472
    %v1597 = vmul.f32 %v1521, %v1473
    %v1598 = vmul.f32 %v1522, %v1474
    %v1599 = vmul.f32 %v1523, %v1475
    %v1600 = vsub.f32 %v1592, %v1596
    %v1601 = vsub.f32 %v1593, %v1597
    %v1602 = vsub.f32 %v1594, %v1598
    %v1603 = vsub.f32 %v1595, %v1599
    %v1604 = vmul.f32 %v1516, %v1472
    %v1605 = vmul.f32 %v1517, %v1473
    %v1606 = vmul.f32 %v1518, %v1474
    %v1607 = vmul.f32 %v1519, %v1475
    %v1608 = vmul.f32 %v1524, %v1476
    %v1609 = vmul.f32 %v1525, %v1477
    %v1610 = vmul.f32 %v1526, %v1478
    %v1611 = vmul.f32 %v1527, %v1479
    %v1612 = vsub.f32 %v1604, %v1608
    %v1613 = vsub.f32 %v1605, %v1609
    %v1614 = vsub.f32 %v1606, %v1610
    %v1615 = vsub.f32 %v1607, %v1611
    %v1616 = vmul.f32 %v1520, %v1476
    %v1617 = vmul.f32 %v1521, %v1477
    %v1618 = vmul.f32 %v1522, %v1478
    %v1619 = vmul.f32 %v1523, %v1479
    %v1620 = vmul.f32 %v1528, %v1480
    %v1621 = vmul.f32 %v1529, %v1481
    %v1622 = vmul.f32 %v1530, %v1482
    %v1623 = vmul.f32 %v1531, %v1483
    %v1624 = vsub.f32 %v1616, %v1620
    %v1625 = vsub.f32 %v1617, %v1621
    %v1626 = vsub.f32 %v1618, %v1622
    %v1627 = vsub.f32 %v1619, %v1623
    %v1628 = vmul.f32 %v1524, %v1480
    %v1629 = vmul.f32 %v1525, %v1481
    %v1630 = vmul.f32 %v1526, %v1482
    %v1631 = vmul.f32 %v1527, %v1483
    %v1632 = vmul.f32 %v1532, %v1484
    %v1633 = vmul.f32 %v1533, %v1485
    %v1634 = vmul.f32 %v1534, %v1486
    %v1635 = vmul.f32 %v1535, %v1487
    %v1636 = vsub.f32 %v1628, %v1632
    %v1637 = vsub.f32 %v1629, %v1633
    %v1638 = vsub.f32 %v1630, %v1634
    %v1639 = vsub.f32 %v1631, %v1635
    %v1640 = vmul.f32 %v1528, %v1484
    %v1641 = vmul.f32 %v1529, %v1485
    %v1642 = vmul.f32 %v1530, %v1486
    %v1643 = vmul.f32 %v1531, %v1487
    %v1644 = vmul.f32 %v1536, %v1488
    %v1645 = vmul.f32 %v1537, %v1489
    %v1646 = vmul.f32 %v1538, %v1490
    %v1647 = vmul.f32 %v1539, %v1491
    %v1648 = vsub.f32 %v1640, %v1644
    %v1649 = vsub.f32 %v1641, %v1645
    %v1650 = vsub.f32 %v1642, %v1646
    %v1651 = vsub.f32 %v1643, %v1647
    %v1652 = vmul.f32 %v1532, %v1488
    %v1653 = vmul.f32 %v1533, %v1489
    %v1654 = vmul.f32 %v1534, %v1490
    %v1655 = vmul.f32 %v1535, %v1491
    %v1656 = vmul.f32 %v1540, %v1492
    %v1657 = vmul.f32 %v1541, %v1493
    %v1658 = vmul.f32 %v1542, %v1494
    %v1659 = vmul.f32 %v1543, %v1495
    %v1660 = vsub.f32 %v1652, %v1656
    %v1661 = vsub.f32 %v1653, %v1657
    %v1662 = vsub.f32 %v1654, %v1658
    %v1663 = vsub.f32 %v1655, %v1659
    %v1664 = vmul.f32 %v1496, %v1552
    %v1665 = vmul.f32 %v1497, %v1553
    %v1666 = vmul.f32 %v1498, %v1554
    %v1667 = vmul.f32 %v1499, %v1555
    %v1668 = vmul.f32 %v1508, %v1564
    %v1669 = vmul.f32 %v1509, %v1565
    %v1670 = vmul.f32 %v1510, %v1566
    %v1671 = vmul.f32 %v1511, %v1567
    %v1672 = vsub.f32 %v1664, %v1668
    %v1673 = vsub.f32 %v1665, %v1669
    %v1674 = vsub.f32 %v1666, %v1670
    %v1675 = vsub.f32 %v1667, %v1671
    %v1676 = vmul.f32 %v1500, %v1564
    %v1677 = vmul.f32 %v1501, %v1565
    %v1678 = vmul.f32 %v1502, %v1566
    %v1679 = vmul.f32 %v1503, %v1567
    %v1680 = vmul.f32 %v1512, %v1576
    %v1681 = vmul.f32 %v1513, %v1577
    %v1682 = vmul.f32 %v1514, %v1578
    %v1683 = vmul.f32 %v1515, %v1579
    %v1684 = vsub.f32 %v1676, %v1680
    %v1685 = vsub.f32 %v1677, %v1681
    %v1686 = vsub.f32 %v1678, %v1682
    %v1687 = vsub.f32 %v1679, %v1683
    %v1688 = vmul.f32 %v1504, %v1576
    %v1689 = vmul.f32 %v1505, %v1577
    %v1690 = vmul.f32 %v1506, %v1578
    %v1691 = vmul.f32 %v1507, %v1579
    %v1692 = vmul.f32 %v1516, %v1588
    %v1693 = vmul.f32 %v1517, %v1589
    %v1694 = vmul.f32 %v1518, %v1590
    %v1695 = vmul.f32 %v1519, %v1591
    %v1696 = vsub.f32 %v1688, %v1692
    %v1697 = vsub.f32 %v1689, %v1693
    %v1698 = vsub.f32 %v1690, %v1694
    %v1699 = vsub.f32 %v1691, %v1695
    %v1700 = vmul.f32 %v1508, %v1588
    %v1701 = vmul.f32 %v1509, %v1589
    %v1702 = vmul.f32 %v1510, %v1590
    %v1703 = vmul.f32 %v1511, %v1591
    %v1704 = vmul.f32 %v1520, %v1600
    %v1705 = vmul.f32 %v1521, %v1601
    %v1706 = vmul.f32 %v1522, %v1602
    %v1707 = vmul.f32 %v1523, %v1603
    %v1708 = vsub.f32 %v1700, %v1704
    %v1709 = vsub.f32 %v1701, %v1705
    %v1710 = vsub.f32 %v1702, %v1706
    %v1711 = vsub.f32 %v1703, %v1707
    %v1712 = vmul.f32 %v1512, %v1600
    %v1713 = vmul.f32 %v1513, %v1601
    %v1714 = vmul.f32 %v1514, %v1602
    %v1715 = vmul.f32 %v1515, %v1603
    %v1716 = vmul.f32 %v1524, %v1612
    %v1717 = vmul.f32 %v1525, %v1613
    %v1718 = vmul.f32 %v1526, %v1614
    %v1719 = vmul.f32 %v1527, %v1615
    %v1720 = vsub.f32 %v1712, %v1716
    %v1721 = vsub.f32 %v1713, %v1717
    %v1722 = vsub.f32 %v1714, %v1718
    %v1723 = vsub.f32 %v1715, %v1719
    %v1724 = vmul.f32 %v1516, %v1612
    %v1725 = vmul.f32 %v1517, %v1613
    %v1726 = vmul.f32 %v1518, %v1614
    %v1727 = vmul.f32 %v1519, %v1615
    %v1728 = vmul.f32 %v1528, %v1624
    %v1729 = vmul.f32 %v1529, %v1625
    %v1730 = vmul.f32 %v1530, %v1626
    %v1731 = vmul.f32 %v1531, %v1627
    %v1732 = vsub.f32 %v1724, %v1728
    %v1733 = vsub.f32 %v1725, %v1729
    %v1734 = vsub.f32 %v1726, %v1730
    %v1735 = vsub.f32 %v1727, %v1731
    %v1736 = vmul.f32 %v1520, %v1624
    %v1737 = vmul.f32 %v1521, %v1625
    %v1738 = vmul.f32 %v1522, %v1626
    %v1739 = vmul.f32 %v1523, %v1627
    %v1740 = vmul.f32 %v1532, %v1636
    %v1741 = vmul.f32 %v1533, %v1637
    %v1742 = vmul.f32 %v1534, %v1638
    %v1743 = vmul.f32 %v1535, %v1639
    %v1744 = vsub.f32 %v1736, %v1740
    %v1745 = vsub.f32 %v1737, %v1741
    %v1746 = vsub.f32 %v1738, %v1742
    %v1747 = vsub.f32 %v1739, %v1743
    %v1748 = vmul.f32 %v1524, %v1636
    %v1749 = vmul.f32 %v1525, %v1637
    %v1750 = vmul.f32 %v1526, %v1638
    %v1751 = vmul.f32 %v1527, %v1639
    %v1752 = vmul.f32 %v1536, %v1648
    %v1753 = vmul.f32 %v1537, %v1649
    %v1754 = vmul.f32 %v1538, %v1650
    %v1755 = vmul.f32 %v1539, %v1651
    %v1756 = vsub.f32 %v1748, %v1752
    %v1757 = vsub.f32 %v1749, %v1753
    %v1758 = vsub.f32 %v1750, %v1754
    %v1759 = vsub.f32 %v1751, %v1755
    %v1760 = vmul.f32 %v1528, %v1648
    %v1761 = vmul.f32 %v1529, %v1649
    %v1762 = vmul.f32 %v1530, %v1650
    %v1763 = vmul.f32 %v1531, %v1651
    %v1764 = vmul.f32 %v1540, %v1660
    %v1765 = vmul.f32 %v1541, %v1661
    %v1766 = vmul.f32 %v1542, %v1662
    %v1767 = vmul.f32 %v1543, %v1663
    %v1768 = vsub.f32 %v1760, %v1764
    %v1769 = vsub.f32 %v1761, %v1765
    %v1770 = vsub.f32 %v1762, %v1766
    %v1771 = vsub.f32 %v1763, %v1767
    %v1772 = vmul.f32 %v1496, %v1672
    %v1773 = vmul.f32 %v1497, %v1673
    %v1774 = vmul.f32 %v1498, %v1674
    %v1775 = vmul.f32 %v1499, %v1675
    %v1776 = vmul.f32 %v1512, %v1684
    %v1777 = vmul.f32 %v1513, %v1685
    %v1778 = vmul.f32 %v1514, %v1686
    %v1779 = vmul.f32 %v1515, %v1687
    %v1780 = vsub.f32 %v1772, %v1776
    %v1781 = vsub.f32 %v1773, %v1777
    %v1782 = vsub.f32 %v1774, %v1778
    %v1783 = vsub.f32 %v1775, %v1779
    %v1784 = vmul.f32 %v1500, %v1684
    %v1785 = vmul.f32 %v1501, %v1685
    %v1786 = vmul.f32 %v1502, %v1686
    %v1787 = vmul.f32 %v1503, %v1687
    %v1788 = vmul.f32 %v1516, %v1696
    %v1789 = vmul.f32 %v1517, %v1697
    %v1790 = vmul.f32 %v1518, %v1698
    %v1791 = vmul.f32 %v1519, %v1699
    %v1792 = vsub.f32 %v1784, %v1788
    %v1793 = vsub.f32 %v1785, %v1789
    %v1794 = vsub.f32 %v1786, %v1790
    %v1795 = vsub.f32 %v1787, %v1791
    %v1796 = vmul.f32 %v1504, %v1696
    %v1797 = vmul.f32 %v1505, %v1697
    %v1798 = vmul.f32 %v1506, %v1698
    %v1799 = vmul.f32 %v1507, %v1699
    %v1800 = vmul.f32 %v1520, %v1708
    %v1801 = vmul.f32 %v1521, %v1709
    %v1802 = vmul.f32 %v1522, %v1710
    %v1803 = vmul.f32 %v1523, %v1711
    %v1804 = vsub.f32 %v1796, %v1800
    %v1805 = vsub.f32 %v1797, %v1801
    %v1806 = vsub.f32 %v1798, %v1802
    %v1807 = vsub.f32 %v1799, %v1803
    %v1808 = vmul.f32 %v1508, %v1708
    %v1809 = vmul.f32 %v1509, %v1709
    %v1810 = vmul.f32 %v1510, %v1710
    %v1811 = vmul.f32 %v1511, %v1711
    %v1812 = vmul.f32 %v1524, %v1720
    %v1813 = vmul.f32 %v1525, %v1721
    %v1814 = vmul.f32 %v1526, %v1722
    %v1815 = vmul.f32 %v1527, %v1723
    %v1816 = vsub.f32 %v1808, %v1812
    %v1817 = vsub.f32 %v1809, %v1813
    %v1818 = vsub.f32 %v1810, %v1814
    %v1819 = vsub.f32 %v1811, %v1815
    %v1820 = vmul.f32 %v1512, %v1720
    %v1821 = vmul.f32 %v1513, %v1721
    %v1822 = vmul.f32 %v1514, %v1722
    %v1823 = vmul.f32 %v1515, %v1723
    %v1824 = vmul.f32 %v1528, %v1732
    %v1825 = vmul.f32 %v1529, %v1733
    %v1826 = vmul.f32 %v1530, %v1734
    %v1827 = vmul.f32 %v1531, %v1735
    %v1828 = vsub.f32 %v1820, %v1824
    %v1829 = vsub.f32 %v1821, %v1825
    %v1830 = vsub.f32 %v1822, %v1826
    %v1831 = vsub.f32 %v1823, %v1827
    %v1832 = vmul.f32 %v1516, %v1732
    %v1833 = vmul.f32 %v1517, %v1733
    %v1834 = vmul.f32 %v1518, %v1734
    %v1835 = vmul.f32 %v1519, %v1735
    %v1836 = vmul.f32 %v1532, %v1744
    %v1837 = vmul.f32 %v1533, %v1745
    %v1838 = vmul.f32 %v1534, %v1746
    %v1839 = vmul.f32 %v1535, %v1747
    %v1840 = vsub.f32 %v1832, %v1836
    %v1841 = vsub.f32 %v1833, %v1837
    %v1842 = vsub.f32 %v1834, %v1838
    %v1843 = vsub.f32 %v1835, %v1839
    %v1844 = vmul.f32 %v1520, %v1744
    %v1845 = vmul.f32 %v1521, %v1745
    %v1846 = vmul.f32 %v1522, %v1746
    %v1847 = vmul.f32 %v1523, %v1747
    %v1848 = vmul.f32 %v1536, %v1756
    %v1849 = vmul.f32 %v1537, %v1757
    %v1850 = vmul.f32 %v1538, %v1758
    %v1851 = vmul.f32 %v1539, %v1759
    %v1852 = vsub.f32 %v1844, %v1848
    %v1853 = vsub.f32 %v1845, %v1849
    %v1854 = vsub.f32 %v1846, %v1850
    %v1855 = vsub.f32 %v1847, %v1851
    %v1856 = vmul.f32 %v1524, %v1756
    %v1857 = vmul.f32 %v1525, %v1757
    %v1858 = vmul.f32 %v1526, %v1758
    %v1859 = vmul.f32 %v1527, %v1759
    %v1860 = vmul.f32 %v1540, %v1768
    %v1861 = vmul.f32 %v1541, %v1769
    %v1862 = vmul.f32 %v1542, %v1770
    %v1863 = vmul.f32 %v1543, %v1771
    %v1864 = vsub.f32 %v1856, %v1860
    %v1865 = vsub.f32 %v1857, %v1861
    %v1866 = vsub.f32 %v1858, %v1862
    %v1867 = vsub.f32 %v1859, %v1863
    %v1868 = vld [vmem:[#allocation7] sm:$0xff]
    %v1869 = vld [vmem:[#allocation7 + $0x8] sm:$0xff]
    %v1870 = vld [vmem:[#allocation7 + $0x10] sm:$0xff]
    %v1871 = vld [vmem:[#allocation7 + $0x18] sm:$0xff]
    %v1872 = vld [vmem:[#allocation7 + $0x20] sm:$0xff]
    %v1873 = vld [vmem:[#allocation7 + $0x28] sm:$0xff]
    %v1874 = vld [vmem:[#allocation7 + $0x30] sm:$0xff]
    %v1875 = vld [vmem:[#allocation7 + $0x38] sm:$0xff]
    %v1876 = vld [vmem:[#allocation7 + $0x40] sm:$0xff]
    %v1877 = vld [vmem:[#allocation7 + $0x48] sm:$0xff]
    %v1878 = vld [vmem:[#allocation7 + $0x50] sm:$0xff]
    %v1879 = vld [vmem:[#allocation7 + $0x58] sm:$0xff]
    %v1881 = vsel %vm1097, %v1870, 0
    %v1884 = vsel %vm1097, %v1873, 0
    %v1887 = vsel %vm1097, %v1876, 0
    %v1890 = vsel %vm1097, %v1879, 0
    %1892 = vmatprep.subr.mxu0 0.0
    %1893 = vmatpush1.msra.mxu0 %v1807
    %1894 = vmatprep.subr.mxu0 0.0
    %1895 = vmatpush1.msra.mxu0 %v1806
    %1896 = vmatprep.subr.mxu0 0.0
    %1897 = vmatpush1.msra.mxu0 %v1805
    %1898 = vmatprep.subr.mxu0 0.0
    %1899 = vmatpush1.msra.mxu0 %v1804
    %1900 = vmatprep.subr.mxu0 0.0
    %1901 = vmatpush1.msra.mxu0 %v1795
    %1902 = vmatprep.subr.mxu0 0.0
    %1903 = vmatpush1.msra.mxu0 %v1794
    %1904 = vmatprep.subr.mxu0 0.0
    %1905 = vmatpush1.msra.mxu0 %v1793
    %1906 = vmatprep.subr.mxu0 0.0
    %1907 = vmatpush1.msra.mxu0 %v1792
    %1908 = vmatprep.subr.mxu0 0.0
    %1909 = vmatpush1.msra.mxu0 %v1783
    %1910 = vmatprep.subr.mxu0 0.0
    %1911 = vmatpush1.msra.mxu0 %v1782
    %1912 = vmatprep.subr.mxu0 0.0
    %1913 = vmatpush1.msra.mxu0 %v1781
    %1914 = vmatprep.subr.mxu0 0.0
    %1915 = vmatpush1.msra.mxu0 %v1780
    %1916 = vmatprep.subr.mxu0 0.0
    %1917 = vmatpush1.msra.mxu0 %v1307
    %1918 = vmatprep.subr.mxu0 0.0
    %1919 = vmatpush1.msra.mxu0 %v1306
    %1920 = vmatprep.subr.mxu0 0.0
    %1921 = vmatpush1.msra.mxu0 %v1305
    %1922 = vmatprep.subr.mxu0 0.0
    %1923 = vmatpush1.msra.mxu0 %v1304
    %1924 = vmatprep.subr.mxu0 0.0
    %1925 = vmatpush2.msra.mxu0 %v1855
    %1926 = vmatprep.subr.mxu0 0.0
    %1927 = vmatpush2.msra.mxu0 %v1854
    %1928 = vmatprep.subr.mxu0 0.0
    %1929 = vmatpush2.msra.mxu0 %v1853
    %1930 = vmatprep.subr.mxu0 0.0
    %1931 = vmatpush2.msra.mxu0 %v1852
    %1932 = vmatprep.subr.mxu0 0.0
    %1933 = vmatpush2.msra.mxu0 %v1843
    %1934 = vmatprep.subr.mxu0 0.0
    %1935 = vmatpush2.msra.mxu0 %v1842
    %1936 = vmatprep.subr.mxu0 0.0
    %1937 = vmatpush2.msra.mxu0 %v1841
    %1938 = vmatprep.subr.mxu0 0.0
    %1939 = vmatpush2.msra.mxu0 %v1840
    %1940 = vmatprep.subr.mxu0 0.0
    %1941 = vmatpush2.msra.mxu0 %v1831
    %1942 = vmatprep.subr.mxu0 0.0
    %1943 = vmatpush2.msra.mxu0 %v1830
    %1944 = vmatprep.subr.mxu0 0.0
    %1945 = vmatpush2.msra.mxu0 %v1829
    %1946 = vmatprep.subr.mxu0 0.0
    %1947 = vmatpush2.msra.mxu0 %v1828
    %1948 = vmatprep.subr.mxu0 0.0
    %1949 = vmatpush2.msra.mxu0 %v1819
    %1950 = vmatprep.subr.mxu0 0.0
    %1951 = vmatpush2.msra.mxu0 %v1818
    %1952 = vmatprep.subr.mxu0 0.0
    %1953 = vmatpush2.msra.mxu0 %v1817
    %1954 = vmatprep.subr.mxu0 0.0
    %1955 = vmatpush2.msra.mxu0 %v1816
    %1956 = vmatprep.mubr.f32.mxu0 %v1869
    %1957 = vmatmul.mubr.f32.gmra.mxu0 %v1868
    %v1958 = vpop.f32.mrf.mxu0
    %v1959 = vadd.f32 0.0, %v1958
    %v1960 = vpop.f32.mrf.mxu0
    %1961 = vmatprep.mubr.f32.mxu0 %v1872
    %1962 = vmatmul.mubr.f32.gmra.mxu0 %v1871
    %v1963 = vpop.f32.mrf.mxu0
    %v1964 = vadd.f32 0.0, %v1963
    %v1965 = vpop.f32.mrf.mxu0
    %1966 = vmatprep.mubr.f32.mxu0 %v1875
    %1967 = vmatmul.mubr.f32.gmra.mxu0 %v1874
    %v1968 = vpop.f32.mrf.mxu0
    %v1969 = vadd.f32 0.0, %v1968
    %v1970 = vpop.f32.mrf.mxu0
    %1971 = vmatprep.mubr.f32.mxu0 %v1878
    %1972 = vmatmul.mubr.f32.gmra.mxu0 %v1877
    %v1973 = vpop.f32.mrf.mxu0
    %v1974 = vadd.f32 0.0, %v1973
    %v1975 = vpop.f32.mrf.mxu0
    %1976 = vdwg.mxu0
    %1977 = vmatprep.subr.mxu0 0.0
    %1978 = vmatpush1.msra.mxu0 0.0
    %1979 = vmatprep.subr.mxu0 0.0
    %1980 = vmatpush1.msra.mxu0 0.0
    %1981 = vmatprep.subr.mxu0 0.0
    %1982 = vmatpush1.msra.mxu0 0.0
    %1983 = vmatprep.subr.mxu0 0.0
    %1984 = vmatpush1.msra.mxu0 0.0
    %1985 = vmatprep.subr.mxu0 0.0
    %1986 = vmatpush1.msra.mxu0 0.0
    %1987 = vmatprep.subr.mxu0 0.0
    %1988 = vmatpush1.msra.mxu0 0.0
    %1989 = vmatprep.subr.mxu0 0.0
    %1990 = vmatpush1.msra.mxu0 0.0
    %1991 = vmatprep.subr.mxu0 0.0
    %1992 = vmatpush1.msra.mxu0 0.0
    %1993 = vmatprep.subr.mxu0 0.0
    %1994 = vmatpush1.msra.mxu0 0.0
    %1995 = vmatprep.subr.mxu0 0.0
    %1996 = vmatpush1.msra.mxu0 0.0
    %1997 = vmatprep.subr.mxu0 0.0
    %1998 = vmatpush1.msra.mxu0 0.0
    %1999 = vmatprep.subr.mxu0 0.0
    %2000 = vmatpush1.msra.mxu0 0.0
    %2001 = vmatprep.subr.mxu0 0.0
    %2002 = vmatpush1.msra.mxu0 %v1867
    %2003 = vmatprep.subr.mxu0 0.0
    %2004 = vmatpush1.msra.mxu0 %v1866
    %2005 = vmatprep.subr.mxu0 0.0
    %2006 = vmatpush1.msra.mxu0 %v1865
    %2007 = vmatprep.subr.mxu0 0.0
    %2008 = vmatpush1.msra.mxu0 %v1864
    %2009 = vmatprep.subr.mxu0 0.0
    %2010 = vmatpush2.msra.mxu0 0.0
    %2011 = vmatprep.subr.mxu0 0.0
    %2012 = vmatpush2.msra.mxu0 0.0
    %2013 = vmatprep.subr.mxu0 0.0
    %2014 = vmatpush2.msra.mxu0 0.0
    %2015 = vmatprep.subr.mxu0 0.0
    %2016 = vmatpush2.msra.mxu0 0.0
    %2017 = vmatprep.subr.mxu0 0.0
    %2018 = vmatpush2.msra.mxu0 0.0
    %2019 = vmatprep.subr.mxu0 0.0
    %2020 = vmatpush2.msra.mxu0 0.0
    %2021 = vmatprep.subr.mxu0 0.0
    %2022 = vmatpush2.msra.mxu0 0.0
    %2023 = vmatprep.subr.mxu0 0.0
    %2024 = vmatpush2.msra.mxu0 0.0
    %2025 = vmatprep.subr.mxu0 0.0
    %2026 = vmatpush2.msra.mxu0 0.0
    %2027 = vmatprep.subr.mxu0 0.0
    %2028 = vmatpush2.msra.mxu0 0.0
    %2029 = vmatprep.subr.mxu0 0.0
    %2030 = vmatpush2.msra.mxu0 0.0
    %2031 = vmatprep.subr.mxu0 0.0
    %2032 = vmatpush2.msra.mxu0 0.0
    %2033 = vmatprep.subr.mxu0 0.0
    %2034 = vmatpush2.msra.mxu0 0.0
    %2035 = vmatprep.subr.mxu0 0.0
    %2036 = vmatpush2.msra.mxu0 0.0
    %2037 = vmatprep.subr.mxu0 0.0
    %2038 = vmatpush2.msra.mxu0 0.0
    %2039 = vmatprep.subr.mxu0 0.0
    %2040 = vmatpush2.msra.mxu0 0.0
    %2041 = vmatprep.mubr.f32.mxu0 0.0
    %2042 = vmatmul.mubr.f32.gmra.mxu0 %v1881
    %v2043 = vpop.f32.mrf.mxu0
    %v2044 = vadd.f32 %v1959, %v2043
    %v2045 = vpop.f32.mrf.mxu0
    %2046 = vmatprep.mubr.f32.mxu0 0.0
    %2047 = vmatmul.mubr.f32.gmra.mxu0 %v1884
    %v2048 = vpop.f32.mrf.mxu0
    %v2049 = vadd.f32 %v1964, %v2048
    %v2050 = vpop.f32.mrf.mxu0
    %2051 = vmatprep.mubr.f32.mxu0 0.0
    %2052 = vmatmul.mubr.f32.gmra.mxu0 %v1887
    %v2053 = vpop.f32.mrf.mxu0
    %v2054 = vadd.f32 %v1969, %v2053
    %v2055 = vpop.f32.mrf.mxu0
    %2056 = vmatprep.mubr.f32.mxu0 0.0
    %2057 = vmatmul.mubr.f32.gmra.mxu0 %v1890
    %v2058 = vpop.f32.mrf.mxu0
    %v2059 = vadd.f32 %v1974, %v2058
    %v2060 = vpop.f32.mrf.mxu0
    %2061 = vdwg.mxu0
    %v2062 = vxor.u32 %v2044, 2147483648
    %v2063 = vxor.u32 %v2049, 2147483648
    %v2064 = vxor.u32 %v2054, 2147483648
    %v2065 = vxor.u32 %v2059, 2147483648
    %v2066 = vmul.f32 %v2062, 1.442695
    %v2067 = vpow.pop %v2066
    %v2068 = vmul.f32 %v2063, 1.442695
    %v2069 = vpow.pop %v2068
    %v2070 = vmul.f32 %v2064, 1.442695
    %v2071 = vpow.pop %v2070
    %v2072 = vmul.f32 %v2065, 1.442695
    %v2073 = vpow.pop %v2072
    %v2074 = vadd.f32 %v2067, 1.0
    %v2075 = vadd.f32 %v2069, 1.0
    %v2076 = vadd.f32 %v2071, 1.0
    %v2077 = vadd.f32 %v2073, 1.0
    %v2078 = vrcp.pop %v2074
    %v2079 = vmul.f32 1.0, %v2078
    %v2080 = vrcp.pop %v2075
    %v2081 = vmul.f32 1.0, %v2080
    %v2082 = vrcp.pop %v2076
    %v2083 = vmul.f32 1.0, %v2082
    %v2084 = vrcp.pop %v2077
    %v2085 = vmul.f32 1.0, %v2084
    %v2086 = vmul.f32 %v2044, %v2079
    %v2087 = vmul.f32 %v2049, %v2081
    %v2088 = vmul.f32 %v2054, %v2083
    %v2089 = vmul.f32 %v2059, %v2085
    %vm2090 = vcmp.ge.f32.partialorder %v2044, -2.2
    %vm2091 = vcmp.ge.f32.partialorder %v2049, -2.2
    %vm2092 = vcmp.ge.f32.partialorder %v2054, -2.2
    %vm2093 = vcmp.ge.f32.partialorder %v2059, -2.2
    %v2094 = vsel %vm2090, 1, 0
    %v2095 = vsel %vm2091, 1, 0
    %v2096 = vsel %vm2092, 1, 0
    %v2097 = vsel %vm2093, 1, 0
    %v2098 = vcvt.s32.f32 %v2094
    %v2099 = vcvt.s32.f32 %v2095
    %v2100 = vcvt.s32.f32 %v2096
    %v2101 = vcvt.s32.f32 %v2097
    %vm2102 = vcmp.ge.f32.partialorder %v2044, -1.8
    %vm2103 = vcmp.ge.f32.partialorder %v2049, -1.8
    %vm2104 = vcmp.ge.f32.partialorder %v2054, -1.8
    %vm2105 = vcmp.ge.f32.partialorder %v2059, -1.8
    %v2106 = vsel %vm2102, 1, 0
    %v2107 = vsel %vm2103, 1, 0
    %v2108 = vsel %vm2104, 1, 0
    %v2109 = vsel %vm2105, 1, 0
    %v2110 = vcvt.s32.f32 %v2106
    %v2111 = vcvt.s32.f32 %v2107
    %v2112 = vcvt.s32.f32 %v2108
    %v2113 = vcvt.s32.f32 %v2109
    %vm2114 = vcmp.ge.f32.partialorder %v2044, -1.4
    %vm2115 = vcmp.ge.f32.partialorder %v2049, -1.4
    %vm2116 = vcmp.ge.f32.partialorder %v2054, -1.4
    %vm2117 = vcmp.ge.f32.partialorder %v2059, -1.4
    %v2118 = vsel %vm2114, 1, 0
    %v2119 = vsel %vm2115, 1, 0
    %v2120 = vsel %vm2116, 1, 0
    %v2121 = vsel %vm2117, 1, 0
    %v2122 = vcvt.s32.f32 %v2118
    %v2123 = vcvt.s32.f32 %v2119
    %v2124 = vcvt.s32.f32 %v2120
    %v2125 = vcvt.s32.f32 %v2121
    %vm2126 = vcmp.ge.f32.partialorder %v2044, -1.0
    %vm2127 = vcmp.ge.f32.partialorder %v2049, -1.0
    %vm2128 = vcmp.ge.f32.partialorder %v2054, -1.0
    %vm2129 = vcmp.ge.f32.partialorder %v2059, -1.0
    %v2130 = vsel %vm2126, 1, 0
    %v2131 = vsel %vm2127, 1, 0
    %v2132 = vsel %vm2128, 1, 0
    %v2133 = vsel %vm2129, 1, 0
    %v2134 = vcvt.s32.f32 %v2130
    %v2135 = vcvt.s32.f32 %v2131
    %v2136 = vcvt.s32.f32 %v2132
    %v2137 = vcvt.s32.f32 %v2133
    %vm2138 = vcmp.ge.f32.partialorder %v2044, -0.6
    %vm2139 = vcmp.ge.f32.partialorder %v2049, -0.6
    %vm2140 = vcmp.ge.f32.partialorder %v2054, -0.6
    %vm2141 = vcmp.ge.f32.partialorder %v2059, -0.6
    %v2142 = vsel %vm2138, 1, 0
    %v2143 = vsel %vm2139, 1, 0
    %v2144 = vsel %vm2140, 1, 0
    %v2145 = vsel %vm2141, 1, 0
    %v2146 = vcvt.s32.f32 %v2142
    %v2147 = vcvt.s32.f32 %v2143
    %v2148 = vcvt.s32.f32 %v2144
    %v2149 = vcvt.s32.f32 %v2145
    %vm2150 = vcmp.ge.f32.partialorder %v2044, -0.2
    %vm2151 = vcmp.ge.f32.partialorder %v2049, -0.2
    %vm2152 = vcmp.ge.f32.partialorder %v2054, -0.2
    %vm2153 = vcmp.ge.f32.partialorder %v2059, -0.2
    %v2154 = vsel %vm2150, 1, 0
    %v2155 = vsel %vm2151, 1, 0
    %v2156 = vsel %vm2152, 1, 0
    %v2157 = vsel %vm2153, 1, 0
    %v2158 = vcvt.s32.f32 %v2154
    %v2159 = vcvt.s32.f32 %v2155
    %v2160 = vcvt.s32.f32 %v2156
    %v2161 = vcvt.s32.f32 %v2157
    %vm2162 = vcmp.ge.f32.partialorder %v2044, 0.2
    %vm2163 = vcmp.ge.f32.partialorder %v2049, 0.2
    %vm2164 = vcmp.ge.f32.partialorder %v2054, 0.2
    %vm2165 = vcmp.ge.f32.partialorder %v2059, 0.2
    %v2166 = vsel %vm2162, 1, 0
    %v2167 = vsel %vm2163, 1, 0
    %v2168 = vsel %vm2164, 1, 0
    %v2169 = vsel %vm2165, 1, 0
    %v2170 = vcvt.s32.f32 %v2166
    %v2171 = vcvt.s32.f32 %v2167
    %v2172 = vcvt.s32.f32 %v2168
    %v2173 = vcvt.s32.f32 %v2169
    %vm2174 = vcmp.ge.f32.partialorder %v2044, 0.6
    %vm2175 = vcmp.ge.f32.partialorder %v2049, 0.6
    %vm2176 = vcmp.ge.f32.partialorder %v2054, 0.6
    %vm2177 = vcmp.ge.f32.partialorder %v2059, 0.6
    %v2178 = vsel %vm2174, 1, 0
    %v2179 = vsel %vm2175, 1, 0
    %v2180 = vsel %vm2176, 1, 0
    %v2181 = vsel %vm2177, 1, 0
    %v2182 = vcvt.s32.f32 %v2178
    %v2183 = vcvt.s32.f32 %v2179
    %v2184 = vcvt.s32.f32 %v2180
    %v2185 = vcvt.s32.f32 %v2181
    %vm2186 = vcmp.ge.f32.partialorder %v2044, 1.0
    %vm2187 = vcmp.ge.f32.partialorder %v2049, 1.0
    %vm2188 = vcmp.ge.f32.partialorder %v2054, 1.0
    %vm2189 = vcmp.ge.f32.partialorder %v2059, 1.0
    %v2190 = vsel %vm2186, 1, 0
    %v2191 = vsel %vm2187, 1, 0
    %v2192 = vsel %vm2188, 1, 0
    %v2193 = vsel %vm2189, 1, 0
    %v2194 = vcvt.s32.f32 %v2190
    %v2195 = vcvt.s32.f32 %v2191
    %v2196 = vcvt.s32.f32 %v2192
    %v2197 = vcvt.s32.f32 %v2193
    %vm2198 = vcmp.ge.f32.partialorder %v2044, 1.4
    %vm2199 = vcmp.ge.f32.partialorder %v2049, 1.4
    %vm2200 = vcmp.ge.f32.partialorder %v2054, 1.4
    %vm2201 = vcmp.ge.f32.partialorder %v2059, 1.4
    %v2202 = vsel %vm2198, 1, 0
    %v2203 = vsel %vm2199, 1, 0
    %v2204 = vsel %vm2200, 1, 0
    %v2205 = vsel %vm2201, 1, 0
    %v2206 = vcvt.s32.f32 %v2202
    %v2207 = vcvt.s32.f32 %v2203
    %v2208 = vcvt.s32.f32 %v2204
    %v2209 = vcvt.s32.f32 %v2205
    %vm2210 = vcmp.ge.f32.partialorder %v2044, 1.8
    %vm2211 = vcmp.ge.f32.partialorder %v2049, 1.8
    %vm2212 = vcmp.ge.f32.partialorder %v2054, 1.8
    %vm2213 = vcmp.ge.f32.partialorder %v2059, 1.8
    %v2214 = vsel %vm2210, 1, 0
    %v2215 = vsel %vm2211, 1, 0
    %v2216 = vsel %vm2212, 1, 0
    %v2217 = vsel %vm2213, 1, 0
    %v2218 = vcvt.s32.f32 %v2214
    %v2219 = vcvt.s32.f32 %v2215
    %v2220 = vcvt.s32.f32 %v2216
    %v2221 = vcvt.s32.f32 %v2217
    %vm2222 = vcmp.ge.f32.partialorder %v2044, 2.2
    %vm2223 = vcmp.ge.f32.partialorder %v2049, 2.2
    %vm2224 = vcmp.ge.f32.partialorder %v2054, 2.2
    %vm2225 = vcmp.ge.f32.partialorder %v2059, 2.2
    %v2226 = vsel %vm2222, 1, 0
    %v2227 = vsel %vm2223, 1, 0
    %v2228 = vsel %vm2224, 1, 0
    %v2229 = vsel %vm2225, 1, 0
    %v2230 = vcvt.s32.f32 %v2226
    %v2231 = vcvt.s32.f32 %v2227
    %v2232 = vcvt.s32.f32 %v2228
    %v2233 = vcvt.s32.f32 %v2229
    %v2234 = vsub.f32 %v2098, %v2110
    %v2235 = vsub.f32 %v2099, %v2111
    %v2236 = vsub.f32 %v2100, %v2112
    %v2237 = vsub.f32 %v2101, %v2113
    %v2238 = vsub.f32 %v2110, %v2122
    %v2239 = vsub.f32 %v2111, %v2123
    %v2240 = vsub.f32 %v2112, %v2124
    %v2241 = vsub.f32 %v2113, %v2125
    %v2242 = vsub.f32 %v2122, %v2134
    %v2243 = vsub.f32 %v2123, %v2135
    %v2244 = vsub.f32 %v2124, %v2136
    %v2245 = vsub.f32 %v2125, %v2137
    %v2246 = vsub.f32 %v2134, %v2146
    %v2247 = vsub.f32 %v2135, %v2147
    %v2248 = vsub.f32 %v2136, %v2148
    %v2249 = vsub.f32 %v2137, %v2149
    %v2250 = vsub.f32 %v2146, %v2158
    %v2251 = vsub.f32 %v2147, %v2159
    %v2252 = vsub.f32 %v2148, %v2160
    %v2253 = vsub.f32 %v2149, %v2161
    %v2254 = vsub.f32 %v2158, %v2170
    %v2255 = vsub.f32 %v2159, %v2171
    %v2256 = vsub.f32 %v2160, %v2172
    %v2257 = vsub.f32 %v2161, %v2173
    %v2258 = vsub.f32 %v2170, %v2182
    %v2259 = vsub.f32 %v2171, %v2183
    %v2260 = vsub.f32 %v2172, %v2184
    %v2261 = vsub.f32 %v2173, %v2185
    %v2262 = vsub.f32 %v2182, %v2194
    %v2263 = vsub.f32 %v2183, %v2195
    %v2264 = vsub.f32 %v2184, %v2196
    %v2265 = vsub.f32 %v2185, %v2197
    %v2266 = vsub.f32 %v2194, %v2206
    %v2267 = vsub.f32 %v2195, %v2207
    %v2268 = vsub.f32 %v2196, %v2208
    %v2269 = vsub.f32 %v2197, %v2209
    %v2270 = vsub.f32 %v2206, %v2218
    %v2271 = vsub.f32 %v2207, %v2219
    %v2272 = vsub.f32 %v2208, %v2220
    %v2273 = vsub.f32 %v2209, %v2221
    %v2274 = vsub.f32 %v2218, %v2230
    %v2275 = vsub.f32 %v2219, %v2231
    %v2276 = vsub.f32 %v2220, %v2232
    %v2277 = vsub.f32 %v2221, %v2233
    %v2278 = vsub.f32 %v2044, -2.2
    %v2279 = vsub.f32 %v2049, -2.2
    %v2280 = vsub.f32 %v2054, -2.2
    %v2281 = vsub.f32 %v2059, -2.2
    %v2282 = vsub.f32 %v2044, -1.8
    %v2283 = vsub.f32 %v2049, -1.8
    %v2284 = vsub.f32 %v2054, -1.8
    %v2285 = vsub.f32 %v2059, -1.8
    %v2286 = vsub.f32 %v2044, -1.4
    %v2287 = vsub.f32 %v2049, -1.4
    %v2288 = vsub.f32 %v2054, -1.4
    %v2289 = vsub.f32 %v2059, -1.4
    %v2290 = vsub.f32 %v2044, -1.0
    %v2291 = vsub.f32 %v2049, -1.0
    %v2292 = vsub.f32 %v2054, -1.0
    %v2293 = vsub.f32 %v2059, -1.0
    %v2294 = vsub.f32 %v2044, -0.6
    %v2295 = vsub.f32 %v2049, -0.6
    %v2296 = vsub.f32 %v2054, -0.6
    %v2297 = vsub.f32 %v2059, -0.6
    %v2298 = vsub.f32 %v2044, -0.2
    %v2299 = vsub.f32 %v2049, -0.2
    %v2300 = vsub.f32 %v2054, -0.2
    %v2301 = vsub.f32 %v2059, -0.2
    %v2302 = vsub.f32 %v2044, 0.2
    %v2303 = vsub.f32 %v2049, 0.2
    %v2304 = vsub.f32 %v2054, 0.2
    %v2305 = vsub.f32 %v2059, 0.2
    %v2306 = vsub.f32 %v2044, 0.6
    %v2307 = vsub.f32 %v2049, 0.6
    %v2308 = vsub.f32 %v2054, 0.6
    %v2309 = vsub.f32 %v2059, 0.6
    %v2310 = vsub.f32 %v2044, 1.0
    %v2311 = vsub.f32 %v2049, 1.0
    %v2312 = vsub.f32 %v2054, 1.0
    %v2313 = vsub.f32 %v2059, 1.0
    %v2314 = vsub.f32 %v2044, 1.4
    %v2315 = vsub.f32 %v2049, 1.4
    %v2316 = vsub.f32 %v2054, 1.4
    %v2317 = vsub.f32 %v2059, 1.4
    %v2318 = vsub.f32 %v2044, 1.8
    %v2319 = vsub.f32 %v2049, 1.8
    %v2320 = vsub.f32 %v2054, 1.8
    %v2321 = vsub.f32 %v2059, 1.8
    %v2322 = vsub.f32 %v2044, 2.2
    %v2323 = vsub.f32 %v2049, 2.2
    %v2324 = vsub.f32 %v2054, 2.2
    %v2325 = vsub.f32 %v2059, 2.2
    %v2326 = vmul.f32 %v2278, %v2234
    %v2327 = vmul.f32 %v2279, %v2235
    %v2328 = vmul.f32 %v2280, %v2236
    %v2329 = vmul.f32 %v2281, %v2237
    %v2330 = vmul.f32 %v2286, %v2238
    %v2331 = vmul.f32 %v2287, %v2239
    %v2332 = vmul.f32 %v2288, %v2240
    %v2333 = vmul.f32 %v2289, %v2241
    %v2334 = vsub.f32 %v2326, %v2330
    %v2335 = vsub.f32 %v2327, %v2331
    %v2336 = vsub.f32 %v2328, %v2332
    %v2337 = vsub.f32 %v2329, %v2333
    %v2338 = vmul.f32 %v2282, %v2238
    %v2339 = vmul.f32 %v2283, %v2239
    %v2340 = vmul.f32 %v2284, %v2240
    %v2341 = vmul.f32 %v2285, %v2241
    %v2342 = vmul.f32 %v2290, %v2242
    %v2343 = vmul.f32 %v2291, %v2243
    %v2344 = vmul.f32 %v2292, %v2244
    %v2345 = vmul.f32 %v2293, %v2245
    %v2346 = vsub.f32 %v2338, %v2342
    %v2347 = vsub.f32 %v2339, %v2343
    %v2348 = vsub.f32 %v2340, %v2344
    %v2349 = vsub.f32 %v2341, %v2345
    %v2350 = vmul.f32 %v2286, %v2242
    %v2351 = vmul.f32 %v2287, %v2243
    %v2352 = vmul.f32 %v2288, %v2244
    %v2353 = vmul.f32 %v2289, %v2245
    %v2354 = vmul.f32 %v2294, %v2246
    %v2355 = vmul.f32 %v2295, %v2247
    %v2356 = vmul.f32 %v2296, %v2248
    %v2357 = vmul.f32 %v2297, %v2249
    %v2358 = vsub.f32 %v2350, %v2354
    %v2359 = vsub.f32 %v2351, %v2355
    %v2360 = vsub.f32 %v2352, %v2356
    %v2361 = vsub.f32 %v2353, %v2357
    %v2362 = vmul.f32 %v2290, %v2246
    %v2363 = vmul.f32 %v2291, %v2247
    %v2364 = vmul.f32 %v2292, %v2248
    %v2365 = vmul.f32 %v2293, %v2249
    %v2366 = vmul.f32 %v2298, %v2250
    %v2367 = vmul.f32 %v2299, %v2251
    %v2368 = vmul.f32 %v2300, %v2252
    %v2369 = vmul.f32 %v2301, %v2253
    %v2370 = vsub.f32 %v2362, %v2366
    %v2371 = vsub.f32 %v2363, %v2367
    %v2372 = vsub.f32 %v2364, %v2368
    %v2373 = vsub.f32 %v2365, %v2369
    %v2374 = vmul.f32 %v2294, %v2250
    %v2375 = vmul.f32 %v2295, %v2251
    %v2376 = vmul.f32 %v2296, %v2252
    %v2377 = vmul.f32 %v2297, %v2253
    %v2378 = vmul.f32 %v2302, %v2254
    %v2379 = vmul.f32 %v2303, %v2255
    %v2380 = vmul.f32 %v2304, %v2256
    %v2381 = vmul.f32 %v2305, %v2257
    %v2382 = vsub.f32 %v2374, %v2378
    %v2383 = vsub.f32 %v2375, %v2379
    %v2384 = vsub.f32 %v2376, %v2380
    %v2385 = vsub.f32 %v2377, %v2381
    %v2386 = vmul.f32 %v2298, %v2254
    %v2387 = vmul.f32 %v2299, %v2255
    %v2388 = vmul.f32 %v2300, %v2256
    %v2389 = vmul.f32 %v2301, %v2257
    %v2390 = vmul.f32 %v2306, %v2258
    %v2391 = vmul.f32 %v2307, %v2259
    %v2392 = vmul.f32 %v2308, %v2260
    %v2393 = vmul.f32 %v2309, %v2261
    %v2394 = vsub.f32 %v2386, %v2390
    %v2395 = vsub.f32 %v2387, %v2391
    %v2396 = vsub.f32 %v2388, %v2392
    %v2397 = vsub.f32 %v2389, %v2393
    %v2398 = vmul.f32 %v2302, %v2258
    %v2399 = vmul.f32 %v2303, %v2259
    %v2400 = vmul.f32 %v2304, %v2260
    %v2401 = vmul.f32 %v2305, %v2261
    %v2402 = vmul.f32 %v2310, %v2262
    %v2403 = vmul.f32 %v2311, %v2263
    %v2404 = vmul.f32 %v2312, %v2264
    %v2405 = vmul.f32 %v2313, %v2265
    %v2406 = vsub.f32 %v2398, %v2402
    %v2407 = vsub.f32 %v2399, %v2403
    %v2408 = vsub.f32 %v2400, %v2404
    %v2409 = vsub.f32 %v2401, %v2405
    %v2410 = vmul.f32 %v2306, %v2262
    %v2411 = vmul.f32 %v2307, %v2263
    %v2412 = vmul.f32 %v2308, %v2264
    %v2413 = vmul.f32 %v2309, %v2265
    %v2414 = vmul.f32 %v2314, %v2266
    %v2415 = vmul.f32 %v2315, %v2267
    %v2416 = vmul.f32 %v2316, %v2268
    %v2417 = vmul.f32 %v2317, %v2269
    %v2418 = vsub.f32 %v2410, %v2414
    %v2419 = vsub.f32 %v2411, %v2415
    %v2420 = vsub.f32 %v2412, %v2416
    %v2421 = vsub.f32 %v2413, %v2417
    %v2422 = vmul.f32 %v2310, %v2266
    %v2423 = vmul.f32 %v2311, %v2267
    %v2424 = vmul.f32 %v2312, %v2268
    %v2425 = vmul.f32 %v2313, %v2269
    %v2426 = vmul.f32 %v2318, %v2270
    %v2427 = vmul.f32 %v2319, %v2271
    %v2428 = vmul.f32 %v2320, %v2272
    %v2429 = vmul.f32 %v2321, %v2273
    %v2430 = vsub.f32 %v2422, %v2426
    %v2431 = vsub.f32 %v2423, %v2427
    %v2432 = vsub.f32 %v2424, %v2428
    %v2433 = vsub.f32 %v2425, %v2429
    %v2434 = vmul.f32 %v2314, %v2270
    %v2435 = vmul.f32 %v2315, %v2271
    %v2436 = vmul.f32 %v2316, %v2272
    %v2437 = vmul.f32 %v2317, %v2273
    %v2438 = vmul.f32 %v2322, %v2274
    %v2439 = vmul.f32 %v2323, %v2275
    %v2440 = vmul.f32 %v2324, %v2276
    %v2441 = vmul.f32 %v2325, %v2277
    %v2442 = vsub.f32 %v2434, %v2438
    %v2443 = vsub.f32 %v2435, %v2439
    %v2444 = vsub.f32 %v2436, %v2440
    %v2445 = vsub.f32 %v2437, %v2441
    %v2446 = vmul.f32 %v2278, %v2334
    %v2447 = vmul.f32 %v2279, %v2335
    %v2448 = vmul.f32 %v2280, %v2336
    %v2449 = vmul.f32 %v2281, %v2337
    %v2450 = vmul.f32 %v2290, %v2346
    %v2451 = vmul.f32 %v2291, %v2347
    %v2452 = vmul.f32 %v2292, %v2348
    %v2453 = vmul.f32 %v2293, %v2349
    %v2454 = vsub.f32 %v2446, %v2450
    %v2455 = vsub.f32 %v2447, %v2451
    %v2456 = vsub.f32 %v2448, %v2452
    %v2457 = vsub.f32 %v2449, %v2453
    %v2458 = vmul.f32 %v2282, %v2346
    %v2459 = vmul.f32 %v2283, %v2347
    %v2460 = vmul.f32 %v2284, %v2348
    %v2461 = vmul.f32 %v2285, %v2349
    %v2462 = vmul.f32 %v2294, %v2358
    %v2463 = vmul.f32 %v2295, %v2359
    %v2464 = vmul.f32 %v2296, %v2360
    %v2465 = vmul.f32 %v2297, %v2361
    %v2466 = vsub.f32 %v2458, %v2462
    %v2467 = vsub.f32 %v2459, %v2463
    %v2468 = vsub.f32 %v2460, %v2464
    %v2469 = vsub.f32 %v2461, %v2465
    %v2470 = vmul.f32 %v2286, %v2358
    %v2471 = vmul.f32 %v2287, %v2359
    %v2472 = vmul.f32 %v2288, %v2360
    %v2473 = vmul.f32 %v2289, %v2361
    %v2474 = vmul.f32 %v2298, %v2370
    %v2475 = vmul.f32 %v2299, %v2371
    %v2476 = vmul.f32 %v2300, %v2372
    %v2477 = vmul.f32 %v2301, %v2373
    %v2478 = vsub.f32 %v2470, %v2474
    %v2479 = vsub.f32 %v2471, %v2475
    %v2480 = vsub.f32 %v2472, %v2476
    %v2481 = vsub.f32 %v2473, %v2477
    %v2482 = vmul.f32 %v2290, %v2370
    %v2483 = vmul.f32 %v2291, %v2371
    %v2484 = vmul.f32 %v2292, %v2372
    %v2485 = vmul.f32 %v2293, %v2373
    %v2486 = vmul.f32 %v2302, %v2382
    %v2487 = vmul.f32 %v2303, %v2383
    %v2488 = vmul.f32 %v2304, %v2384
    %v2489 = vmul.f32 %v2305, %v2385
    %v2490 = vsub.f32 %v2482, %v2486
    %v2491 = vsub.f32 %v2483, %v2487
    %v2492 = vsub.f32 %v2484, %v2488
    %v2493 = vsub.f32 %v2485, %v2489
    %v2494 = vmul.f32 %v2294, %v2382
    %v2495 = vmul.f32 %v2295, %v2383
    %v2496 = vmul.f32 %v2296, %v2384
    %v2497 = vmul.f32 %v2297, %v2385
    %v2498 = vmul.f32 %v2306, %v2394
    %v2499 = vmul.f32 %v2307, %v2395
    %v2500 = vmul.f32 %v2308, %v2396
    %v2501 = vmul.f32 %v2309, %v2397
    %v2502 = vsub.f32 %v2494, %v2498
    %v2503 = vsub.f32 %v2495, %v2499
    %v2504 = vsub.f32 %v2496, %v2500
    %v2505 = vsub.f32 %v2497, %v2501
    %v2506 = vmul.f32 %v2298, %v2394
    %v2507 = vmul.f32 %v2299, %v2395
    %v2508 = vmul.f32 %v2300, %v2396
    %v2509 = vmul.f32 %v2301, %v2397
    %v2510 = vmul.f32 %v2310, %v2406
    %v2511 = vmul.f32 %v2311, %v2407
    %v2512 = vmul.f32 %v2312, %v2408
    %v2513 = vmul.f32 %v2313, %v2409
    %v2514 = vsub.f32 %v2506, %v2510
    %v2515 = vsub.f32 %v2507, %v2511
    %v2516 = vsub.f32 %v2508, %v2512
    %v2517 = vsub.f32 %v2509, %v2513
    %v2518 = vmul.f32 %v2302, %v2406
    %v2519 = vmul.f32 %v2303, %v2407
    %v2520 = vmul.f32 %v2304, %v2408
    %v2521 = vmul.f32 %v2305, %v2409
    %v2522 = vmul.f32 %v2314, %v2418
    %v2523 = vmul.f32 %v2315, %v2419
    %v2524 = vmul.f32 %v2316, %v2420
    %v2525 = vmul.f32 %v2317, %v2421
    %v2526 = vsub.f32 %v2518, %v2522
    %v2527 = vsub.f32 %v2519, %v2523
    %v2528 = vsub.f32 %v2520, %v2524
    %v2529 = vsub.f32 %v2521, %v2525
    %v2530 = vmul.f32 %v2306, %v2418
    %v2531 = vmul.f32 %v2307, %v2419
    %v2532 = vmul.f32 %v2308, %v2420
    %v2533 = vmul.f32 %v2309, %v2421
    %v2534 = vmul.f32 %v2318, %v2430
    %v2535 = vmul.f32 %v2319, %v2431
    %v2536 = vmul.f32 %v2320, %v2432
    %v2537 = vmul.f32 %v2321, %v2433
    %v2538 = vsub.f32 %v2530, %v2534
    %v2539 = vsub.f32 %v2531, %v2535
    %v2540 = vsub.f32 %v2532, %v2536
    %v2541 = vsub.f32 %v2533, %v2537
    %v2542 = vmul.f32 %v2310, %v2430
    %v2543 = vmul.f32 %v2311, %v2431
    %v2544 = vmul.f32 %v2312, %v2432
    %v2545 = vmul.f32 %v2313, %v2433
    %v2546 = vmul.f32 %v2322, %v2442
    %v2547 = vmul.f32 %v2323, %v2443
    %v2548 = vmul.f32 %v2324, %v2444
    %v2549 = vmul.f32 %v2325, %v2445
    %v2550 = vsub.f32 %v2542, %v2546
    %v2551 = vsub.f32 %v2543, %v2547
    %v2552 = vsub.f32 %v2544, %v2548
    %v2553 = vsub.f32 %v2545, %v2549
    %v2554 = vmul.f32 %v2278, %v2454
    %v2555 = vmul.f32 %v2279, %v2455
    %v2556 = vmul.f32 %v2280, %v2456
    %v2557 = vmul.f32 %v2281, %v2457
    %v2558 = vmul.f32 %v2294, %v2466
    %v2559 = vmul.f32 %v2295, %v2467
    %v2560 = vmul.f32 %v2296, %v2468
    %v2561 = vmul.f32 %v2297, %v2469
    %v2562 = vsub.f32 %v2554, %v2558
    %v2563 = vsub.f32 %v2555, %v2559
    %v2564 = vsub.f32 %v2556, %v2560
    %v2565 = vsub.f32 %v2557, %v2561
    %v2566 = vmul.f32 %v2282, %v2466
    %v2567 = vmul.f32 %v2283, %v2467
    %v2568 = vmul.f32 %v2284, %v2468
    %v2569 = vmul.f32 %v2285, %v2469
    %v2570 = vmul.f32 %v2298, %v2478
    %v2571 = vmul.f32 %v2299, %v2479
    %v2572 = vmul.f32 %v2300, %v2480
    %v2573 = vmul.f32 %v2301, %v2481
    %v2574 = vsub.f32 %v2566, %v2570
    %v2575 = vsub.f32 %v2567, %v2571
    %v2576 = vsub.f32 %v2568, %v2572
    %v2577 = vsub.f32 %v2569, %v2573
    %v2578 = vmul.f32 %v2286, %v2478
    %v2579 = vmul.f32 %v2287, %v2479
    %v2580 = vmul.f32 %v2288, %v2480
    %v2581 = vmul.f32 %v2289, %v2481
    %v2582 = vmul.f32 %v2302, %v2490
    %v2583 = vmul.f32 %v2303, %v2491
    %v2584 = vmul.f32 %v2304, %v2492
    %v2585 = vmul.f32 %v2305, %v2493
    %v2586 = vsub.f32 %v2578, %v2582
    %v2587 = vsub.f32 %v2579, %v2583
    %v2588 = vsub.f32 %v2580, %v2584
    %v2589 = vsub.f32 %v2581, %v2585
    %v2590 = vmul.f32 %v2290, %v2490
    %v2591 = vmul.f32 %v2291, %v2491
    %v2592 = vmul.f32 %v2292, %v2492
    %v2593 = vmul.f32 %v2293, %v2493
    %v2594 = vmul.f32 %v2306, %v2502
    %v2595 = vmul.f32 %v2307, %v2503
    %v2596 = vmul.f32 %v2308, %v2504
    %v2597 = vmul.f32 %v2309, %v2505
    %v2598 = vsub.f32 %v2590, %v2594
    %v2599 = vsub.f32 %v2591, %v2595
    %v2600 = vsub.f32 %v2592, %v2596
    %v2601 = vsub.f32 %v2593, %v2597
    %v2602 = vmul.f32 %v2294, %v2502
    %v2603 = vmul.f32 %v2295, %v2503
    %v2604 = vmul.f32 %v2296, %v2504
    %v2605 = vmul.f32 %v2297, %v2505
    %v2606 = vmul.f32 %v2310, %v2514
    %v2607 = vmul.f32 %v2311, %v2515
    %v2608 = vmul.f32 %v2312, %v2516
    %v2609 = vmul.f32 %v2313, %v2517
    %v2610 = vsub.f32 %v2602, %v2606
    %v2611 = vsub.f32 %v2603, %v2607
    %v2612 = vsub.f32 %v2604, %v2608
    %v2613 = vsub.f32 %v2605, %v2609
    %v2614 = vmul.f32 %v2298, %v2514
    %v2615 = vmul.f32 %v2299, %v2515
    %v2616 = vmul.f32 %v2300, %v2516
    %v2617 = vmul.f32 %v2301, %v2517
    %v2618 = vmul.f32 %v2314, %v2526
    %v2619 = vmul.f32 %v2315, %v2527
    %v2620 = vmul.f32 %v2316, %v2528
    %v2621 = vmul.f32 %v2317, %v2529
    %v2622 = vsub.f32 %v2614, %v2618
    %v2623 = vsub.f32 %v2615, %v2619
    %v2624 = vsub.f32 %v2616, %v2620
    %v2625 = vsub.f32 %v2617, %v2621
    %v2626 = vmul.f32 %v2302, %v2526
    %v2627 = vmul.f32 %v2303, %v2527
    %v2628 = vmul.f32 %v2304, %v2528
    %v2629 = vmul.f32 %v2305, %v2529
    %v2630 = vmul.f32 %v2318, %v2538
    %v2631 = vmul.f32 %v2319, %v2539
    %v2632 = vmul.f32 %v2320, %v2540
    %v2633 = vmul.f32 %v2321, %v2541
    %v2634 = vsub.f32 %v2626, %v2630
    %v2635 = vsub.f32 %v2627, %v2631
    %v2636 = vsub.f32 %v2628, %v2632
    %v2637 = vsub.f32 %v2629, %v2633
    %v2638 = vmul.f32 %v2306, %v2538
    %v2639 = vmul.f32 %v2307, %v2539
    %v2640 = vmul.f32 %v2308, %v2540
    %v2641 = vmul.f32 %v2309, %v2541
    %v2642 = vmul.f32 %v2322, %v2550
    %v2643 = vmul.f32 %v2323, %v2551
    %v2644 = vmul.f32 %v2324, %v2552
    %v2645 = vmul.f32 %v2325, %v2553
    %v2646 = vsub.f32 %v2638, %v2642
    %v2647 = vsub.f32 %v2639, %v2643
    %v2648 = vsub.f32 %v2640, %v2644
    %v2649 = vsub.f32 %v2641, %v2645
    %v2650 = vld [vmem:[#allocation8] sm:$0xff]
    %v2651 = vld [vmem:[#allocation8 + $0x8] sm:$0xff]
    %v2652 = vld [vmem:[#allocation8 + $0x10] sm:$0xff]
    %v2653 = vld [vmem:[#allocation8 + $0x18] sm:$0xff]
    %v2654 = vld [vmem:[#allocation8 + $0x20] sm:$0xff]
    %v2655 = vld [vmem:[#allocation8 + $0x28] sm:$0xff]
    %v2656 = vld [vmem:[#allocation8 + $0x30] sm:$0xff]
    %v2657 = vld [vmem:[#allocation8 + $0x38] sm:$0xff]
    %v2658 = vld [vmem:[#allocation8 + $0x40] sm:$0xff]
    %v2659 = vld [vmem:[#allocation8 + $0x48] sm:$0xff]
    %v2660 = vld [vmem:[#allocation8 + $0x50] sm:$0xff]
    %v2661 = vld [vmem:[#allocation8 + $0x58] sm:$0xff]
    %v2663 = vsel %vm1097, %v2652, 0
    %v2666 = vsel %vm1097, %v2655, 0
    %v2669 = vsel %vm1097, %v2658, 0
    %v2672 = vsel %vm1097, %v2661, 0
    %2674 = vmatprep.subr.mxu0 0.0
    %2675 = vmatpush1.msra.mxu0 %v2589
    %2676 = vmatprep.subr.mxu0 0.0
    %2677 = vmatpush1.msra.mxu0 %v2588
    %2678 = vmatprep.subr.mxu0 0.0
    %2679 = vmatpush1.msra.mxu0 %v2587
    %2680 = vmatprep.subr.mxu0 0.0
    %2681 = vmatpush1.msra.mxu0 %v2586
    %2682 = vmatprep.subr.mxu0 0.0
    %2683 = vmatpush1.msra.mxu0 %v2577
    %2684 = vmatprep.subr.mxu0 0.0
    %2685 = vmatpush1.msra.mxu0 %v2576
    %2686 = vmatprep.subr.mxu0 0.0
    %2687 = vmatpush1.msra.mxu0 %v2575
    %2688 = vmatprep.subr.mxu0 0.0
    %2689 = vmatpush1.msra.mxu0 %v2574
    %2690 = vmatprep.subr.mxu0 0.0
    %2691 = vmatpush1.msra.mxu0 %v2565
    %2692 = vmatprep.subr.mxu0 0.0
    %2693 = vmatpush1.msra.mxu0 %v2564
    %2694 = vmatprep.subr.mxu0 0.0
    %2695 = vmatpush1.msra.mxu0 %v2563
    %2696 = vmatprep.subr.mxu0 0.0
    %2697 = vmatpush1.msra.mxu0 %v2562
    %2698 = vmatprep.subr.mxu0 0.0
    %2699 = vmatpush1.msra.mxu0 %v2089
    %2700 = vmatprep.subr.mxu0 0.0
    %2701 = vmatpush1.msra.mxu0 %v2088
    %2702 = vmatprep.subr.mxu0 0.0
    %2703 = vmatpush1.msra.mxu0 %v2087
    %2704 = vmatprep.subr.mxu0 0.0
    %2705 = vmatpush1.msra.mxu0 %v2086
    %2706 = vmatprep.subr.mxu0 0.0
    %2707 = vmatpush2.msra.mxu0 %v2637
    %2708 = vmatprep.subr.mxu0 0.0
    %2709 = vmatpush2.msra.mxu0 %v2636
    %2710 = vmatprep.subr.mxu0 0.0
    %2711 = vmatpush2.msra.mxu0 %v2635
    %2712 = vmatprep.subr.mxu0 0.0
    %2713 = vmatpush2.msra.mxu0 %v2634
    %2714 = vmatprep.subr.mxu0 0.0
    %2715 = vmatpush2.msra.mxu0 %v2625
    %2716 = vmatprep.subr.mxu0 0.0
    %2717 = vmatpush2.msra.mxu0 %v2624
    %2718 = vmatprep.subr.mxu0 0.0
    %2719 = vmatpush2.msra.mxu0 %v2623
    %2720 = vmatprep.subr.mxu0 0.0
    %2721 = vmatpush2.msra.mxu0 %v2622
    %2722 = vmatprep.subr.mxu0 0.0
    %2723 = vmatpush2.msra.mxu0 %v2613
    %2724 = vmatprep.subr.mxu0 0.0
    %2725 = vmatpush2.msra.mxu0 %v2612
    %2726 = vmatprep.subr.mxu0 0.0
    %2727 = vmatpush2.msra.mxu0 %v2611
    %2728 = vmatprep.subr.mxu0 0.0
    %2729 = vmatpush2.msra.mxu0 %v2610
    %2730 = vmatprep.subr.mxu0 0.0
    %2731 = vmatpush2.msra.mxu0 %v2601
    %2732 = vmatprep.subr.mxu0 0.0
    %2733 = vmatpush2.msra.mxu0 %v2600
    %2734 = vmatprep.subr.mxu0 0.0
    %2735 = vmatpush2.msra.mxu0 %v2599
    %2736 = vmatprep.subr.mxu0 0.0
    %2737 = vmatpush2.msra.mxu0 %v2598
    %2738 = vmatprep.mubr.f32.mxu0 %v2651
    %2739 = vmatmul.mubr.f32.gmra.mxu0 %v2650
    %v2740 = vpop.f32.mrf.mxu0
    %v2741 = vadd.f32 0.0, %v2740
    %v2742 = vpop.f32.mrf.mxu0
    %2743 = vmatprep.mubr.f32.mxu0 %v2654
    %2744 = vmatmul.mubr.f32.gmra.mxu0 %v2653
    %v2745 = vpop.f32.mrf.mxu0
    %v2746 = vadd.f32 0.0, %v2745
    %v2747 = vpop.f32.mrf.mxu0
    %2748 = vmatprep.mubr.f32.mxu0 %v2657
    %2749 = vmatmul.mubr.f32.gmra.mxu0 %v2656
    %v2750 = vpop.f32.mrf.mxu0
    %v2751 = vadd.f32 0.0, %v2750
    %v2752 = vpop.f32.mrf.mxu0
    %2753 = vmatprep.mubr.f32.mxu0 %v2660
    %2754 = vmatmul.mubr.f32.gmra.mxu0 %v2659
    %v2755 = vpop.f32.mrf.mxu0
    %v2756 = vadd.f32 0.0, %v2755
    %v2757 = vpop.f32.mrf.mxu0
    %2758 = vdwg.mxu0
    %2759 = vmatprep.subr.mxu0 0.0
    %2760 = vmatpush1.msra.mxu0 0.0
    %2761 = vmatprep.subr.mxu0 0.0
    %2762 = vmatpush1.msra.mxu0 0.0
    %2763 = vmatprep.subr.mxu0 0.0
    %2764 = vmatpush1.msra.mxu0 0.0
    %2765 = vmatprep.subr.mxu0 0.0
    %2766 = vmatpush1.msra.mxu0 0.0
    %2767 = vmatprep.subr.mxu0 0.0
    %2768 = vmatpush1.msra.mxu0 0.0
    %2769 = vmatprep.subr.mxu0 0.0
    %2770 = vmatpush1.msra.mxu0 0.0
    %2771 = vmatprep.subr.mxu0 0.0
    %2772 = vmatpush1.msra.mxu0 0.0
    %2773 = vmatprep.subr.mxu0 0.0
    %2774 = vmatpush1.msra.mxu0 0.0
    %2775 = vmatprep.subr.mxu0 0.0
    %2776 = vmatpush1.msra.mxu0 0.0
    %2777 = vmatprep.subr.mxu0 0.0
    %2778 = vmatpush1.msra.mxu0 0.0
    %2779 = vmatprep.subr.mxu0 0.0
    %2780 = vmatpush1.msra.mxu0 0.0
    %2781 = vmatprep.subr.mxu0 0.0
    %2782 = vmatpush1.msra.mxu0 0.0
    %2783 = vmatprep.subr.mxu0 0.0
    %2784 = vmatpush1.msra.mxu0 %v2649
    %2785 = vmatprep.subr.mxu0 0.0
    %2786 = vmatpush1.msra.mxu0 %v2648
    %2787 = vmatprep.subr.mxu0 0.0
    %2788 = vmatpush1.msra.mxu0 %v2647
    %2789 = vmatprep.subr.mxu0 0.0
    %2790 = vmatpush1.msra.mxu0 %v2646
    %2791 = vmatprep.subr.mxu0 0.0
    %2792 = vmatpush2.msra.mxu0 0.0
    %2793 = vmatprep.subr.mxu0 0.0
    %2794 = vmatpush2.msra.mxu0 0.0
    %2795 = vmatprep.subr.mxu0 0.0
    %2796 = vmatpush2.msra.mxu0 0.0
    %2797 = vmatprep.subr.mxu0 0.0
    %2798 = vmatpush2.msra.mxu0 0.0
    %2799 = vmatprep.subr.mxu0 0.0
    %2800 = vmatpush2.msra.mxu0 0.0
    %2801 = vmatprep.subr.mxu0 0.0
    %2802 = vmatpush2.msra.mxu0 0.0
    %2803 = vmatprep.subr.mxu0 0.0
    %2804 = vmatpush2.msra.mxu0 0.0
    %2805 = vmatprep.subr.mxu0 0.0
    %2806 = vmatpush2.msra.mxu0 0.0
    %2807 = vmatprep.subr.mxu0 0.0
    %2808 = vmatpush2.msra.mxu0 0.0
    %2809 = vmatprep.subr.mxu0 0.0
    %2810 = vmatpush2.msra.mxu0 0.0
    %2811 = vmatprep.subr.mxu0 0.0
    %2812 = vmatpush2.msra.mxu0 0.0
    %2813 = vmatprep.subr.mxu0 0.0
    %2814 = vmatpush2.msra.mxu0 0.0
    %2815 = vmatprep.subr.mxu0 0.0
    %2816 = vmatpush2.msra.mxu0 0.0
    %2817 = vmatprep.subr.mxu0 0.0
    %2818 = vmatpush2.msra.mxu0 0.0
    %2819 = vmatprep.subr.mxu0 0.0
    %2820 = vmatpush2.msra.mxu0 0.0
    %2821 = vmatprep.subr.mxu0 0.0
    %2822 = vmatpush2.msra.mxu0 0.0
    %2823 = vmatprep.mubr.f32.mxu0 0.0
    %2824 = vmatmul.mubr.f32.gmra.mxu0 %v2663
    %v2825 = vpop.f32.mrf.mxu0
    %v2826 = vadd.f32 %v2741, %v2825
    %v2827 = vpop.f32.mrf.mxu0
    %2828 = vmatprep.mubr.f32.mxu0 0.0
    %2829 = vmatmul.mubr.f32.gmra.mxu0 %v2666
    %v2830 = vpop.f32.mrf.mxu0
    %v2831 = vadd.f32 %v2746, %v2830
    %v2832 = vpop.f32.mrf.mxu0
    %2833 = vmatprep.mubr.f32.mxu0 0.0
    %2834 = vmatmul.mubr.f32.gmra.mxu0 %v2669
    %v2835 = vpop.f32.mrf.mxu0
    %v2836 = vadd.f32 %v2751, %v2835
    %v2837 = vpop.f32.mrf.mxu0
    %2838 = vmatprep.mubr.f32.mxu0 0.0
    %2839 = vmatmul.mubr.f32.gmra.mxu0 %v2672
    %v2840 = vpop.f32.mrf.mxu0
    %v2841 = vadd.f32 %v2756, %v2840
    %v2842 = vpop.f32.mrf.mxu0
    %2843 = vdwg.mxu0
    %v2844 = vxor.u32 %v2826, 2147483648
    %v2845 = vxor.u32 %v2831, 2147483648
    %v2846 = vxor.u32 %v2836, 2147483648
    %v2847 = vxor.u32 %v2841, 2147483648
    %v2848 = vmul.f32 %v2844, 1.442695
    %v2849 = vpow.pop %v2848
    %v2850 = vmul.f32 %v2845, 1.442695
    %v2851 = vpow.pop %v2850
    %v2852 = vmul.f32 %v2846, 1.442695
    %v2853 = vpow.pop %v2852
    %v2854 = vmul.f32 %v2847, 1.442695
    %v2855 = vpow.pop %v2854
    %v2856 = vadd.f32 %v2849, 1.0
    %v2857 = vadd.f32 %v2851, 1.0
    %v2858 = vadd.f32 %v2853, 1.0
    %v2859 = vadd.f32 %v2855, 1.0
    %v2860 = vrcp.pop %v2856
    %v2861 = vmul.f32 1.0, %v2860
    %v2862 = vrcp.pop %v2857
    %v2863 = vmul.f32 1.0, %v2862
    %v2864 = vrcp.pop %v2858
    %v2865 = vmul.f32 1.0, %v2864
    %v2866 = vrcp.pop %v2859
    %v2867 = vmul.f32 1.0, %v2866
    %v2868 = vmul.f32 %v2826, %v2861
    %v2869 = vmul.f32 %v2831, %v2863
    %v2870 = vmul.f32 %v2836, %v2865
    %v2871 = vmul.f32 %v2841, %v2867
    %vm2872 = vcmp.ge.f32.partialorder %v2826, -2.2
    %vm2873 = vcmp.ge.f32.partialorder %v2831, -2.2
    %vm2874 = vcmp.ge.f32.partialorder %v2836, -2.2
    %vm2875 = vcmp.ge.f32.partialorder %v2841, -2.2
    %v2876 = vsel %vm2872, 1, 0
    %v2877 = vsel %vm2873, 1, 0
    %v2878 = vsel %vm2874, 1, 0
    %v2879 = vsel %vm2875, 1, 0
    %v2880 = vcvt.s32.f32 %v2876
    %v2881 = vcvt.s32.f32 %v2877
    %v2882 = vcvt.s32.f32 %v2878
    %v2883 = vcvt.s32.f32 %v2879
    %vm2884 = vcmp.ge.f32.partialorder %v2826, -1.8
    %vm2885 = vcmp.ge.f32.partialorder %v2831, -1.8
    %vm2886 = vcmp.ge.f32.partialorder %v2836, -1.8
    %vm2887 = vcmp.ge.f32.partialorder %v2841, -1.8
    %v2888 = vsel %vm2884, 1, 0
    %v2889 = vsel %vm2885, 1, 0
    %v2890 = vsel %vm2886, 1, 0
    %v2891 = vsel %vm2887, 1, 0
    %v2892 = vcvt.s32.f32 %v2888
    %v2893 = vcvt.s32.f32 %v2889
    %v2894 = vcvt.s32.f32 %v2890
    %v2895 = vcvt.s32.f32 %v2891
    %vm2896 = vcmp.ge.f32.partialorder %v2826, -1.4
    %vm2897 = vcmp.ge.f32.partialorder %v2831, -1.4
    %vm2898 = vcmp.ge.f32.partialorder %v2836, -1.4
    %vm2899 = vcmp.ge.f32.partialorder %v2841, -1.4
    %v2900 = vsel %vm2896, 1, 0
    %v2901 = vsel %vm2897, 1, 0
    %v2902 = vsel %vm2898, 1, 0
    %v2903 = vsel %vm2899, 1, 0
    %v2904 = vcvt.s32.f32 %v2900
    %v2905 = vcvt.s32.f32 %v2901
    %v2906 = vcvt.s32.f32 %v2902
    %v2907 = vcvt.s32.f32 %v2903
    %vm2908 = vcmp.ge.f32.partialorder %v2826, -1.0
    %vm2909 = vcmp.ge.f32.partialorder %v2831, -1.0
    %vm2910 = vcmp.ge.f32.partialorder %v2836, -1.0
    %vm2911 = vcmp.ge.f32.partialorder %v2841, -1.0
    %v2912 = vsel %vm2908, 1, 0
    %v2913 = vsel %vm2909, 1, 0
    %v2914 = vsel %vm2910, 1, 0
    %v2915 = vsel %vm2911, 1, 0
    %v2916 = vcvt.s32.f32 %v2912
    %v2917 = vcvt.s32.f32 %v2913
    %v2918 = vcvt.s32.f32 %v2914
    %v2919 = vcvt.s32.f32 %v2915
    %vm2920 = vcmp.ge.f32.partialorder %v2826, -0.6
    %vm2921 = vcmp.ge.f32.partialorder %v2831, -0.6
    %vm2922 = vcmp.ge.f32.partialorder %v2836, -0.6
    %vm2923 = vcmp.ge.f32.partialorder %v2841, -0.6
    %v2924 = vsel %vm2920, 1, 0
    %v2925 = vsel %vm2921, 1, 0
    %v2926 = vsel %vm2922, 1, 0
    %v2927 = vsel %vm2923, 1, 0
    %v2928 = vcvt.s32.f32 %v2924
    %v2929 = vcvt.s32.f32 %v2925
    %v2930 = vcvt.s32.f32 %v2926
    %v2931 = vcvt.s32.f32 %v2927
    %vm2932 = vcmp.ge.f32.partialorder %v2826, -0.2
    %vm2933 = vcmp.ge.f32.partialorder %v2831, -0.2
    %vm2934 = vcmp.ge.f32.partialorder %v2836, -0.2
    %vm2935 = vcmp.ge.f32.partialorder %v2841, -0.2
    %v2936 = vsel %vm2932, 1, 0
    %v2937 = vsel %vm2933, 1, 0
    %v2938 = vsel %vm2934, 1, 0
    %v2939 = vsel %vm2935, 1, 0
    %v2940 = vcvt.s32.f32 %v2936
    %v2941 = vcvt.s32.f32 %v2937
    %v2942 = vcvt.s32.f32 %v2938
    %v2943 = vcvt.s32.f32 %v2939
    %vm2944 = vcmp.ge.f32.partialorder %v2826, 0.2
    %vm2945 = vcmp.ge.f32.partialorder %v2831, 0.2
    %vm2946 = vcmp.ge.f32.partialorder %v2836, 0.2
    %vm2947 = vcmp.ge.f32.partialorder %v2841, 0.2
    %v2948 = vsel %vm2944, 1, 0
    %v2949 = vsel %vm2945, 1, 0
    %v2950 = vsel %vm2946, 1, 0
    %v2951 = vsel %vm2947, 1, 0
    %v2952 = vcvt.s32.f32 %v2948
    %v2953 = vcvt.s32.f32 %v2949
    %v2954 = vcvt.s32.f32 %v2950
    %v2955 = vcvt.s32.f32 %v2951
    %vm2956 = vcmp.ge.f32.partialorder %v2826, 0.6
    %vm2957 = vcmp.ge.f32.partialorder %v2831, 0.6
    %vm2958 = vcmp.ge.f32.partialorder %v2836, 0.6
    %vm2959 = vcmp.ge.f32.partialorder %v2841, 0.6
    %v2960 = vsel %vm2956, 1, 0
    %v2961 = vsel %vm2957, 1, 0
    %v2962 = vsel %vm2958, 1, 0
    %v2963 = vsel %vm2959, 1, 0
    %v2964 = vcvt.s32.f32 %v2960
    %v2965 = vcvt.s32.f32 %v2961
    %v2966 = vcvt.s32.f32 %v2962
    %v2967 = vcvt.s32.f32 %v2963
    %vm2968 = vcmp.ge.f32.partialorder %v2826, 1.0
    %vm2969 = vcmp.ge.f32.partialorder %v2831, 1.0
    %vm2970 = vcmp.ge.f32.partialorder %v2836, 1.0
    %vm2971 = vcmp.ge.f32.partialorder %v2841, 1.0
    %v2972 = vsel %vm2968, 1, 0
    %v2973 = vsel %vm2969, 1, 0
    %v2974 = vsel %vm2970, 1, 0
    %v2975 = vsel %vm2971, 1, 0
    %v2976 = vcvt.s32.f32 %v2972
    %v2977 = vcvt.s32.f32 %v2973
    %v2978 = vcvt.s32.f32 %v2974
    %v2979 = vcvt.s32.f32 %v2975
    %vm2980 = vcmp.ge.f32.partialorder %v2826, 1.4
    %vm2981 = vcmp.ge.f32.partialorder %v2831, 1.4
    %vm2982 = vcmp.ge.f32.partialorder %v2836, 1.4
    %vm2983 = vcmp.ge.f32.partialorder %v2841, 1.4
    %v2984 = vsel %vm2980, 1, 0
    %v2985 = vsel %vm2981, 1, 0
    %v2986 = vsel %vm2982, 1, 0
    %v2987 = vsel %vm2983, 1, 0
    %v2988 = vcvt.s32.f32 %v2984
    %v2989 = vcvt.s32.f32 %v2985
    %v2990 = vcvt.s32.f32 %v2986
    %v2991 = vcvt.s32.f32 %v2987
    %vm2992 = vcmp.ge.f32.partialorder %v2826, 1.8
    %vm2993 = vcmp.ge.f32.partialorder %v2831, 1.8
    %vm2994 = vcmp.ge.f32.partialorder %v2836, 1.8
    %vm2995 = vcmp.ge.f32.partialorder %v2841, 1.8
    %v2996 = vsel %vm2992, 1, 0
    %v2997 = vsel %vm2993, 1, 0
    %v2998 = vsel %vm2994, 1, 0
    %v2999 = vsel %vm2995, 1, 0
    %v3000 = vcvt.s32.f32 %v2996
    %v3001 = vcvt.s32.f32 %v2997
    %v3002 = vcvt.s32.f32 %v2998
    %v3003 = vcvt.s32.f32 %v2999
    %vm3004 = vcmp.ge.f32.partialorder %v2826, 2.2
    %vm3005 = vcmp.ge.f32.partialorder %v2831, 2.2
    %vm3006 = vcmp.ge.f32.partialorder %v2836, 2.2
    %vm3007 = vcmp.ge.f32.partialorder %v2841, 2.2
    %v3008 = vsel %vm3004, 1, 0
    %v3009 = vsel %vm3005, 1, 0
    %v3010 = vsel %vm3006, 1, 0
    %v3011 = vsel %vm3007, 1, 0
    %v3012 = vcvt.s32.f32 %v3008
    %v3013 = vcvt.s32.f32 %v3009
    %v3014 = vcvt.s32.f32 %v3010
    %v3015 = vcvt.s32.f32 %v3011
    %v3016 = vsub.f32 %v2880, %v2892
    %v3017 = vsub.f32 %v2881, %v2893
    %v3018 = vsub.f32 %v2882, %v2894
    %v3019 = vsub.f32 %v2883, %v2895
    %v3020 = vsub.f32 %v2892, %v2904
    %v3021 = vsub.f32 %v2893, %v2905
    %v3022 = vsub.f32 %v2894, %v2906
    %v3023 = vsub.f32 %v2895, %v2907
    %v3024 = vsub.f32 %v2904, %v2916
    %v3025 = vsub.f32 %v2905, %v2917
    %v3026 = vsub.f32 %v2906, %v2918
    %v3027 = vsub.f32 %v2907, %v2919
    %v3028 = vsub.f32 %v2916, %v2928
    %v3029 = vsub.f32 %v2917, %v2929
    %v3030 = vsub.f32 %v2918, %v2930
    %v3031 = vsub.f32 %v2919, %v2931
    %v3032 = vsub.f32 %v2928, %v2940
    %v3033 = vsub.f32 %v2929, %v2941
    %v3034 = vsub.f32 %v2930, %v2942
    %v3035 = vsub.f32 %v2931, %v2943
    %v3036 = vsub.f32 %v2940, %v2952
    %v3037 = vsub.f32 %v2941, %v2953
    %v3038 = vsub.f32 %v2942, %v2954
    %v3039 = vsub.f32 %v2943, %v2955
    %v3040 = vsub.f32 %v2952, %v2964
    %v3041 = vsub.f32 %v2953, %v2965
    %v3042 = vsub.f32 %v2954, %v2966
    %v3043 = vsub.f32 %v2955, %v2967
    %v3044 = vsub.f32 %v2964, %v2976
    %v3045 = vsub.f32 %v2965, %v2977
    %v3046 = vsub.f32 %v2966, %v2978
    %v3047 = vsub.f32 %v2967, %v2979
    %v3048 = vsub.f32 %v2976, %v2988
    %v3049 = vsub.f32 %v2977, %v2989
    %v3050 = vsub.f32 %v2978, %v2990
    %v3051 = vsub.f32 %v2979, %v2991
    %v3052 = vsub.f32 %v2988, %v3000
    %v3053 = vsub.f32 %v2989, %v3001
    %v3054 = vsub.f32 %v2990, %v3002
    %v3055 = vsub.f32 %v2991, %v3003
    %v3056 = vsub.f32 %v3000, %v3012
    %v3057 = vsub.f32 %v3001, %v3013
    %v3058 = vsub.f32 %v3002, %v3014
    %v3059 = vsub.f32 %v3003, %v3015
    %v3060 = vsub.f32 %v2826, -2.2
    %v3061 = vsub.f32 %v2831, -2.2
    %v3062 = vsub.f32 %v2836, -2.2
    %v3063 = vsub.f32 %v2841, -2.2
    %v3064 = vsub.f32 %v2826, -1.8
    %v3065 = vsub.f32 %v2831, -1.8
    %v3066 = vsub.f32 %v2836, -1.8
    %v3067 = vsub.f32 %v2841, -1.8
    %v3068 = vsub.f32 %v2826, -1.4
    %v3069 = vsub.f32 %v2831, -1.4
    %v3070 = vsub.f32 %v2836, -1.4
    %v3071 = vsub.f32 %v2841, -1.4
    %v3072 = vsub.f32 %v2826, -1.0
    %v3073 = vsub.f32 %v2831, -1.0
    %v3074 = vsub.f32 %v2836, -1.0
    %v3075 = vsub.f32 %v2841, -1.0
    %v3076 = vsub.f32 %v2826, -0.6
    %v3077 = vsub.f32 %v2831, -0.6
    %v3078 = vsub.f32 %v2836, -0.6
    %v3079 = vsub.f32 %v2841, -0.6
    %v3080 = vsub.f32 %v2826, -0.2
    %v3081 = vsub.f32 %v2831, -0.2
    %v3082 = vsub.f32 %v2836, -0.2
    %v3083 = vsub.f32 %v2841, -0.2
    %v3084 = vsub.f32 %v2826, 0.2
    %v3085 = vsub.f32 %v2831, 0.2
    %v3086 = vsub.f32 %v2836, 0.2
    %v3087 = vsub.f32 %v2841, 0.2
    %v3088 = vsub.f32 %v2826, 0.6
    %v3089 = vsub.f32 %v2831, 0.6
    %v3090 = vsub.f32 %v2836, 0.6
    %v3091 = vsub.f32 %v2841, 0.6
    %v3092 = vsub.f32 %v2826, 1.0
    %v3093 = vsub.f32 %v2831, 1.0
    %v3094 = vsub.f32 %v2836, 1.0
    %v3095 = vsub.f32 %v2841, 1.0
    %v3096 = vsub.f32 %v2826, 1.4
    %v3097 = vsub.f32 %v2831, 1.4
    %v3098 = vsub.f32 %v2836, 1.4
    %v3099 = vsub.f32 %v2841, 1.4
    %v3100 = vsub.f32 %v2826, 1.8
    %v3101 = vsub.f32 %v2831, 1.8
    %v3102 = vsub.f32 %v2836, 1.8
    %v3103 = vsub.f32 %v2841, 1.8
    %v3104 = vsub.f32 %v2826, 2.2
    %v3105 = vsub.f32 %v2831, 2.2
    %v3106 = vsub.f32 %v2836, 2.2
    %v3107 = vsub.f32 %v2841, 2.2
    %v3108 = vmul.f32 %v3060, %v3016
    %v3109 = vmul.f32 %v3061, %v3017
    %v3110 = vmul.f32 %v3062, %v3018
    %v3111 = vmul.f32 %v3063, %v3019
    %v3112 = vmul.f32 %v3068, %v3020
    %v3113 = vmul.f32 %v3069, %v3021
    %v3114 = vmul.f32 %v3070, %v3022
    %v3115 = vmul.f32 %v3071, %v3023
    %v3116 = vsub.f32 %v3108, %v3112
    %v3117 = vsub.f32 %v3109, %v3113
    %v3118 = vsub.f32 %v3110, %v3114
    %v3119 = vsub.f32 %v3111, %v3115
    %v3120 = vmul.f32 %v3064, %v3020
    %v3121 = vmul.f32 %v3065, %v3021
    %v3122 = vmul.f32 %v3066, %v3022
    %v3123 = vmul.f32 %v3067, %v3023
    %v3124 = vmul.f32 %v3072, %v3024
    %v3125 = vmul.f32 %v3073, %v3025
    %v3126 = vmul.f32 %v3074, %v3026
    %v3127 = vmul.f32 %v3075, %v3027
    %v3128 = vsub.f32 %v3120, %v3124
    %v3129 = vsub.f32 %v3121, %v3125
    %v3130 = vsub.f32 %v3122, %v3126
    %v3131 = vsub.f32 %v3123, %v3127
    %v3132 = vmul.f32 %v3068, %v3024
    %v3133 = vmul.f32 %v3069, %v3025
    %v3134 = vmul.f32 %v3070, %v3026
    %v3135 = vmul.f32 %v3071, %v3027
    %v3136 = vmul.f32 %v3076, %v3028
    %v3137 = vmul.f32 %v3077, %v3029
    %v3138 = vmul.f32 %v3078, %v3030
    %v3139 = vmul.f32 %v3079, %v3031
    %v3140 = vsub.f32 %v3132, %v3136
    %v3141 = vsub.f32 %v3133, %v3137
    %v3142 = vsub.f32 %v3134, %v3138
    %v3143 = vsub.f32 %v3135, %v3139
    %v3144 = vmul.f32 %v3072, %v3028
    %v3145 = vmul.f32 %v3073, %v3029
    %v3146 = vmul.f32 %v3074, %v3030
    %v3147 = vmul.f32 %v3075, %v3031
    %v3148 = vmul.f32 %v3080, %v3032
    %v3149 = vmul.f32 %v3081, %v3033
    %v3150 = vmul.f32 %v3082, %v3034
    %v3151 = vmul.f32 %v3083, %v3035
    %v3152 = vsub.f32 %v3144, %v3148
    %v3153 = vsub.f32 %v3145, %v3149
    %v3154 = vsub.f32 %v3146, %v3150
    %v3155 = vsub.f32 %v3147, %v3151
    %v3156 = vmul.f32 %v3076, %v3032
    %v3157 = vmul.f32 %v3077, %v3033
    %v3158 = vmul.f32 %v3078, %v3034
    %v3159 = vmul.f32 %v3079, %v3035
    %v3160 = vmul.f32 %v3084, %v3036
    %v3161 = vmul.f32 %v3085, %v3037
    %v3162 = vmul.f32 %v3086, %v3038
    %v3163 = vmul.f32 %v3087, %v3039
    %v3164 = vsub.f32 %v3156, %v3160
    %v3165 = vsub.f32 %v3157, %v3161
    %v3166 = vsub.f32 %v3158, %v3162
    %v3167 = vsub.f32 %v3159, %v3163
    %v3168 = vmul.f32 %v3080, %v3036
    %v3169 = vmul.f32 %v3081, %v3037
    %v3170 = vmul.f32 %v3082, %v3038
    %v3171 = vmul.f32 %v3083, %v3039
    %v3172 = vmul.f32 %v3088, %v3040
    %v3173 = vmul.f32 %v3089, %v3041
    %v3174 = vmul.f32 %v3090, %v3042
    %v3175 = vmul.f32 %v3091, %v3043
    %v3176 = vsub.f32 %v3168, %v3172
    %v3177 = vsub.f32 %v3169, %v3173
    %v3178 = vsub.f32 %v3170, %v3174
    %v3179 = vsub.f32 %v3171, %v3175
    %v3180 = vmul.f32 %v3084, %v3040
    %v3181 = vmul.f32 %v3085, %v3041
    %v3182 = vmul.f32 %v3086, %v3042
    %v3183 = vmul.f32 %v3087, %v3043
    %v3184 = vmul.f32 %v3092, %v3044
    %v3185 = vmul.f32 %v3093, %v3045
    %v3186 = vmul.f32 %v3094, %v3046
    %v3187 = vmul.f32 %v3095, %v3047
    %v3188 = vsub.f32 %v3180, %v3184
    %v3189 = vsub.f32 %v3181, %v3185
    %v3190 = vsub.f32 %v3182, %v3186
    %v3191 = vsub.f32 %v3183, %v3187
    %v3192 = vmul.f32 %v3088, %v3044
    %v3193 = vmul.f32 %v3089, %v3045
    %v3194 = vmul.f32 %v3090, %v3046
    %v3195 = vmul.f32 %v3091, %v3047
    %v3196 = vmul.f32 %v3096, %v3048
    %v3197 = vmul.f32 %v3097, %v3049
    %v3198 = vmul.f32 %v3098, %v3050
    %v3199 = vmul.f32 %v3099, %v3051
    %v3200 = vsub.f32 %v3192, %v3196
    %v3201 = vsub.f32 %v3193, %v3197
    %v3202 = vsub.f32 %v3194, %v3198
    %v3203 = vsub.f32 %v3195, %v3199
    %v3204 = vmul.f32 %v3092, %v3048
    %v3205 = vmul.f32 %v3093, %v3049
    %v3206 = vmul.f32 %v3094, %v3050
    %v3207 = vmul.f32 %v3095, %v3051
    %v3208 = vmul.f32 %v3100, %v3052
    %v3209 = vmul.f32 %v3101, %v3053
    %v3210 = vmul.f32 %v3102, %v3054
    %v3211 = vmul.f32 %v3103, %v3055
    %v3212 = vsub.f32 %v3204, %v3208
    %v3213 = vsub.f32 %v3205, %v3209
    %v3214 = vsub.f32 %v3206, %v3210
    %v3215 = vsub.f32 %v3207, %v3211
    %v3216 = vmul.f32 %v3096, %v3052
    %v3217 = vmul.f32 %v3097, %v3053
    %v3218 = vmul.f32 %v3098, %v3054
    %v3219 = vmul.f32 %v3099, %v3055
    %v3220 = vmul.f32 %v3104, %v3056
    %v3221 = vmul.f32 %v3105, %v3057
    %v3222 = vmul.f32 %v3106, %v3058
    %v3223 = vmul.f32 %v3107, %v3059
    %v3224 = vsub.f32 %v3216, %v3220
    %v3225 = vsub.f32 %v3217, %v3221
    %v3226 = vsub.f32 %v3218, %v3222
    %v3227 = vsub.f32 %v3219, %v3223
    %v3228 = vmul.f32 %v3060, %v3116
    %v3229 = vmul.f32 %v3061, %v3117
    %v3230 = vmul.f32 %v3062, %v3118
    %v3231 = vmul.f32 %v3063, %v3119
    %v3232 = vmul.f32 %v3072, %v3128
    %v3233 = vmul.f32 %v3073, %v3129
    %v3234 = vmul.f32 %v3074, %v3130
    %v3235 = vmul.f32 %v3075, %v3131
    %v3236 = vsub.f32 %v3228, %v3232
    %v3237 = vsub.f32 %v3229, %v3233
    %v3238 = vsub.f32 %v3230, %v3234
    %v3239 = vsub.f32 %v3231, %v3235
    %v3240 = vmul.f32 %v3064, %v3128
    %v3241 = vmul.f32 %v3065, %v3129
    %v3242 = vmul.f32 %v3066, %v3130
    %v3243 = vmul.f32 %v3067, %v3131
    %v3244 = vmul.f32 %v3076, %v3140
    %v3245 = vmul.f32 %v3077, %v3141
    %v3246 = vmul.f32 %v3078, %v3142
    %v3247 = vmul.f32 %v3079, %v3143
    %v3248 = vsub.f32 %v3240, %v3244
    %v3249 = vsub.f32 %v3241, %v3245
    %v3250 = vsub.f32 %v3242, %v3246
    %v3251 = vsub.f32 %v3243, %v3247
    %v3252 = vmul.f32 %v3068, %v3140
    %v3253 = vmul.f32 %v3069, %v3141
    %v3254 = vmul.f32 %v3070, %v3142
    %v3255 = vmul.f32 %v3071, %v3143
    %v3256 = vmul.f32 %v3080, %v3152
    %v3257 = vmul.f32 %v3081, %v3153
    %v3258 = vmul.f32 %v3082, %v3154
    %v3259 = vmul.f32 %v3083, %v3155
    %v3260 = vsub.f32 %v3252, %v3256
    %v3261 = vsub.f32 %v3253, %v3257
    %v3262 = vsub.f32 %v3254, %v3258
    %v3263 = vsub.f32 %v3255, %v3259
    %v3264 = vmul.f32 %v3072, %v3152
    %v3265 = vmul.f32 %v3073, %v3153
    %v3266 = vmul.f32 %v3074, %v3154
    %v3267 = vmul.f32 %v3075, %v3155
    %v3268 = vmul.f32 %v3084, %v3164
    %v3269 = vmul.f32 %v3085, %v3165
    %v3270 = vmul.f32 %v3086, %v3166
    %v3271 = vmul.f32 %v3087, %v3167
    %v3272 = vsub.f32 %v3264, %v3268
    %v3273 = vsub.f32 %v3265, %v3269
    %v3274 = vsub.f32 %v3266, %v3270
    %v3275 = vsub.f32 %v3267, %v3271
    %v3276 = vmul.f32 %v3076, %v3164
    %v3277 = vmul.f32 %v3077, %v3165
    %v3278 = vmul.f32 %v3078, %v3166
    %v3279 = vmul.f32 %v3079, %v3167
    %v3280 = vmul.f32 %v3088, %v3176
    %v3281 = vmul.f32 %v3089, %v3177
    %v3282 = vmul.f32 %v3090, %v3178
    %v3283 = vmul.f32 %v3091, %v3179
    %v3284 = vsub.f32 %v3276, %v3280
    %v3285 = vsub.f32 %v3277, %v3281
    %v3286 = vsub.f32 %v3278, %v3282
    %v3287 = vsub.f32 %v3279, %v3283
    %v3288 = vmul.f32 %v3080, %v3176
    %v3289 = vmul.f32 %v3081, %v3177
    %v3290 = vmul.f32 %v3082, %v3178
    %v3291 = vmul.f32 %v3083, %v3179
    %v3292 = vmul.f32 %v3092, %v3188
    %v3293 = vmul.f32 %v3093, %v3189
    %v3294 = vmul.f32 %v3094, %v3190
    %v3295 = vmul.f32 %v3095, %v3191
    %v3296 = vsub.f32 %v3288, %v3292
    %v3297 = vsub.f32 %v3289, %v3293
    %v3298 = vsub.f32 %v3290, %v3294
    %v3299 = vsub.f32 %v3291, %v3295
    %v3300 = vmul.f32 %v3084, %v3188
    %v3301 = vmul.f32 %v3085, %v3189
    %v3302 = vmul.f32 %v3086, %v3190
    %v3303 = vmul.f32 %v3087, %v3191
    %v3304 = vmul.f32 %v3096, %v3200
    %v3305 = vmul.f32 %v3097, %v3201
    %v3306 = vmul.f32 %v3098, %v3202
    %v3307 = vmul.f32 %v3099, %v3203
    %v3308 = vsub.f32 %v3300, %v3304
    %v3309 = vsub.f32 %v3301, %v3305
    %v3310 = vsub.f32 %v3302, %v3306
    %v3311 = vsub.f32 %v3303, %v3307
    %v3312 = vmul.f32 %v3088, %v3200
    %v3313 = vmul.f32 %v3089, %v3201
    %v3314 = vmul.f32 %v3090, %v3202
    %v3315 = vmul.f32 %v3091, %v3203
    %v3316 = vmul.f32 %v3100, %v3212
    %v3317 = vmul.f32 %v3101, %v3213
    %v3318 = vmul.f32 %v3102, %v3214
    %v3319 = vmul.f32 %v3103, %v3215
    %v3320 = vsub.f32 %v3312, %v3316
    %v3321 = vsub.f32 %v3313, %v3317
    %v3322 = vsub.f32 %v3314, %v3318
    %v3323 = vsub.f32 %v3315, %v3319
    %v3324 = vmul.f32 %v3092, %v3212
    %v3325 = vmul.f32 %v3093, %v3213
    %v3326 = vmul.f32 %v3094, %v3214
    %v3327 = vmul.f32 %v3095, %v3215
    %v3328 = vmul.f32 %v3104, %v3224
    %v3329 = vmul.f32 %v3105, %v3225
    %v3330 = vmul.f32 %v3106, %v3226
    %v3331 = vmul.f32 %v3107, %v3227
    %v3332 = vsub.f32 %v3324, %v3328
    %v3333 = vsub.f32 %v3325, %v3329
    %v3334 = vsub.f32 %v3326, %v3330
    %v3335 = vsub.f32 %v3327, %v3331
    %v3336 = vmul.f32 %v3060, %v3236
    %v3337 = vmul.f32 %v3061, %v3237
    %v3338 = vmul.f32 %v3062, %v3238
    %v3339 = vmul.f32 %v3063, %v3239
    %v3340 = vmul.f32 %v3076, %v3248
    %v3341 = vmul.f32 %v3077, %v3249
    %v3342 = vmul.f32 %v3078, %v3250
    %v3343 = vmul.f32 %v3079, %v3251
    %v3344 = vsub.f32 %v3336, %v3340
    %v3345 = vsub.f32 %v3337, %v3341
    %v3346 = vsub.f32 %v3338, %v3342
    %v3347 = vsub.f32 %v3339, %v3343
    %v3348 = vmul.f32 %v3064, %v3248
    %v3349 = vmul.f32 %v3065, %v3249
    %v3350 = vmul.f32 %v3066, %v3250
    %v3351 = vmul.f32 %v3067, %v3251
    %v3352 = vmul.f32 %v3080, %v3260
    %v3353 = vmul.f32 %v3081, %v3261
    %v3354 = vmul.f32 %v3082, %v3262
    %v3355 = vmul.f32 %v3083, %v3263
    %v3356 = vsub.f32 %v3348, %v3352
    %v3357 = vsub.f32 %v3349, %v3353
    %v3358 = vsub.f32 %v3350, %v3354
    %v3359 = vsub.f32 %v3351, %v3355
    %v3360 = vmul.f32 %v3068, %v3260
    %v3361 = vmul.f32 %v3069, %v3261
    %v3362 = vmul.f32 %v3070, %v3262
    %v3363 = vmul.f32 %v3071, %v3263
    %v3364 = vmul.f32 %v3084, %v3272
    %v3365 = vmul.f32 %v3085, %v3273
    %v3366 = vmul.f32 %v3086, %v3274
    %v3367 = vmul.f32 %v3087, %v3275
    %v3368 = vsub.f32 %v3360, %v3364
    %v3369 = vsub.f32 %v3361, %v3365
    %v3370 = vsub.f32 %v3362, %v3366
    %v3371 = vsub.f32 %v3363, %v3367
    %v3372 = vmul.f32 %v3072, %v3272
    %v3373 = vmul.f32 %v3073, %v3273
    %v3374 = vmul.f32 %v3074, %v3274
    %v3375 = vmul.f32 %v3075, %v3275
    %v3376 = vmul.f32 %v3088, %v3284
    %v3377 = vmul.f32 %v3089, %v3285
    %v3378 = vmul.f32 %v3090, %v3286
    %v3379 = vmul.f32 %v3091, %v3287
    %v3380 = vsub.f32 %v3372, %v3376
    %v3381 = vsub.f32 %v3373, %v3377
    %v3382 = vsub.f32 %v3374, %v3378
    %v3383 = vsub.f32 %v3375, %v3379
    %v3384 = vmul.f32 %v3076, %v3284
    %v3385 = vmul.f32 %v3077, %v3285
    %v3386 = vmul.f32 %v3078, %v3286
    %v3387 = vmul.f32 %v3079, %v3287
    %v3388 = vmul.f32 %v3092, %v3296
    %v3389 = vmul.f32 %v3093, %v3297
    %v3390 = vmul.f32 %v3094, %v3298
    %v3391 = vmul.f32 %v3095, %v3299
    %v3392 = vsub.f32 %v3384, %v3388
    %v3393 = vsub.f32 %v3385, %v3389
    %v3394 = vsub.f32 %v3386, %v3390
    %v3395 = vsub.f32 %v3387, %v3391
    %v3396 = vmul.f32 %v3080, %v3296
    %v3397 = vmul.f32 %v3081, %v3297
    %v3398 = vmul.f32 %v3082, %v3298
    %v3399 = vmul.f32 %v3083, %v3299
    %v3400 = vmul.f32 %v3096, %v3308
    %v3401 = vmul.f32 %v3097, %v3309
    %v3402 = vmul.f32 %v3098, %v3310
    %v3403 = vmul.f32 %v3099, %v3311
    %v3404 = vsub.f32 %v3396, %v3400
    %v3405 = vsub.f32 %v3397, %v3401
    %v3406 = vsub.f32 %v3398, %v3402
    %v3407 = vsub.f32 %v3399, %v3403
    %v3408 = vmul.f32 %v3084, %v3308
    %v3409 = vmul.f32 %v3085, %v3309
    %v3410 = vmul.f32 %v3086, %v3310
    %v3411 = vmul.f32 %v3087, %v3311
    %v3412 = vmul.f32 %v3100, %v3320
    %v3413 = vmul.f32 %v3101, %v3321
    %v3414 = vmul.f32 %v3102, %v3322
    %v3415 = vmul.f32 %v3103, %v3323
    %v3416 = vsub.f32 %v3408, %v3412
    %v3417 = vsub.f32 %v3409, %v3413
    %v3418 = vsub.f32 %v3410, %v3414
    %v3419 = vsub.f32 %v3411, %v3415
    %v3420 = vmul.f32 %v3088, %v3320
    %v3421 = vmul.f32 %v3089, %v3321
    %v3422 = vmul.f32 %v3090, %v3322
    %v3423 = vmul.f32 %v3091, %v3323
    %v3424 = vmul.f32 %v3104, %v3332
    %v3425 = vmul.f32 %v3105, %v3333
    %v3426 = vmul.f32 %v3106, %v3334
    %v3427 = vmul.f32 %v3107, %v3335
    %v3428 = vsub.f32 %v3420, %v3424
    %v3429 = vsub.f32 %v3421, %v3425
    %v3430 = vsub.f32 %v3422, %v3426
    %v3431 = vsub.f32 %v3423, %v3427
    %v3432 = vld [vmem:[#allocation10] sm:$0xff]
    %v3433 = vld [vmem:[#allocation10 + $0x8] sm:$0xff]
    %v3434 = vld [vmem:[#allocation10 + $0x10] sm:$0xff]
    %v3435 = vld [vmem:[#allocation10 + $0x18] sm:$0xff]
    %v3436 = vld [vmem:[#allocation10 + $0x20] sm:$0xff]
    %v3437 = vld [vmem:[#allocation10 + $0x28] sm:$0xff]
    %v3438 = vld [vmem:[#allocation10 + $0x30] sm:$0xff]
    %v3439 = vld [vmem:[#allocation10 + $0x38] sm:$0xff]
    %v3440 = vld [vmem:[#allocation10 + $0x40] sm:$0xff]
    %v3441 = vld [vmem:[#allocation10 + $0x48] sm:$0xff]
    %v3442 = vld [vmem:[#allocation10 + $0x50] sm:$0xff]
    %v3443 = vld [vmem:[#allocation10 + $0x58] sm:$0xff]
    %v3445 = vsel %vm1097, %v3434, 0
    %v3448 = vsel %vm1097, %v3437, 0
    %v3451 = vsel %vm1097, %v3440, 0
    %v3454 = vsel %vm1097, %v3443, 0
    %3456 = vmatprep.subr.mxu0 0.0
    %3457 = vmatpush1.msra.mxu0 %v3371
    %3458 = vmatprep.subr.mxu0 0.0
    %3459 = vmatpush1.msra.mxu0 %v3370
    %3460 = vmatprep.subr.mxu0 0.0
    %3461 = vmatpush1.msra.mxu0 %v3369
    %3462 = vmatprep.subr.mxu0 0.0
    %3463 = vmatpush1.msra.mxu0 %v3368
    %3464 = vmatprep.subr.mxu0 0.0
    %3465 = vmatpush1.msra.mxu0 %v3359
    %3466 = vmatprep.subr.mxu0 0.0
    %3467 = vmatpush1.msra.mxu0 %v3358
    %3468 = vmatprep.subr.mxu0 0.0
    %3469 = vmatpush1.msra.mxu0 %v3357
    %3470 = vmatprep.subr.mxu0 0.0
    %3471 = vmatpush1.msra.mxu0 %v3356
    %3472 = vmatprep.subr.mxu0 0.0
    %3473 = vmatpush1.msra.mxu0 %v3347
    %3474 = vmatprep.subr.mxu0 0.0
    %3475 = vmatpush1.msra.mxu0 %v3346
    %3476 = vmatprep.subr.mxu0 0.0
    %3477 = vmatpush1.msra.mxu0 %v3345
    %3478 = vmatprep.subr.mxu0 0.0
    %3479 = vmatpush1.msra.mxu0 %v3344
    %3480 = vmatprep.subr.mxu0 0.0
    %3481 = vmatpush1.msra.mxu0 %v2871
    %3482 = vmatprep.subr.mxu0 0.0
    %3483 = vmatpush1.msra.mxu0 %v2870
    %3484 = vmatprep.subr.mxu0 0.0
    %3485 = vmatpush1.msra.mxu0 %v2869
    %3486 = vmatprep.subr.mxu0 0.0
    %3487 = vmatpush1.msra.mxu0 %v2868
    %3488 = vmatprep.subr.mxu0 0.0
    %3489 = vmatpush2.msra.mxu0 %v3419
    %3490 = vmatprep.subr.mxu0 0.0
    %3491 = vmatpush2.msra.mxu0 %v3418
    %3492 = vmatprep.subr.mxu0 0.0
    %3493 = vmatpush2.msra.mxu0 %v3417
    %3494 = vmatprep.subr.mxu0 0.0
    %3495 = vmatpush2.msra.mxu0 %v3416
    %3496 = vmatprep.subr.mxu0 0.0
    %3497 = vmatpush2.msra.mxu0 %v3407
    %3498 = vmatprep.subr.mxu0 0.0
    %3499 = vmatpush2.msra.mxu0 %v3406
    %3500 = vmatprep.subr.mxu0 0.0
    %3501 = vmatpush2.msra.mxu0 %v3405
    %3502 = vmatprep.subr.mxu0 0.0
    %3503 = vmatpush2.msra.mxu0 %v3404
    %3504 = vmatprep.subr.mxu0 0.0
    %3505 = vmatpush2.msra.mxu0 %v3395
    %3506 = vmatprep.subr.mxu0 0.0
    %3507 = vmatpush2.msra.mxu0 %v3394
    %3508 = vmatprep.subr.mxu0 0.0
    %3509 = vmatpush2.msra.mxu0 %v3393
    %3510 = vmatprep.subr.mxu0 0.0
    %3511 = vmatpush2.msra.mxu0 %v3392
    %3512 = vmatprep.subr.mxu0 0.0
    %3513 = vmatpush2.msra.mxu0 %v3383
    %3514 = vmatprep.subr.mxu0 0.0
    %3515 = vmatpush2.msra.mxu0 %v3382
    %3516 = vmatprep.subr.mxu0 0.0
    %3517 = vmatpush2.msra.mxu0 %v3381
    %3518 = vmatprep.subr.mxu0 0.0
    %3519 = vmatpush2.msra.mxu0 %v3380
    %3520 = vmatprep.mubr.f32.mxu0 %v3433
    %3521 = vmatmul.mubr.f32.gmra.mxu0 %v3432
    %v3522 = vpop.f32.mrf.mxu0
    %v3523 = vadd.f32 0.0, %v3522
    %v3524 = vpop.f32.mrf.mxu0
    %3525 = vmatprep.mubr.f32.mxu0 %v3436
    %3526 = vmatmul.mubr.f32.gmra.mxu0 %v3435
    %v3527 = vpop.f32.mrf.mxu0
    %v3528 = vadd.f32 0.0, %v3527
    %v3529 = vpop.f32.mrf.mxu0
    %3530 = vmatprep.mubr.f32.mxu0 %v3439
    %3531 = vmatmul.mubr.f32.gmra.mxu0 %v3438
    %v3532 = vpop.f32.mrf.mxu0
    %v3533 = vadd.f32 0.0, %v3532
    %v3534 = vpop.f32.mrf.mxu0
    %3535 = vmatprep.mubr.f32.mxu0 %v3442
    %3536 = vmatmul.mubr.f32.gmra.mxu0 %v3441
    %v3537 = vpop.f32.mrf.mxu0
    %v3538 = vadd.f32 0.0, %v3537
    %v3539 = vpop.f32.mrf.mxu0
    %3540 = vdwg.mxu0
    %3541 = vmatprep.subr.mxu0 0.0
    %3542 = vmatpush1.msra.mxu0 0.0
    %3543 = vmatprep.subr.mxu0 0.0
    %3544 = vmatpush1.msra.mxu0 0.0
    %3545 = vmatprep.subr.mxu0 0.0
    %3546 = vmatpush1.msra.mxu0 0.0
    %3547 = vmatprep.subr.mxu0 0.0
    %3548 = vmatpush1.msra.mxu0 0.0
    %3549 = vmatprep.subr.mxu0 0.0
    %3550 = vmatpush1.msra.mxu0 0.0
    %3551 = vmatprep.subr.mxu0 0.0
    %3552 = vmatpush1.msra.mxu0 0.0
    %3553 = vmatprep.subr.mxu0 0.0
    %3554 = vmatpush1.msra.mxu0 0.0
    %3555 = vmatprep.subr.mxu0 0.0
    %3556 = vmatpush1.msra.mxu0 0.0
    %3557 = vmatprep.subr.mxu0 0.0
    %3558 = vmatpush1.msra.mxu0 0.0
    %3559 = vmatprep.subr.mxu0 0.0
    %3560 = vmatpush1.msra.mxu0 0.0
    %3561 = vmatprep.subr.mxu0 0.0
    %3562 = vmatpush1.msra.mxu0 0.0
    %3563 = vmatprep.subr.mxu0 0.0
    %3564 = vmatpush1.msra.mxu0 0.0
    %3565 = vmatprep.subr.mxu0 0.0
    %3566 = vmatpush1.msra.mxu0 %v3431
    %3567 = vmatprep.subr.mxu0 0.0
    %3568 = vmatpush1.msra.mxu0 %v3430
    %3569 = vmatprep.subr.mxu0 0.0
    %3570 = vmatpush1.msra.mxu0 %v3429
    %3571 = vmatprep.subr.mxu0 0.0
    %3572 = vmatpush1.msra.mxu0 %v3428
    %3573 = vmatprep.subr.mxu0 0.0
    %3574 = vmatpush2.msra.mxu0 0.0
    %3575 = vmatprep.subr.mxu0 0.0
    %3576 = vmatpush2.msra.mxu0 0.0
    %3577 = vmatprep.subr.mxu0 0.0
    %3578 = vmatpush2.msra.mxu0 0.0
    %3579 = vmatprep.subr.mxu0 0.0
    %3580 = vmatpush2.msra.mxu0 0.0
    %3581 = vmatprep.subr.mxu0 0.0
    %3582 = vmatpush2.msra.mxu0 0.0
    %3583 = vmatprep.subr.mxu0 0.0
    %3584 = vmatpush2.msra.mxu0 0.0
    %3585 = vmatprep.subr.mxu0 0.0
    %3586 = vmatpush2.msra.mxu0 0.0
    %3587 = vmatprep.subr.mxu0 0.0
    %3588 = vmatpush2.msra.mxu0 0.0
    %3589 = vmatprep.subr.mxu0 0.0
    %3590 = vmatpush2.msra.mxu0 0.0
    %3591 = vmatprep.subr.mxu0 0.0
    %3592 = vmatpush2.msra.mxu0 0.0
    %3593 = vmatprep.subr.mxu0 0.0
    %3594 = vmatpush2.msra.mxu0 0.0
    %3595 = vmatprep.subr.mxu0 0.0
    %3596 = vmatpush2.msra.mxu0 0.0
    %3597 = vmatprep.subr.mxu0 0.0
    %3598 = vmatpush2.msra.mxu0 0.0
    %3599 = vmatprep.subr.mxu0 0.0
    %3600 = vmatpush2.msra.mxu0 0.0
    %3601 = vmatprep.subr.mxu0 0.0
    %3602 = vmatpush2.msra.mxu0 0.0
    %3603 = vmatprep.subr.mxu0 0.0
    %3604 = vmatpush2.msra.mxu0 0.0
    %3605 = vmatprep.mubr.f32.mxu0 0.0
    %3606 = vmatmul.mubr.f32.gmra.mxu0 %v3445
    %v3607 = vpop.f32.mrf.mxu0
    %v3608 = vadd.f32 %v3523, %v3607
    %v3609 = vpop.f32.mrf.mxu0
    %3610 = vmatprep.mubr.f32.mxu0 0.0
    %3611 = vmatmul.mubr.f32.gmra.mxu0 %v3448
    %v3612 = vpop.f32.mrf.mxu0
    %v3613 = vadd.f32 %v3528, %v3612
    %v3614 = vpop.f32.mrf.mxu0
    %3615 = vmatprep.mubr.f32.mxu0 0.0
    %3616 = vmatmul.mubr.f32.gmra.mxu0 %v3451
    %v3617 = vpop.f32.mrf.mxu0
    %v3618 = vadd.f32 %v3533, %v3617
    %v3619 = vpop.f32.mrf.mxu0
    %3620 = vmatprep.mubr.f32.mxu0 0.0
    %3621 = vmatmul.mubr.f32.gmra.mxu0 %v3454
    %v3622 = vpop.f32.mrf.mxu0
    %v3623 = vadd.f32 %v3538, %v3622
    %v3624 = vpop.f32.mrf.mxu0
    %3625 = vdwg.mxu0
    %v3626 = vxor.u32 %v3608, 2147483648
    %v3627 = vxor.u32 %v3613, 2147483648
    %v3628 = vxor.u32 %v3618, 2147483648
    %v3629 = vxor.u32 %v3623, 2147483648
    %v3630 = vmul.f32 %v3626, 1.442695
    %v3631 = vpow.pop %v3630
    %v3632 = vmul.f32 %v3627, 1.442695
    %v3633 = vpow.pop %v3632
    %v3634 = vmul.f32 %v3628, 1.442695
    %v3635 = vpow.pop %v3634
    %v3636 = vmul.f32 %v3629, 1.442695
    %v3637 = vpow.pop %v3636
    %v3638 = vadd.f32 %v3631, 1.0
    %v3639 = vadd.f32 %v3633, 1.0
    %v3640 = vadd.f32 %v3635, 1.0
    %v3641 = vadd.f32 %v3637, 1.0
    %v3642 = vrcp.pop %v3638
    %v3643 = vmul.f32 1.0, %v3642
    %v3644 = vrcp.pop %v3639
    %v3645 = vmul.f32 1.0, %v3644
    %v3646 = vrcp.pop %v3640
    %v3647 = vmul.f32 1.0, %v3646
    %v3648 = vrcp.pop %v3641
    %v3649 = vmul.f32 1.0, %v3648
    %v3650 = vmul.f32 %v3608, %v3643
    %v3651 = vmul.f32 %v3613, %v3645
    %v3652 = vmul.f32 %v3618, %v3647
    %v3653 = vmul.f32 %v3623, %v3649
    %vm3654 = vcmp.ge.f32.partialorder %v3608, -2.2
    %vm3655 = vcmp.ge.f32.partialorder %v3613, -2.2
    %vm3656 = vcmp.ge.f32.partialorder %v3618, -2.2
    %vm3657 = vcmp.ge.f32.partialorder %v3623, -2.2
    %v3658 = vsel %vm3654, 1, 0
    %v3659 = vsel %vm3655, 1, 0
    %v3660 = vsel %vm3656, 1, 0
    %v3661 = vsel %vm3657, 1, 0
    %v3662 = vcvt.s32.f32 %v3658
    %v3663 = vcvt.s32.f32 %v3659
    %v3664 = vcvt.s32.f32 %v3660
    %v3665 = vcvt.s32.f32 %v3661
    %vm3666 = vcmp.ge.f32.partialorder %v3608, -1.8
    %vm3667 = vcmp.ge.f32.partialorder %v3613, -1.8
    %vm3668 = vcmp.ge.f32.partialorder %v3618, -1.8
    %vm3669 = vcmp.ge.f32.partialorder %v3623, -1.8
    %v3670 = vsel %vm3666, 1, 0
    %v3671 = vsel %vm3667, 1, 0
    %v3672 = vsel %vm3668, 1, 0
    %v3673 = vsel %vm3669, 1, 0
    %v3674 = vcvt.s32.f32 %v3670
    %v3675 = vcvt.s32.f32 %v3671
    %v3676 = vcvt.s32.f32 %v3672
    %v3677 = vcvt.s32.f32 %v3673
    %vm3678 = vcmp.ge.f32.partialorder %v3608, -1.4
    %vm3679 = vcmp.ge.f32.partialorder %v3613, -1.4
    %vm3680 = vcmp.ge.f32.partialorder %v3618, -1.4
    %vm3681 = vcmp.ge.f32.partialorder %v3623, -1.4
    %v3682 = vsel %vm3678, 1, 0
    %v3683 = vsel %vm3679, 1, 0
    %v3684 = vsel %vm3680, 1, 0
    %v3685 = vsel %vm3681, 1, 0
    %v3686 = vcvt.s32.f32 %v3682
    %v3687 = vcvt.s32.f32 %v3683
    %v3688 = vcvt.s32.f32 %v3684
    %v3689 = vcvt.s32.f32 %v3685
    %vm3690 = vcmp.ge.f32.partialorder %v3608, -1.0
    %vm3691 = vcmp.ge.f32.partialorder %v3613, -1.0
    %vm3692 = vcmp.ge.f32.partialorder %v3618, -1.0
    %vm3693 = vcmp.ge.f32.partialorder %v3623, -1.0
    %v3694 = vsel %vm3690, 1, 0
    %v3695 = vsel %vm3691, 1, 0
    %v3696 = vsel %vm3692, 1, 0
    %v3697 = vsel %vm3693, 1, 0
    %v3698 = vcvt.s32.f32 %v3694
    %v3699 = vcvt.s32.f32 %v3695
    %v3700 = vcvt.s32.f32 %v3696
    %v3701 = vcvt.s32.f32 %v3697
    %vm3702 = vcmp.ge.f32.partialorder %v3608, -0.6
    %vm3703 = vcmp.ge.f32.partialorder %v3613, -0.6
    %vm3704 = vcmp.ge.f32.partialorder %v3618, -0.6
    %vm3705 = vcmp.ge.f32.partialorder %v3623, -0.6
    %v3706 = vsel %vm3702, 1, 0
    %v3707 = vsel %vm3703, 1, 0
    %v3708 = vsel %vm3704, 1, 0
    %v3709 = vsel %vm3705, 1, 0
    %v3710 = vcvt.s32.f32 %v3706
    %v3711 = vcvt.s32.f32 %v3707
    %v3712 = vcvt.s32.f32 %v3708
    %v3713 = vcvt.s32.f32 %v3709
    %vm3714 = vcmp.ge.f32.partialorder %v3608, -0.2
    %vm3715 = vcmp.ge.f32.partialorder %v3613, -0.2
    %vm3716 = vcmp.ge.f32.partialorder %v3618, -0.2
    %vm3717 = vcmp.ge.f32.partialorder %v3623, -0.2
    %v3718 = vsel %vm3714, 1, 0
    %v3719 = vsel %vm3715, 1, 0
    %v3720 = vsel %vm3716, 1, 0
    %v3721 = vsel %vm3717, 1, 0
    %v3722 = vcvt.s32.f32 %v3718
    %v3723 = vcvt.s32.f32 %v3719
    %v3724 = vcvt.s32.f32 %v3720
    %v3725 = vcvt.s32.f32 %v3721
    %vm3726 = vcmp.ge.f32.partialorder %v3608, 0.2
    %vm3727 = vcmp.ge.f32.partialorder %v3613, 0.2
    %vm3728 = vcmp.ge.f32.partialorder %v3618, 0.2
    %vm3729 = vcmp.ge.f32.partialorder %v3623, 0.2
    %v3730 = vsel %vm3726, 1, 0
    %v3731 = vsel %vm3727, 1, 0
    %v3732 = vsel %vm3728, 1, 0
    %v3733 = vsel %vm3729, 1, 0
    %v3734 = vcvt.s32.f32 %v3730
    %v3735 = vcvt.s32.f32 %v3731
    %v3736 = vcvt.s32.f32 %v3732
    %v3737 = vcvt.s32.f32 %v3733
    %vm3738 = vcmp.ge.f32.partialorder %v3608, 0.6
    %vm3739 = vcmp.ge.f32.partialorder %v3613, 0.6
    %vm3740 = vcmp.ge.f32.partialorder %v3618, 0.6
    %vm3741 = vcmp.ge.f32.partialorder %v3623, 0.6
    %v3742 = vsel %vm3738, 1, 0
    %v3743 = vsel %vm3739, 1, 0
    %v3744 = vsel %vm3740, 1, 0
    %v3745 = vsel %vm3741, 1, 0
    %v3746 = vcvt.s32.f32 %v3742
    %v3747 = vcvt.s32.f32 %v3743
    %v3748 = vcvt.s32.f32 %v3744
    %v3749 = vcvt.s32.f32 %v3745
    %vm3750 = vcmp.ge.f32.partialorder %v3608, 1.0
    %vm3751 = vcmp.ge.f32.partialorder %v3613, 1.0
    %vm3752 = vcmp.ge.f32.partialorder %v3618, 1.0
    %vm3753 = vcmp.ge.f32.partialorder %v3623, 1.0
    %v3754 = vsel %vm3750, 1, 0
    %v3755 = vsel %vm3751, 1, 0
    %v3756 = vsel %vm3752, 1, 0
    %v3757 = vsel %vm3753, 1, 0
    %v3758 = vcvt.s32.f32 %v3754
    %v3759 = vcvt.s32.f32 %v3755
    %v3760 = vcvt.s32.f32 %v3756
    %v3761 = vcvt.s32.f32 %v3757
    %vm3762 = vcmp.ge.f32.partialorder %v3608, 1.4
    %vm3763 = vcmp.ge.f32.partialorder %v3613, 1.4
    %vm3764 = vcmp.ge.f32.partialorder %v3618, 1.4
    %vm3765 = vcmp.ge.f32.partialorder %v3623, 1.4
    %v3766 = vsel %vm3762, 1, 0
    %v3767 = vsel %vm3763, 1, 0
    %v3768 = vsel %vm3764, 1, 0
    %v3769 = vsel %vm3765, 1, 0
    %v3770 = vcvt.s32.f32 %v3766
    %v3771 = vcvt.s32.f32 %v3767
    %v3772 = vcvt.s32.f32 %v3768
    %v3773 = vcvt.s32.f32 %v3769
    %vm3774 = vcmp.ge.f32.partialorder %v3608, 1.8
    %vm3775 = vcmp.ge.f32.partialorder %v3613, 1.8
    %vm3776 = vcmp.ge.f32.partialorder %v3618, 1.8
    %vm3777 = vcmp.ge.f32.partialorder %v3623, 1.8
    %v3778 = vsel %vm3774, 1, 0
    %v3779 = vsel %vm3775, 1, 0
    %v3780 = vsel %vm3776, 1, 0
    %v3781 = vsel %vm3777, 1, 0
    %v3782 = vcvt.s32.f32 %v3778
    %v3783 = vcvt.s32.f32 %v3779
    %v3784 = vcvt.s32.f32 %v3780
    %v3785 = vcvt.s32.f32 %v3781
    %vm3786 = vcmp.ge.f32.partialorder %v3608, 2.2
    %vm3787 = vcmp.ge.f32.partialorder %v3613, 2.2
    %vm3788 = vcmp.ge.f32.partialorder %v3618, 2.2
    %vm3789 = vcmp.ge.f32.partialorder %v3623, 2.2
    %v3790 = vsel %vm3786, 1, 0
    %v3791 = vsel %vm3787, 1, 0
    %v3792 = vsel %vm3788, 1, 0
    %v3793 = vsel %vm3789, 1, 0
    %v3794 = vcvt.s32.f32 %v3790
    %v3795 = vcvt.s32.f32 %v3791
    %v3796 = vcvt.s32.f32 %v3792
    %v3797 = vcvt.s32.f32 %v3793
    %v3798 = vsub.f32 %v3662, %v3674
    %v3799 = vsub.f32 %v3663, %v3675
    %v3800 = vsub.f32 %v3664, %v3676
    %v3801 = vsub.f32 %v3665, %v3677
    %v3802 = vsub.f32 %v3674, %v3686
    %v3803 = vsub.f32 %v3675, %v3687
    %v3804 = vsub.f32 %v3676, %v3688
    %v3805 = vsub.f32 %v3677, %v3689
    %v3806 = vsub.f32 %v3686, %v3698
    %v3807 = vsub.f32 %v3687, %v3699
    %v3808 = vsub.f32 %v3688, %v3700
    %v3809 = vsub.f32 %v3689, %v3701
    %v3810 = vsub.f32 %v3698, %v3710
    %v3811 = vsub.f32 %v3699, %v3711
    %v3812 = vsub.f32 %v3700, %v3712
    %v3813 = vsub.f32 %v3701, %v3713
    %v3814 = vsub.f32 %v3710, %v3722
    %v3815 = vsub.f32 %v3711, %v3723
    %v3816 = vsub.f32 %v3712, %v3724
    %v3817 = vsub.f32 %v3713, %v3725
    %v3818 = vsub.f32 %v3722, %v3734
    %v3819 = vsub.f32 %v3723, %v3735
    %v3820 = vsub.f32 %v3724, %v3736
    %v3821 = vsub.f32 %v3725, %v3737
    %v3822 = vsub.f32 %v3734, %v3746
    %v3823 = vsub.f32 %v3735, %v3747
    %v3824 = vsub.f32 %v3736, %v3748
    %v3825 = vsub.f32 %v3737, %v3749
    %v3826 = vsub.f32 %v3746, %v3758
    %v3827 = vsub.f32 %v3747, %v3759
    %v3828 = vsub.f32 %v3748, %v3760
    %v3829 = vsub.f32 %v3749, %v3761
    %v3830 = vsub.f32 %v3758, %v3770
    %v3831 = vsub.f32 %v3759, %v3771
    %v3832 = vsub.f32 %v3760, %v3772
    %v3833 = vsub.f32 %v3761, %v3773
    %v3834 = vsub.f32 %v3770, %v3782
    %v3835 = vsub.f32 %v3771, %v3783
    %v3836 = vsub.f32 %v3772, %v3784
    %v3837 = vsub.f32 %v3773, %v3785
    %v3838 = vsub.f32 %v3782, %v3794
    %v3839 = vsub.f32 %v3783, %v3795
    %v3840 = vsub.f32 %v3784, %v3796
    %v3841 = vsub.f32 %v3785, %v3797
    %v3842 = vsub.f32 %v3608, -2.2
    %v3843 = vsub.f32 %v3613, -2.2
    %v3844 = vsub.f32 %v3618, -2.2
    %v3845 = vsub.f32 %v3623, -2.2
    %v3846 = vsub.f32 %v3608, -1.8
    %v3847 = vsub.f32 %v3613, -1.8
    %v3848 = vsub.f32 %v3618, -1.8
    %v3849 = vsub.f32 %v3623, -1.8
    %v3850 = vsub.f32 %v3608, -1.4
    %v3851 = vsub.f32 %v3613, -1.4
    %v3852 = vsub.f32 %v3618, -1.4
    %v3853 = vsub.f32 %v3623, -1.4
    %v3854 = vsub.f32 %v3608, -1.0
    %v3855 = vsub.f32 %v3613, -1.0
    %v3856 = vsub.f32 %v3618, -1.0
    %v3857 = vsub.f32 %v3623, -1.0
    %v3858 = vsub.f32 %v3608, -0.6
    %v3859 = vsub.f32 %v3613, -0.6
    %v3860 = vsub.f32 %v3618, -0.6
    %v3861 = vsub.f32 %v3623, -0.6
    %v3862 = vsub.f32 %v3608, -0.2
    %v3863 = vsub.f32 %v3613, -0.2
    %v3864 = vsub.f32 %v3618, -0.2
    %v3865 = vsub.f32 %v3623, -0.2
    %v3866 = vsub.f32 %v3608, 0.2
    %v3867 = vsub.f32 %v3613, 0.2
    %v3868 = vsub.f32 %v3618, 0.2
    %v3869 = vsub.f32 %v3623, 0.2
    %v3870 = vsub.f32 %v3608, 0.6
    %v3871 = vsub.f32 %v3613, 0.6
    %v3872 = vsub.f32 %v3618, 0.6
    %v3873 = vsub.f32 %v3623, 0.6
    %v3874 = vsub.f32 %v3608, 1.0
    %v3875 = vsub.f32 %v3613, 1.0
    %v3876 = vsub.f32 %v3618, 1.0
    %v3877 = vsub.f32 %v3623, 1.0
    %v3878 = vsub.f32 %v3608, 1.4
    %v3879 = vsub.f32 %v3613, 1.4
    %v3880 = vsub.f32 %v3618, 1.4
    %v3881 = vsub.f32 %v3623, 1.4
    %v3882 = vsub.f32 %v3608, 1.8
    %v3883 = vsub.f32 %v3613, 1.8
    %v3884 = vsub.f32 %v3618, 1.8
    %v3885 = vsub.f32 %v3623, 1.8
    %v3886 = vsub.f32 %v3608, 2.2
    %v3887 = vsub.f32 %v3613, 2.2
    %v3888 = vsub.f32 %v3618, 2.2
    %v3889 = vsub.f32 %v3623, 2.2
    %v3890 = vmul.f32 %v3842, %v3798
    %v3891 = vmul.f32 %v3843, %v3799
    %v3892 = vmul.f32 %v3844, %v3800
    %v3893 = vmul.f32 %v3845, %v3801
    %v3894 = vmul.f32 %v3850, %v3802
    %v3895 = vmul.f32 %v3851, %v3803
    %v3896 = vmul.f32 %v3852, %v3804
    %v3897 = vmul.f32 %v3853, %v3805
    %v3898 = vsub.f32 %v3890, %v3894
    %v3899 = vsub.f32 %v3891, %v3895
    %v3900 = vsub.f32 %v3892, %v3896
    %v3901 = vsub.f32 %v3893, %v3897
    %v3902 = vmul.f32 %v3846, %v3802
    %v3903 = vmul.f32 %v3847, %v3803
    %v3904 = vmul.f32 %v3848, %v3804
    %v3905 = vmul.f32 %v3849, %v3805
    %v3906 = vmul.f32 %v3854, %v3806
    %v3907 = vmul.f32 %v3855, %v3807
    %v3908 = vmul.f32 %v3856, %v3808
    %v3909 = vmul.f32 %v3857, %v3809
    %v3910 = vsub.f32 %v3902, %v3906
    %v3911 = vsub.f32 %v3903, %v3907
    %v3912 = vsub.f32 %v3904, %v3908
    %v3913 = vsub.f32 %v3905, %v3909
    %v3914 = vmul.f32 %v3850, %v3806
    %v3915 = vmul.f32 %v3851, %v3807
    %v3916 = vmul.f32 %v3852, %v3808
    %v3917 = vmul.f32 %v3853, %v3809
    %v3918 = vmul.f32 %v3858, %v3810
    %v3919 = vmul.f32 %v3859, %v3811
    %v3920 = vmul.f32 %v3860, %v3812
    %v3921 = vmul.f32 %v3861, %v3813
    %v3922 = vsub.f32 %v3914, %v3918
    %v3923 = vsub.f32 %v3915, %v3919
    %v3924 = vsub.f32 %v3916, %v3920
    %v3925 = vsub.f32 %v3917, %v3921
    %v3926 = vmul.f32 %v3854, %v3810
    %v3927 = vmul.f32 %v3855, %v3811
    %v3928 = vmul.f32 %v3856, %v3812
    %v3929 = vmul.f32 %v3857, %v3813
    %v3930 = vmul.f32 %v3862, %v3814
    %v3931 = vmul.f32 %v3863, %v3815
    %v3932 = vmul.f32 %v3864, %v3816
    %v3933 = vmul.f32 %v3865, %v3817
    %v3934 = vsub.f32 %v3926, %v3930
    %v3935 = vsub.f32 %v3927, %v3931
    %v3936 = vsub.f32 %v3928, %v3932
    %v3937 = vsub.f32 %v3929, %v3933
    %v3938 = vmul.f32 %v3858, %v3814
    %v3939 = vmul.f32 %v3859, %v3815
    %v3940 = vmul.f32 %v3860, %v3816
    %v3941 = vmul.f32 %v3861, %v3817
    %v3942 = vmul.f32 %v3866, %v3818
    %v3943 = vmul.f32 %v3867, %v3819
    %v3944 = vmul.f32 %v3868, %v3820
    %v3945 = vmul.f32 %v3869, %v3821
    %v3946 = vsub.f32 %v3938, %v3942
    %v3947 = vsub.f32 %v3939, %v3943
    %v3948 = vsub.f32 %v3940, %v3944
    %v3949 = vsub.f32 %v3941, %v3945
    %v3950 = vmul.f32 %v3862, %v3818
    %v3951 = vmul.f32 %v3863, %v3819
    %v3952 = vmul.f32 %v3864, %v3820
    %v3953 = vmul.f32 %v3865, %v3821
    %v3954 = vmul.f32 %v3870, %v3822
    %v3955 = vmul.f32 %v3871, %v3823
    %v3956 = vmul.f32 %v3872, %v3824
    %v3957 = vmul.f32 %v3873, %v3825
    %v3958 = vsub.f32 %v3950, %v3954
    %v3959 = vsub.f32 %v3951, %v3955
    %v3960 = vsub.f32 %v3952, %v3956
    %v3961 = vsub.f32 %v3953, %v3957
    %v3962 = vmul.f32 %v3866, %v3822
    %v3963 = vmul.f32 %v3867, %v3823
    %v3964 = vmul.f32 %v3868, %v3824
    %v3965 = vmul.f32 %v3869, %v3825
    %v3966 = vmul.f32 %v3874, %v3826
    %v3967 = vmul.f32 %v3875, %v3827
    %v3968 = vmul.f32 %v3876, %v3828
    %v3969 = vmul.f32 %v3877, %v3829
    %v3970 = vsub.f32 %v3962, %v3966
    %v3971 = vsub.f32 %v3963, %v3967
    %v3972 = vsub.f32 %v3964, %v3968
    %v3973 = vsub.f32 %v3965, %v3969
    %v3974 = vmul.f32 %v3870, %v3826
    %v3975 = vmul.f32 %v3871, %v3827
    %v3976 = vmul.f32 %v3872, %v3828
    %v3977 = vmul.f32 %v3873, %v3829
    %v3978 = vmul.f32 %v3878, %v3830
    %v3979 = vmul.f32 %v3879, %v3831
    %v3980 = vmul.f32 %v3880, %v3832
    %v3981 = vmul.f32 %v3881, %v3833
    %v3982 = vsub.f32 %v3974, %v3978
    %v3983 = vsub.f32 %v3975, %v3979
    %v3984 = vsub.f32 %v3976, %v3980
    %v3985 = vsub.f32 %v3977, %v3981
    %v3986 = vmul.f32 %v3874, %v3830
    %v3987 = vmul.f32 %v3875, %v3831
    %v3988 = vmul.f32 %v3876, %v3832
    %v3989 = vmul.f32 %v3877, %v3833
    %v3990 = vmul.f32 %v3882, %v3834
    %v3991 = vmul.f32 %v3883, %v3835
    %v3992 = vmul.f32 %v3884, %v3836
    %v3993 = vmul.f32 %v3885, %v3837
    %v3994 = vsub.f32 %v3986, %v3990
    %v3995 = vsub.f32 %v3987, %v3991
    %v3996 = vsub.f32 %v3988, %v3992
    %v3997 = vsub.f32 %v3989, %v3993
    %v3998 = vmul.f32 %v3878, %v3834
    %v3999 = vmul.f32 %v3879, %v3835
    %v4000 = vmul.f32 %v3880, %v3836
    %v4001 = vmul.f32 %v3881, %v3837
    %v4002 = vmul.f32 %v3886, %v3838
    %v4003 = vmul.f32 %v3887, %v3839
    %v4004 = vmul.f32 %v3888, %v3840
    %v4005 = vmul.f32 %v3889, %v3841
    %v4006 = vsub.f32 %v3998, %v4002
    %v4007 = vsub.f32 %v3999, %v4003
    %v4008 = vsub.f32 %v4000, %v4004
    %v4009 = vsub.f32 %v4001, %v4005
    %v4010 = vmul.f32 %v3842, %v3898
    %v4011 = vmul.f32 %v3843, %v3899
    %v4012 = vmul.f32 %v3844, %v3900
    %v4013 = vmul.f32 %v3845, %v3901
    %v4014 = vmul.f32 %v3854, %v3910
    %v4015 = vmul.f32 %v3855, %v3911
    %v4016 = vmul.f32 %v3856, %v3912
    %v4017 = vmul.f32 %v3857, %v3913
    %v4018 = vsub.f32 %v4010, %v4014
    %v4019 = vsub.f32 %v4011, %v4015
    %v4020 = vsub.f32 %v4012, %v4016
    %v4021 = vsub.f32 %v4013, %v4017
    %v4022 = vmul.f32 %v3846, %v3910
    %v4023 = vmul.f32 %v3847, %v3911
    %v4024 = vmul.f32 %v3848, %v3912
    %v4025 = vmul.f32 %v3849, %v3913
    %v4026 = vmul.f32 %v3858, %v3922
    %v4027 = vmul.f32 %v3859, %v3923
    %v4028 = vmul.f32 %v3860, %v3924
    %v4029 = vmul.f32 %v3861, %v3925
    %v4030 = vsub.f32 %v4022, %v4026
    %v4031 = vsub.f32 %v4023, %v4027
    %v4032 = vsub.f32 %v4024, %v4028
    %v4033 = vsub.f32 %v4025, %v4029
    %v4034 = vmul.f32 %v3850, %v3922
    %v4035 = vmul.f32 %v3851, %v3923
    %v4036 = vmul.f32 %v3852, %v3924
    %v4037 = vmul.f32 %v3853, %v3925
    %v4038 = vmul.f32 %v3862, %v3934
    %v4039 = vmul.f32 %v3863, %v3935
    %v4040 = vmul.f32 %v3864, %v3936
    %v4041 = vmul.f32 %v3865, %v3937
    %v4042 = vsub.f32 %v4034, %v4038
    %v4043 = vsub.f32 %v4035, %v4039
    %v4044 = vsub.f32 %v4036, %v4040
    %v4045 = vsub.f32 %v4037, %v4041
    %v4046 = vmul.f32 %v3854, %v3934
    %v4047 = vmul.f32 %v3855, %v3935
    %v4048 = vmul.f32 %v3856, %v3936
    %v4049 = vmul.f32 %v3857, %v3937
    %v4050 = vmul.f32 %v3866, %v3946
    %v4051 = vmul.f32 %v3867, %v3947
    %v4052 = vmul.f32 %v3868, %v3948
    %v4053 = vmul.f32 %v3869, %v3949
    %v4054 = vsub.f32 %v4046, %v4050
    %v4055 = vsub.f32 %v4047, %v4051
    %v4056 = vsub.f32 %v4048, %v4052
    %v4057 = vsub.f32 %v4049, %v4053
    %v4058 = vmul.f32 %v3858, %v3946
    %v4059 = vmul.f32 %v3859, %v3947
    %v4060 = vmul.f32 %v3860, %v3948
    %v4061 = vmul.f32 %v3861, %v3949
    %v4062 = vmul.f32 %v3870, %v3958
    %v4063 = vmul.f32 %v3871, %v3959
    %v4064 = vmul.f32 %v3872, %v3960
    %v4065 = vmul.f32 %v3873, %v3961
    %v4066 = vsub.f32 %v4058, %v4062
    %v4067 = vsub.f32 %v4059, %v4063
    %v4068 = vsub.f32 %v4060, %v4064
    %v4069 = vsub.f32 %v4061, %v4065
    %v4070 = vmul.f32 %v3862, %v3958
    %v4071 = vmul.f32 %v3863, %v3959
    %v4072 = vmul.f32 %v3864, %v3960
    %v4073 = vmul.f32 %v3865, %v3961
    %v4074 = vmul.f32 %v3874, %v3970
    %v4075 = vmul.f32 %v3875, %v3971
    %v4076 = vmul.f32 %v3876, %v3972
    %v4077 = vmul.f32 %v3877, %v3973
    %v4078 = vsub.f32 %v4070, %v4074
    %v4079 = vsub.f32 %v4071, %v4075
    %v4080 = vsub.f32 %v4072, %v4076
    %v4081 = vsub.f32 %v4073, %v4077
    %v4082 = vmul.f32 %v3866, %v3970
    %v4083 = vmul.f32 %v3867, %v3971
    %v4084 = vmul.f32 %v3868, %v3972
    %v4085 = vmul.f32 %v3869, %v3973
    %v4086 = vmul.f32 %v3878, %v3982
    %v4087 = vmul.f32 %v3879, %v3983
    %v4088 = vmul.f32 %v3880, %v3984
    %v4089 = vmul.f32 %v3881, %v3985
    %v4090 = vsub.f32 %v4082, %v4086
    %v4091 = vsub.f32 %v4083, %v4087
    %v4092 = vsub.f32 %v4084, %v4088
    %v4093 = vsub.f32 %v4085, %v4089
    %v4094 = vmul.f32 %v3870, %v3982
    %v4095 = vmul.f32 %v3871, %v3983
    %v4096 = vmul.f32 %v3872, %v3984
    %v4097 = vmul.f32 %v3873, %v3985
    %v4098 = vmul.f32 %v3882, %v3994
    %v4099 = vmul.f32 %v3883, %v3995
    %v4100 = vmul.f32 %v3884, %v3996
    %v4101 = vmul.f32 %v3885, %v3997
    %v4102 = vsub.f32 %v4094, %v4098
    %v4103 = vsub.f32 %v4095, %v4099
    %v4104 = vsub.f32 %v4096, %v4100
    %v4105 = vsub.f32 %v4097, %v4101
    %v4106 = vmul.f32 %v3874, %v3994
    %v4107 = vmul.f32 %v3875, %v3995
    %v4108 = vmul.f32 %v3876, %v3996
    %v4109 = vmul.f32 %v3877, %v3997
    %v4110 = vmul.f32 %v3886, %v4006
    %v4111 = vmul.f32 %v3887, %v4007
    %v4112 = vmul.f32 %v3888, %v4008
    %v4113 = vmul.f32 %v3889, %v4009
    %v4114 = vsub.f32 %v4106, %v4110
    %v4115 = vsub.f32 %v4107, %v4111
    %v4116 = vsub.f32 %v4108, %v4112
    %v4117 = vsub.f32 %v4109, %v4113
    %v4118 = vmul.f32 %v3842, %v4018
    %v4119 = vmul.f32 %v3843, %v4019
    %v4120 = vmul.f32 %v3844, %v4020
    %v4121 = vmul.f32 %v3845, %v4021
    %v4122 = vmul.f32 %v3858, %v4030
    %v4123 = vmul.f32 %v3859, %v4031
    %v4124 = vmul.f32 %v3860, %v4032
    %v4125 = vmul.f32 %v3861, %v4033
    %v4126 = vsub.f32 %v4118, %v4122
    %v4127 = vsub.f32 %v4119, %v4123
    %v4128 = vsub.f32 %v4120, %v4124
    %v4129 = vsub.f32 %v4121, %v4125
    %v4130 = vmul.f32 %v3846, %v4030
    %v4131 = vmul.f32 %v3847, %v4031
    %v4132 = vmul.f32 %v3848, %v4032
    %v4133 = vmul.f32 %v3849, %v4033
    %v4134 = vmul.f32 %v3862, %v4042
    %v4135 = vmul.f32 %v3863, %v4043
    %v4136 = vmul.f32 %v3864, %v4044
    %v4137 = vmul.f32 %v3865, %v4045
    %v4138 = vsub.f32 %v4130, %v4134
    %v4139 = vsub.f32 %v4131, %v4135
    %v4140 = vsub.f32 %v4132, %v4136
    %v4141 = vsub.f32 %v4133, %v4137
    %v4142 = vmul.f32 %v3850, %v4042
    %v4143 = vmul.f32 %v3851, %v4043
    %v4144 = vmul.f32 %v3852, %v4044
    %v4145 = vmul.f32 %v3853, %v4045
    %v4146 = vmul.f32 %v3866, %v4054
    %v4147 = vmul.f32 %v3867, %v4055
    %v4148 = vmul.f32 %v3868, %v4056
    %v4149 = vmul.f32 %v3869, %v4057
    %v4150 = vsub.f32 %v4142, %v4146
    %v4151 = vsub.f32 %v4143, %v4147
    %v4152 = vsub.f32 %v4144, %v4148
    %v4153 = vsub.f32 %v4145, %v4149
    %v4154 = vmul.f32 %v3854, %v4054
    %v4155 = vmul.f32 %v3855, %v4055
    %v4156 = vmul.f32 %v3856, %v4056
    %v4157 = vmul.f32 %v3857, %v4057
    %v4158 = vmul.f32 %v3870, %v4066
    %v4159 = vmul.f32 %v3871, %v4067
    %v4160 = vmul.f32 %v3872, %v4068
    %v4161 = vmul.f32 %v3873, %v4069
    %v4162 = vsub.f32 %v4154, %v4158
    %v4163 = vsub.f32 %v4155, %v4159
    %v4164 = vsub.f32 %v4156, %v4160
    %v4165 = vsub.f32 %v4157, %v4161
    %v4166 = vmul.f32 %v3858, %v4066
    %v4167 = vmul.f32 %v3859, %v4067
    %v4168 = vmul.f32 %v3860, %v4068
    %v4169 = vmul.f32 %v3861, %v4069
    %v4170 = vmul.f32 %v3874, %v4078
    %v4171 = vmul.f32 %v3875, %v4079
    %v4172 = vmul.f32 %v3876, %v4080
    %v4173 = vmul.f32 %v3877, %v4081
    %v4174 = vsub.f32 %v4166, %v4170
    %v4175 = vsub.f32 %v4167, %v4171
    %v4176 = vsub.f32 %v4168, %v4172
    %v4177 = vsub.f32 %v4169, %v4173
    %v4178 = vmul.f32 %v3862, %v4078
    %v4179 = vmul.f32 %v3863, %v4079
    %v4180 = vmul.f32 %v3864, %v4080
    %v4181 = vmul.f32 %v3865, %v4081
    %v4182 = vmul.f32 %v3878, %v4090
    %v4183 = vmul.f32 %v3879, %v4091
    %v4184 = vmul.f32 %v3880, %v4092
    %v4185 = vmul.f32 %v3881, %v4093
    %v4186 = vsub.f32 %v4178, %v4182
    %v4187 = vsub.f32 %v4179, %v4183
    %v4188 = vsub.f32 %v4180, %v4184
    %v4189 = vsub.f32 %v4181, %v4185
    %v4190 = vmul.f32 %v3866, %v4090
    %v4191 = vmul.f32 %v3867, %v4091
    %v4192 = vmul.f32 %v3868, %v4092
    %v4193 = vmul.f32 %v3869, %v4093
    %v4194 = vmul.f32 %v3882, %v4102
    %v4195 = vmul.f32 %v3883, %v4103
    %v4196 = vmul.f32 %v3884, %v4104
    %v4197 = vmul.f32 %v3885, %v4105
    %v4198 = vsub.f32 %v4190, %v4194
    %v4199 = vsub.f32 %v4191, %v4195
    %v4200 = vsub.f32 %v4192, %v4196
    %v4201 = vsub.f32 %v4193, %v4197
    %v4202 = vmul.f32 %v3870, %v4102
    %v4203 = vmul.f32 %v3871, %v4103
    %v4204 = vmul.f32 %v3872, %v4104
    %v4205 = vmul.f32 %v3873, %v4105
    %v4206 = vmul.f32 %v3886, %v4114
    %v4207 = vmul.f32 %v3887, %v4115
    %v4208 = vmul.f32 %v3888, %v4116
    %v4209 = vmul.f32 %v3889, %v4117
    %v4210 = vsub.f32 %v4202, %v4206
    %v4211 = vsub.f32 %v4203, %v4207
    %v4212 = vsub.f32 %v4204, %v4208
    %v4213 = vsub.f32 %v4205, %v4209
    %v4214 = vld [vmem:[%s6] sm:$0x3f]
    %v4216 = vcombine.high %v4214, %v4214
    %v4218 = vunpack.c.l.s4 1983009808
    %v4219 = vunpack.c.0.s8 %v4218
    %v4220 = vlaneseq
    %v4221 = vshrl.u32 %v4220, 7
    %v4222 = vsub.s32 %v4219, %v4221
    %v4223 = vrot.slane %v4214, %v4222
    %v4225 = vunpack.c.l.s4 1983009808
    %v4226 = vunpack.c.0.s8 %v4225
    %v4227 = vlaneseq
    %v4228 = vshrl.u32 %v4227, 7
    %v4229 = vsub.s32 %v4226, %v4228
    %v4230 = vrot.slane %v4216, %v4229
    %v4231 = vcombine.high %v4223, %v4223
    %v4234 = vsel %vm1097, %v4230, 0
    %4236 = vmatprep.subr.mxu0 0.0
    %4237 = vmatpush1.msra.mxu0 %v4153
    %4238 = vmatprep.subr.mxu0 0.0
    %4239 = vmatpush1.msra.mxu0 %v4152
    %4240 = vmatprep.subr.mxu0 0.0
    %4241 = vmatpush1.msra.mxu0 %v4151
    %4242 = vmatprep.subr.mxu0 0.0
    %4243 = vmatpush1.msra.mxu0 %v4150
    %4244 = vmatprep.subr.mxu0 0.0
    %4245 = vmatpush1.msra.mxu0 %v4141
    %4246 = vmatprep.subr.mxu0 0.0
    %4247 = vmatpush1.msra.mxu0 %v4140
    %4248 = vmatprep.subr.mxu0 0.0
    %4249 = vmatpush1.msra.mxu0 %v4139
    %4250 = vmatprep.subr.mxu0 0.0
    %4251 = vmatpush1.msra.mxu0 %v4138
    %4252 = vmatprep.subr.mxu0 0.0
    %4253 = vmatpush1.msra.mxu0 %v4129
    %4254 = vmatprep.subr.mxu0 0.0
    %4255 = vmatpush1.msra.mxu0 %v4128
    %4256 = vmatprep.subr.mxu0 0.0
    %4257 = vmatpush1.msra.mxu0 %v4127
    %4258 = vmatprep.subr.mxu0 0.0
    %4259 = vmatpush1.msra.mxu0 %v4126
    %4260 = vmatprep.subr.mxu0 0.0
    %4261 = vmatpush1.msra.mxu0 %v3653
    %4262 = vmatprep.subr.mxu0 0.0
    %4263 = vmatpush1.msra.mxu0 %v3652
    %4264 = vmatprep.subr.mxu0 0.0
    %4265 = vmatpush1.msra.mxu0 %v3651
    %4266 = vmatprep.subr.mxu0 0.0
    %4267 = vmatpush1.msra.mxu0 %v3650
    %4268 = vmatprep.subr.mxu0 0.0
    %4269 = vmatpush2.msra.mxu0 %v4201
    %4270 = vmatprep.subr.mxu0 0.0
    %4271 = vmatpush2.msra.mxu0 %v4200
    %4272 = vmatprep.subr.mxu0 0.0
    %4273 = vmatpush2.msra.mxu0 %v4199
    %4274 = vmatprep.subr.mxu0 0.0
    %4275 = vmatpush2.msra.mxu0 %v4198
    %4276 = vmatprep.subr.mxu0 0.0
    %4277 = vmatpush2.msra.mxu0 %v4189
    %4278 = vmatprep.subr.mxu0 0.0
    %4279 = vmatpush2.msra.mxu0 %v4188
    %4280 = vmatprep.subr.mxu0 0.0
    %4281 = vmatpush2.msra.mxu0 %v4187
    %4282 = vmatprep.subr.mxu0 0.0
    %4283 = vmatpush2.msra.mxu0 %v4186
    %4284 = vmatprep.subr.mxu0 0.0
    %4285 = vmatpush2.msra.mxu0 %v4177
    %4286 = vmatprep.subr.mxu0 0.0
    %4287 = vmatpush2.msra.mxu0 %v4176
    %4288 = vmatprep.subr.mxu0 0.0
    %4289 = vmatpush2.msra.mxu0 %v4175
    %4290 = vmatprep.subr.mxu0 0.0
    %4291 = vmatpush2.msra.mxu0 %v4174
    %4292 = vmatprep.subr.mxu0 0.0
    %4293 = vmatpush2.msra.mxu0 %v4165
    %4294 = vmatprep.subr.mxu0 0.0
    %4295 = vmatpush2.msra.mxu0 %v4164
    %4296 = vmatprep.subr.mxu0 0.0
    %4297 = vmatpush2.msra.mxu0 %v4163
    %4298 = vmatprep.subr.mxu0 0.0
    %4299 = vmatpush2.msra.mxu0 %v4162
    %4300 = vmatprep.mubr.f32.mxu0 %v4231
    %4301 = vmatmul.mubr.f32.gmra.mxu0 %v4223
    %v4302 = vpop.f32.mrf.mxu0
    %v4303 = vadd.f32 0.0, %v4302
    %v4304 = vpop.f32.mrf.mxu0
    %4305 = vdwg.mxu0
    %4306 = vmatprep.subr.mxu0 0.0
    %4307 = vmatpush1.msra.mxu0 0.0
    %4308 = vmatprep.subr.mxu0 0.0
    %4309 = vmatpush1.msra.mxu0 0.0
    %4310 = vmatprep.subr.mxu0 0.0
    %4311 = vmatpush1.msra.mxu0 0.0
    %4312 = vmatprep.subr.mxu0 0.0
    %4313 = vmatpush1.msra.mxu0 0.0
    %4314 = vmatprep.subr.mxu0 0.0
    %4315 = vmatpush1.msra.mxu0 0.0
    %4316 = vmatprep.subr.mxu0 0.0
    %4317 = vmatpush1.msra.mxu0 0.0
    %4318 = vmatprep.subr.mxu0 0.0
    %4319 = vmatpush1.msra.mxu0 0.0
    %4320 = vmatprep.subr.mxu0 0.0
    %4321 = vmatpush1.msra.mxu0 0.0
    %4322 = vmatprep.subr.mxu0 0.0
    %4323 = vmatpush1.msra.mxu0 0.0
    %4324 = vmatprep.subr.mxu0 0.0
    %4325 = vmatpush1.msra.mxu0 0.0
    %4326 = vmatprep.subr.mxu0 0.0
    %4327 = vmatpush1.msra.mxu0 0.0
    %4328 = vmatprep.subr.mxu0 0.0
    %4329 = vmatpush1.msra.mxu0 0.0
    %4330 = vmatprep.subr.mxu0 0.0
    %4331 = vmatpush1.msra.mxu0 %v4213
    %4332 = vmatprep.subr.mxu0 0.0
    %4333 = vmatpush1.msra.mxu0 %v4212
    %4334 = vmatprep.subr.mxu0 0.0
    %4335 = vmatpush1.msra.mxu0 %v4211
    %4336 = vmatprep.subr.mxu0 0.0
    %4337 = vmatpush1.msra.mxu0 %v4210
    %4338 = vmatprep.subr.mxu0 0.0
    %4339 = vmatpush2.msra.mxu0 0.0
    %4340 = vmatprep.subr.mxu0 0.0
    %4341 = vmatpush2.msra.mxu0 0.0
    %4342 = vmatprep.subr.mxu0 0.0
    %4343 = vmatpush2.msra.mxu0 0.0
    %4344 = vmatprep.subr.mxu0 0.0
    %4345 = vmatpush2.msra.mxu0 0.0
    %4346 = vmatprep.subr.mxu0 0.0
    %4347 = vmatpush2.msra.mxu0 0.0
    %4348 = vmatprep.subr.mxu0 0.0
    %4349 = vmatpush2.msra.mxu0 0.0
    %4350 = vmatprep.subr.mxu0 0.0
    %4351 = vmatpush2.msra.mxu0 0.0
    %4352 = vmatprep.subr.mxu0 0.0
    %4353 = vmatpush2.msra.mxu0 0.0
    %4354 = vmatprep.subr.mxu0 0.0
    %4355 = vmatpush2.msra.mxu0 0.0
    %4356 = vmatprep.subr.mxu0 0.0
    %4357 = vmatpush2.msra.mxu0 0.0
    %4358 = vmatprep.subr.mxu0 0.0
    %4359 = vmatpush2.msra.mxu0 0.0
    %4360 = vmatprep.subr.mxu0 0.0
    %4361 = vmatpush2.msra.mxu0 0.0
    %4362 = vmatprep.subr.mxu0 0.0
    %4363 = vmatpush2.msra.mxu0 0.0
    %4364 = vmatprep.subr.mxu0 0.0
    %4365 = vmatpush2.msra.mxu0 0.0
    %4366 = vmatprep.subr.mxu0 0.0
    %4367 = vmatpush2.msra.mxu0 0.0
    %4368 = vmatprep.subr.mxu0 0.0
    %4369 = vmatpush2.msra.mxu0 0.0
    %4370 = vmatprep.mubr.f32.mxu0 0.0
    %4371 = vmatmul.mubr.f32.gmra.mxu0 %v4234
    %v4372 = vpop.f32.mrf.mxu0
    %v4373 = vadd.f32 %v4303, %v4372
    %v4374 = vpop.f32.mrf.mxu0
    %4375 = vdwg.mxu0
    %v4376 = vxor.u32 %v4373, 2147483648
    %v4377 = vmul.f32 %v4376, 1.442695
    %v4378 = vpow.pop %v4377
    %v4379 = vadd.f32 %v4378, 1.0
    %v4380 = vrcp.pop %v4379
    %v4381 = vmul.f32 1.0, %v4380
    %vm4382 = vcmask 58368
    %4383 = vst.msk [vmem:[#allocation11] sm:$0x3] %vm4382, %v4381
    // Predicated region
    $region50: #{tpu_custom_call.1} parent=1 // pred_check
      _
    $region51: #{tpu_custom_call.1} parent=1 // pred_check_branch
      %4385 = sbr.rel (0) target = $region53
    $region52: #{tpu_custom_call.1} parent=1 // pred_region
      %s4387 = ssub.s32 32, 32
      %4388 = vsyncadd [#allocation4], %s4387
      %s4390 = sshll.u32 [#allocation11], 4
      %s4391 = int_to_ptr.vmem [resolvable:$true] %s4390
      %4393 = dma.vmem_to_hbm [thread:$0]  %s4391, 32, %s7, [#allocation4]
    $region53: #{tpu_custom_call.1} parent=1 // pred_fallthru
      _
    // Predicated region
    $region54: #{tpu_custom_call.1} parent=1 // pred_check
      _
    $region55: #{tpu_custom_call.1} parent=1 // pred_check_branch
      %4395 = sbr.rel (0) target = $region57
    $region56: #{tpu_custom_call.1} parent=1 // pred_region
      %4396 = dma.done [#allocation4], 32
    $region57: #{tpu_custom_call.1} parent=1 // pred_fallthru
      _
    %4397 = vsyncpa [#allocation3], 1
    %4398 = vsyncpa [#allocation6], 1
    %4399 = vsyncpa [#allocation9], 1
    %4400 = vsyncpa [#allocation4], 1

</llo_original>
